<compile_context>
chip_gen: v7x
topology: tpu7x:2x2x1
jax: 0.10.0
libtpu: 0.0.40
codegen_flags: <defaults>
</compile_context>

<pallas_src>
import numpy as np

import jax
import jax.numpy as jnp
from jax import lax
from jax.experimental import pallas as pl
from jax.experimental.pallas import tpu as pltpu


def _round_up(x, m):
    return ((int(x) + m - 1) // m) * m


# ---------------------------------------------------------------------------
# MSE branch: tiled, lane-dense sum-of-squared-differences reduction.
# ---------------------------------------------------------------------------
_MSE_PALLAS_MIN_ELEMS = 65536


def mse_loss(outputs, targets):
    n = int(outputs.size)
    if n < _MSE_PALLAS_MIN_ELEMS:
        # Kernel launch + pipeline overhead dominates at tiny sizes; XLA fuses this.
        d = outputs.astype(jnp.float32) - targets.astype(jnp.float32)
        return jnp.mean(d * d)

    lanes = 128
    rows = int(pl.cdiv(n, lanes))

    o = outputs.reshape(-1)
    t = targets.reshape(-1)
    pad = rows * lanes - n
    if pad:
        # TODO(synk): lane-tail pad is one extra XLA copy (only when n % 128 != 0).
        o = jnp.pad(o, (0, pad))
        t = jnp.pad(t, (0, pad))
    o2 = o.reshape(rows, lanes)
    t2 = t.reshape(rows, lanes)

    # 2048 x 128 f32 = 1 MiB per input block; 2 inputs x 2 pipeline buffers
    # ~= 4 MiB -> fits every generation's default scoped VMEM.
    tile_rows = int(min(2048, _round_up(rows, 8)))
    blocks = int(pl.cdiv(rows, tile_rows))
    num_chunks = 2 if blocks >= 2 else 1        # both v7x TensorCores stream HBM
    inner = int(pl.cdiv(blocks, num_chunks))
    groups = tile_rows // 8

    def kernel(o_ref, t_ref, out_ref):
        c = pl.program_id(0)
        k = pl.program_id(1)

        @pl.when(k == 0)
        def _():
            out_ref[...] = jnp.zeros_like(out_ref)

        blk = c * inner + k
        d = o_ref[...].astype(jnp.float32) - t_ref[...].astype(jnp.float32)
        sq = d * d
        is_edge = blk >= (blocks - 1)

        # Hot path: no masking; fold the tile down to (8, 128) and accumulate.
        @pl.when(jnp.logical_not(is_edge))
        def _():
            out_ref[...] += sq.reshape(groups, 8, lanes).sum(axis=0)

        # Tail / clamped-overshoot blocks: mask rows beyond `rows` to zero.
        @pl.when(is_edge)
        def _():
            rid = blk * tile_rows + lax.broadcasted_iota(
                jnp.int32, (tile_rows, lanes), 0)
            msq = jnp.where(rid < rows, sq, jnp.float32(0.0))
            out_ref[...] += msq.reshape(groups, 8, lanes).sum(axis=0)

    def in_map(c, k):
        # TODO(synk): overshoot steps (blocks % num_chunks != 0) re-DMA the last
        # block and contribute zero; balancing per-chunk extents would skip it.
        return (jnp.minimum(c * inner + k, blocks - 1), 0)

    partials = pl.pallas_call(
        kernel,
        out_shape=jax.ShapeDtypeStruct((num_chunks * 8, lanes), jnp.float32),
        grid=(num_chunks, inner),
        in_specs=[pl.BlockSpec((tile_rows, lanes), in_map),
                  pl.BlockSpec((tile_rows, lanes), in_map)],
        out_specs=pl.BlockSpec((8, lanes), lambda c, k: (c, 0)),
        compiler_params=pltpu.CompilerParams(
            dimension_semantics=("parallel", "arbitrary"),
            vmem_limit_bytes=32 * 1024 * 1024),
    )(o2, t2)
    return jnp.sum(partials) / jnp.float32(n)


# ---------------------------------------------------------------------------
# Soft_DTW branch: MXU cost matrices + streamed anti-diagonal wavefront DP.
# ---------------------------------------------------------------------------
_DIAG_BLK = 8   # anti-diagonals processed per grid step (must be even)


def _sdtw_values(outputs, targets, gamma=0.001):
    """Per-item soft-DTW values for the normalize=True pairings.

    Returns r of shape (3B,): r[:B]=sdtw(o,t), r[B:2B]=sdtw(o,o), r[2B:]=sdtw(t,t).
    """
    assert outputs.shape == targets.shape, "Soft_DTW branch expects equal shapes"
    gamma = float(gamma)
    B, T, D = outputs.shape
    N = M = T
    NP = N + 1
    W = N + M - 1                     # number of DP anti-diagonals (d = 2..N+M)
    BB = 3 * B

    o = outputs.astype(jnp.float32)
    t = targets.astype(jnp.float32)

    # Pairwise squared distances for (o,t), (o,o), (t,t) in Gram form
    # ||x||^2 + ||y||^2 - 2 x.y^T  -> batched MXU matmuls (plain XLA, one pass).
    osq = jnp.sum(o * o, axis=-1)
    tsq = jnp.sum(t * t, axis=-1)
    g_ot = jnp.einsum('bnd,bmd->bnm', o, t, preferred_element_type=jnp.float32)
    g_oo = jnp.einsum('bnd,bmd->bnm', o, o, preferred_element_type=jnp.float32)
    g_tt = jnp.einsum('bnd,bmd->bnm', t, t, preferred_element_type=jnp.float32)
    cost = jnp.concatenate(
        [osq[:, :, None] + tsq[:, None, :] - 2.0 * g_ot,
         osq[:, :, None] + osq[:, None, :] - 2.0 * g_oo,
         tsq[:, :, None] + tsq[:, None, :] - 2.0 * g_tt], axis=0)    # (BB, N, M)

    # Skew so DP anti-diagonal d is the contiguous row k = d-2:
    #   csk[k, b, r] = cost[b, r, k-r]   (zeros where k-r is outside [0, M-1]).
    cpad = jnp.pad(cost, ((0, 0), (0, 0), (0, W + 1 - M)))           # (BB, N, W+1)
    csk = cpad.reshape(BB, N * (W + 1))[:, :N * W].reshape(BB, N, W)
    csk = jnp.transpose(csk, (2, 0, 1))                              # (W, BB, N)

    # Split large stacked batches over a leading "parallel" grid axis (one
    # independent wavefront per v7x TensorCore). Small batches stay on a single
    # chunk so single-core chips don't pay doubled per-step overhead.
    num_bchunks = 2 if BB >= 16 else 1
    bbh = _round_up(pl.cdiv(BB, num_bchunks), 8) if num_bchunks > 1 else BB
    bb_pad = num_bchunks * bbh

    w_pad = _round_up(W, _DIAG_BLK)
    if (bb_pad != BB) or (w_pad != W):
        csk = jnp.pad(csk, ((0, w_pad - W), (0, bb_pad - BB), (0, 0)))

    BIG = 1e30           # Python float -> in-kernel literal (not a captured tracer)
    inv_g = 1.0 / gamma

    def kernel(csk_ref, out_ref, diag_ref):
        kb = pl.program_id(1)

        @pl.when(kb == 0)
        def _():
            i0 = lax.broadcasted_iota(jnp.int32, (bbh, NP), 1)
            # diag_ref[0] <- diagonal d=0 (R[0,0]=0), diag_ref[1] <- d=1 (all inf).
            diag_ref[0] = jnp.where(i0 == 0, jnp.float32(0.0), jnp.float32(BIG))
            diag_ref[1] = jnp.full((bbh, NP), BIG, jnp.float32)

        for j in range(_DIAG_BLK):            # unrolled; diagonals are serial
            k = kb * _DIAG_BLK + j
            d = k + 2
            slot = j % 2                      # static (DIAG_BLK is even)

            prev2 = diag_ref[slot]            # diagonal d-2, indexed by DP row i
            prev1 = diag_ref[1 - slot]        # diagonal d-1

            a = prev2[:, :N]                  # R[i-1, j-1], i = 1..N
            b = prev1[:, :N]                  # R[i-1, j]
            c = prev1[:, 1:]                  # R[i, j-1]
            cost_d = csk_ref[j]               # (bbh, N): cost of cell (r+1, d-1-r)

            m = jnp.minimum(jnp.minimum(a, b), c)
            s = (jnp.exp((m - a) * inv_g) + jnp.exp((m - b) * inv_g)
                 + jnp.exp((m - c) * inv_g))
            val = cost_d + m - gamma * jnp.log(s)

            r_idx = lax.broadcasted_iota(jnp.int32, (bbh, N), 1)    # r = i-1
            valid = (r_idx <= d - 2) & (r_idx >= d - M - 1)
            cur = jnp.where(valid, val, jnp.float32(BIG))

            diag_ref[slot] = jnp.concatenate(
                [jnp.full((bbh, 1), BIG, jnp.float32), cur], axis=1)

            if j == (W - 1) % _DIAG_BLK:
                @pl.when(kb == (W - 1) // _DIAG_BLK)
                def _():
                    out_ref[...] = cur[:, N - 1:N]        # R[N, M]

    # TODO(synk): for very long sequences a BLKxBLK tile-wavefront (manual DMA)
    # would cut the O(N) live diagonal state further; not needed at these sizes.
    r_pad = pl.pallas_call(
        kernel,
        out_shape=jax.ShapeDtypeStruct((bb_pad, 1), jnp.float32),
        grid=(num_bchunks, w_pad // _DIAG_BLK),
        in_specs=[pl.BlockSpec((_DIAG_BLK, bbh, N), lambda cb, kb: (kb, cb, 0))],
        out_specs=pl.BlockSpec((bbh, 1), lambda cb, kb: (cb, 0)),
        scratch_shapes=[pltpu.VMEM((2, bbh, NP), jnp.float32)],
        compiler_params=pltpu.CompilerParams(
            dimension_semantics=("parallel", "arbitrary")),
    )(csk)
    return r_pad[:BB, 0]


def soft_dtw_loss(outputs, targets, gamma=0.001):
    """SoftDTW(gamma=0.001, normalize=True)(outputs, targets).mean() + 1e-5."""
    B = outputs.shape[0]
    r = _sdtw_values(outputs, targets, gamma)
    r_xy, r_xx, r_yy = r[:B], r[B:2 * B], r[2 * B:3 * B]
    per_item = r_xy - 0.5 * (r_xx + r_yy)      # normalize=True
    return jnp.mean(per_item) + jnp.float32(1e-5)


# ---------------------------------------------------------------------------
# SupervisedLoss.forward equivalent.
# ---------------------------------------------------------------------------
def supervised_loss(outputs, targets, dis_func):
    if dis_func == 'MSE':
        return mse_loss(outputs, targets)
    elif dis_func == 'Soft_DTW':
        return soft_dtw_loss(outputs, targets)
    return jnp.float32(0.0)


if __name__ == "__main__":
    key = jax.random.PRNGKey(0)
    ks = jax.random.split(key, 6)

    # Module-consistent small shapes.
    B, T, D = 2, 8, 16
    outputs = jax.random.normal(ks[0], (B, T, D), jnp.float32)
    targets = jax.random.normal(ks[1], (B, T, D), jnp.float32)

    # ---- MSE branch (small -> fused XLA short-circuit) ----------------------
    mse_small = supervised_loss(outputs, targets, 'MSE')
    jax.block_until_ready(mse_small)
    mse_small_ref = jnp.mean((outputs - targets) ** 2)
    assert jnp.allclose(mse_small, mse_small_ref, rtol=1e-5, atol=1e-6), (
        mse_small, mse_small_ref)

    # ---- MSE branch (large -> Pallas kernel; exercises tail + overshoot) ----
    big_o = jax.random.normal(ks[2], (7, 301, 301), jnp.float32)
    big_t = jax.random.normal(ks[3], (7, 301, 301), jnp.float32)
    mse_big = supervised_loss(big_o, big_t, 'MSE')
    jax.block_until_ready(mse_big)
    mse_big_ref = jnp.mean((big_o - big_t) ** 2)
    assert jnp.allclose(mse_big, mse_big_ref, rtol=1e-3, atol=1e-5), (
        mse_big, mse_big_ref)

    # ---- Soft_DTW float64 numpy reference -----------------------------------
    def sdtw_ref_np(x, y, gamma=0.001):
        x = np.asarray(x, np.float64)
        y = np.asarray(y, np.float64)
        Bb, Nn, _ = x.shape
        Mm = y.shape[1]
        out = np.zeros(Bb)
        for b in range(Bb):
            Dm = ((x[b][:, None, :] - y[b][None, :, :]) ** 2).sum(-1)
            R = np.full((Nn + 1, Mm + 1), np.inf)
            R[0, 0] = 0.0
            for i in range(1, Nn + 1):
                for jj in range(1, Mm + 1):
                    rr = np.array([R[i - 1, jj - 1], R[i - 1, jj], R[i, jj - 1]])
                    m = rr.min()
                    sm = m - gamma * np.log(np.exp(-(rr - m) / gamma).sum())
                    R[i, jj] = Dm[i - 1, jj - 1] + sm
            out[b] = R[Nn, Mm]
        return out

    # ---- Soft_DTW branch (single batch chunk) -------------------------------
    r = _sdtw_values(outputs, targets)
    jax.block_until_ready(r)
    r_ref = np.concatenate([sdtw_ref_np(outputs, targets),
                            sdtw_ref_np(outputs, outputs),
                            sdtw_ref_np(targets, targets)])
    assert np.allclose(np.asarray(r), r_ref, rtol=2e-3, atol=2e-3), (r, r_ref)

    sdtw = supervised_loss(outputs, targets, 'Soft_DTW')
    jax.block_until_ready(sdtw)
    loss_ref = float(np.mean(r_ref[:B] - 0.5 * (r_ref[B:2 * B] + r_ref[2 * B:]))
                     + 1e-5)
    assert np.isfinite(float(sdtw))
    assert abs(float(sdtw) - loss_ref) < 5e-2 + 2e-3 * abs(loss_ref), (sdtw, loss_ref)

    # ---- Soft_DTW branch (two batch chunks / parallel leading axis) ---------
    B2, T2, D2 = 8, 16, 8
    dtw_o = jax.random.normal(ks[4], (B2, T2, D2), jnp.float32)
    dtw_t = jax.random.normal(ks[5], (B2, T2, D2), jnp.float32)
    r2 = _sdtw_values(dtw_o, dtw_t)
    jax.block_until_ready(r2)
    r2_ref = np.concatenate([sdtw_ref_np(dtw_o, dtw_t),
                             sdtw_ref_np(dtw_o, dtw_o),
                             sdtw_ref_np(dtw_t, dtw_t)])
    assert np.allclose(np.asarray(r2), r2_ref, rtol=2e-3, atol=2e-3), (r2, r2_ref)

    print("KERNEL_OK")
</pallas_src>

<mosaic_0001>
module attributes {stable_mosaic.version = 11 : i64} {
  func.func @kernel(%arg0: i32, %arg1: i32, %arg2: memref<2048x128xf32, #tpu.memory_space<vmem>>, %arg3: memref<2048x128xf32, #tpu.memory_space<vmem>>, %arg4: memref<8x128xf32, #tpu.memory_space<vmem>>) attributes {dimension_semantics = [#tpu.dimension_semantics<parallel>, #tpu.dimension_semantics<arbitrary>], iteration_bounds = array<i64: 2, 2>, scalar_prefetch = 0 : i64, scratch_operands = 0 : i64, tpu.core_type = #tpu.core_type<tc>, window_params = [{transform_indices = @transform_0, window_bounds = array<i64: 2048, 128>}, {transform_indices = @transform_1, window_bounds = array<i64: 2048, 128>}, {transform_indices = @transform_2, window_bounds = array<i64: 8, 128>}]} {
    %c0_i32 = arith.constant 0 : i32
    %0 = arith.cmpi eq, %arg1, %c0_i32 : i32
    %1 = arith.extui %0 : i1 to i32
    %c0_i32_0 = arith.constant 0 : i32
    %2 = arith.cmpi ne, %1, %c0_i32_0 : i32
    scf.if %2 {
      %cst = arith.constant 0.000000e+00 : f32
      %15 = vector.broadcast %cst : f32 to vector<8x128xf32>
      %c0_7 = arith.constant 0 : index
      %c0_8 = arith.constant 0 : index
      %16 = vector.load %arg4[%c0_7, %c0_8] : memref<8x128xf32, #tpu.memory_space<vmem>>, vector<8x128xf32>
      tpu.vector_store %arg4[%c0_7, %c0_8], %15 {strides = array<i32>} : memref<8x128xf32, #tpu.memory_space<vmem>>, vector<8x128xf32>,
    } else {
    }
    %c2_i32 = arith.constant 2 : i32
    %3 = arith.muli %arg0, %c2_i32 : i32
    %4 = arith.addi %3, %arg1 : i32
    %c0 = arith.constant 0 : index
    %c0_1 = arith.constant 0 : index
    %5 = vector.load %arg2[%c0, %c0_1] : memref<2048x128xf32, #tpu.memory_space<vmem>>, vector<2048x128xf32>
    %c0_2 = arith.constant 0 : index
    %c0_3 = arith.constant 0 : index
    %6 = vector.load %arg3[%c0_2, %c0_3] : memref<2048x128xf32, #tpu.memory_space<vmem>>, vector<2048x128xf32>
    %7 = arith.subf %5, %6 : vector<2048x128xf32>
    %8 = arith.mulf %7, %7 : vector<2048x128xf32>
    %c2_i32_4 = arith.constant 2 : i32
    %9 = arith.cmpi sge, %4, %c2_i32_4 : i32
    %true = arith.constant true
    %10 = arith.xori %9, %true : i1
    %11 = arith.extui %10 : i1 to i32
    %c0_i32_5 = arith.constant 0 : i32
    %12 = arith.cmpi ne, %11, %c0_i32_5 : i32
    scf.if %12 {
      %c0_7 = arith.constant 0 : index
      %c0_8 = arith.constant 0 : index
      %15 = vector.load %arg4[%c0_7, %c0_8] : memref<8x128xf32, #tpu.memory_space<vmem>>, vector<8x128xf32>
      %16 = vector.shape_cast %8 : vector<2048x128xf32> to vector<256x8x128xf32>
      %cst = arith.constant dense<0.000000e+00> : vector<8x128xf32>
      %17 = vector.multi_reduction <add>, %16, %cst [0] : vector<256x8x128xf32> to vector<8x128xf32>
      %18 = arith.addf %15, %17 : vector<8x128xf32>
      %c0_9 = arith.constant 0 : index
      %c0_10 = arith.constant 0 : index
      %19 = vector.load %arg4[%c0_9, %c0_10] : memref<8x128xf32, #tpu.memory_space<vmem>>, vector<8x128xf32>
      tpu.vector_store %arg4[%c0_9, %c0_10], %18 {strides = array<i32>} : memref<8x128xf32, #tpu.memory_space<vmem>>, vector<8x128xf32>,
    } else {
    }
    %13 = arith.extui %9 : i1 to i32
    %c0_i32_6 = arith.constant 0 : i32
    %14 = arith.cmpi ne, %13, %c0_i32_6 : i32
    scf.if %14 {
      %c2048_i32 = arith.constant 2048 : i32
      %15 = arith.muli %4, %c2048_i32 : i32
      %16 = tpu.iota {dimensions = array<i32: 0>} : vector<2048x128xi32>
      %17 = vector.broadcast %15 : i32 to vector<2048x128xi32>
      %18 = arith.addi %17, %16 : vector<2048x128xi32>
      %c4955_i32 = arith.constant 4955 : i32
      %19 = vector.broadcast %c4955_i32 : i32 to vector<2048x128xi32>
      %20 = arith.cmpi slt, %18, %19 : vector<2048x128xi32>
      %cst = arith.constant 0.000000e+00 : f32
      %21 = vector.broadcast %cst : f32 to vector<2048x128xf32>
      %22 = arith.select %20, %8, %21 : vector<2048x128xi1>, vector<2048x128xf32>
      %c0_7 = arith.constant 0 : index
      %c0_8 = arith.constant 0 : index
      %23 = vector.load %arg4[%c0_7, %c0_8] : memref<8x128xf32, #tpu.memory_space<vmem>>, vector<8x128xf32>
      %24 = vector.shape_cast %22 : vector<2048x128xf32> to vector<256x8x128xf32>
      %cst_9 = arith.constant dense<0.000000e+00> : vector<8x128xf32>
      %25 = vector.multi_reduction <add>, %24, %cst_9 [0] : vector<256x8x128xf32> to vector<8x128xf32>
      %26 = arith.addf %23, %25 : vector<8x128xf32>
      %c0_10 = arith.constant 0 : index
      %c0_11 = arith.constant 0 : index
      %27 = vector.load %arg4[%c0_10, %c0_11] : memref<8x128xf32, #tpu.memory_space<vmem>>, vector<8x128xf32>
      tpu.vector_store %arg4[%c0_10, %c0_11], %26 {strides = array<i32>} : memref<8x128xf32, #tpu.memory_space<vmem>>, vector<8x128xf32>,
    } else {
    }
    return
  }
  func.func @transform_0(%arg0: i32, %arg1: i32) -> (i32, i32) {
    %c2_i32 = arith.constant 2 : i32
    %0 = arith.muli %arg0, %c2_i32 : i32
    %1 = arith.addi %0, %arg1 : i32
    %c2_i32_0 = arith.constant 2 : i32
    %2 = arith.minsi %1, %c2_i32_0 : i32
    %c0_i32 = arith.constant 0 : i32
    %c0_i32_1 = arith.constant 0 : i32
    return %2, %c0_i32 : i32, i32
  }
  func.func @transform_1(%arg0: i32, %arg1: i32) -> (i32, i32) {
    %c2_i32 = arith.constant 2 : i32
    %0 = arith.muli %arg0, %c2_i32 : i32
    %1 = arith.addi %0, %arg1 : i32
    %c2_i32_0 = arith.constant 2 : i32
    %2 = arith.minsi %1, %c2_i32_0 : i32
    %c0_i32 = arith.constant 0 : i32
    %c0_i32_1 = arith.constant 0 : i32
    return %2, %c0_i32 : i32, i32
  }
  func.func @transform_2(%arg0: i32, %arg1: i32) -> (i32, i32) {
    %c0_i32 = arith.constant 0 : i32
    %c0_i32_0 = arith.constant 0 : i32
    return %arg0, %c0_i32 : i32, i32
  }
}

</mosaic_0001>

<llo_original>
// kernel: tpu_custom_call.1
$region0: #{tpu_custom_call.1}
  #allocation0 [shape = 'u32[]', space=smem, size = 0x4, offset = 0x4, fixed_abs, tag = 'smem constant byte address 0x4 - core index']
  #allocation1 [shape = 'u32[144,128]{1,0:T(1,128)}', space=vmem, size = 0x12000, scoped, tag = 'internal scratch']
  %s0 = inlined_call_operand.hbm [shape: f32[4955,128], index: 0, kind: input, shape index: {}]
  %s1 = inlined_call_operand.hbm [shape: f32[4955,128], index: 1, kind: input, shape index: {}]
  %s2 = inlined_call_operand.hbm [shape: f32[16,128], index: 2, kind: output, shape index: {}]
  %s3 = sld [smem:[#allocation0]]
  $region61: #{tpu_custom_call.1} parent=0
    _
  %s5 = ssub.s32 1, %s3
  %s6 = scalar_select 0, %s5, %s3
  $region1: #{tpu_custom_call.1} parent=0
    #allocation2 [shape = 'u8[2097152]{0}', space=vmem, size = 0x200000, scoped, tag = 'input window, operand 0']
    #allocation3 [shape = 's32[2]{0}', space=sflag, size = 0x8, scoped, tag = 'scoped memory for tpu_custom_call.1']
    #allocation4 [shape = 's32[2]{0}', space=sflag, size = 0x8, scoped, tag = 'scoped memory for tpu_custom_call.1']
    #allocation5 [shape = 'u8[2097152]{0}', space=vmem, size = 0x200000, scoped, tag = 'input window, operand 1']
    #allocation6 [shape = 's32[2]{0}', space=sflag, size = 0x8, scoped, tag = 'scoped memory for tpu_custom_call.1']
    #allocation7 [shape = 'u8[8192]{0}', space=vmem, size = 0x2000, scoped, tag = 'output window, operand 0']
    %7 = vsyncpa [#allocation3], 0
    %s8 = scalar_lea.sflag [#allocation3], 1
    %9 = vsyncpa %s8, 0
    %10 = vsyncpa [#allocation6], 0
    %s11 = scalar_lea.sflag [#allocation6], 1
    %12 = vsyncpa %s11, 0
    %13 = vsyncpa [#allocation4], 0
    %s14 = scalar_lea.sflag [#allocation4], 1
    %15 = vsyncpa %s14, 0
    loop: start=0, step=1, limit=6
    $region2: #{tpu_custom_call.1} parent=1 // loop_pre_header
      _
    $region3: #{tpu_custom_call.1} parent=1 // loop_header
      %s17 = sphi 0, %s21
      %p18 = scmp.ge.s32.totalorder %s17, 6
      %s24 = sphi 0, %s36
      %s25 = sphi 0, %s32
      %s26 = sphi 0, %s24
      %s27 = sphi 0, %s25
      %s28 = sphi 0, %s26
      %s29 = sphi 0, %s27
      %s47 = sphi 0, %s49
      %s50 = sphi 0, %s47
      %s51 = sphi 0, %s50
      %s67 = sphi 0, %s51
      %s81 = sphi 0, %s83
      %s84 = sphi 0, %s81
      %s85 = sphi 0, %s84
      %s101 = sphi 0, %s85
      %s107 = sphi 0, %s109
      %s110 = sphi 0, %s107
      %s111 = sphi 0, %s110
      %s127 = sphi 0, %s111
    $region4: #{tpu_custom_call.1} parent=1 // loop_header_branch
      %20 = sbr.rel (%p18) target = $region8
    $region5: #{tpu_custom_call.1} parent=1 // loop_body
      %s22 = ssub.s32 %s17, 1
      %s23 = ssub.s32 %s17, 2
      %s30 = sadd.s32 1, %s25
      %p31 = scmp.ge.s32.totalorder %s30, 2
      %s32 = scalar_select %p31, 0, %s30
      %s33 = sadd.s32 1, %s24
      %s34 = scalar_select %p31, %s33, %s24
      %p35 = scmp.ge.s32.totalorder %s34, 2
      %s36 = scalar_select %p35, 0, %s34
      %s37 = smul.u32 %s24, 2
      %s38 = sadd.s32 %s37, %s25
      %p39 = scmp.lt.s32.totalorder %s38, 2
      %s40 = scalar_select %p39, %s38, 2
      %s41 = smul.u32 %s36, 2
      %s42 = sadd.s32 %s41, %s32
      %p43 = scmp.lt.s32.totalorder %s42, 2
      %s44 = scalar_select %p43, %s42, 2
      %s45 = ssub.s32 %s40, %s44
      %p46 = scmp.eq.s32.totalorder %s45, 0
      %s48 = sadd.s32 %s47, 1
      %s49 = scalar_select %p46, %s47, %s48
      %p52 = pneg %p46
      %p53 = scmp.eq.s32.totalorder %s17, 3
      %p54 = por %p52, %p53
      %p55 = scmp.ne.s32.totalorder %s47, %s50
      %p56 = scmp.eq.s32.totalorder %s17, 0
      %p57 = por %p55, %p56
      %p58 = scmp.ne.s32.totalorder %s47, %s50
      %p59 = scmp.eq.s32.totalorder %s22, 3
      %p60 = por %p58, %p59
      %p61 = scmp.ne.s32.totalorder %s50, %s51
      %p62 = scmp.eq.s32.totalorder %s22, 0
      %p63 = por %p61, %p62
      %p64 = scmp.ne.s32.totalorder %s50, %s51
      %p65 = scmp.eq.s32.totalorder %s23, 3
      %p66 = por %p64, %p65
      %p68 = scmp.ne.s32.totalorder %s51, %s67
      %p69 = scmp.eq.s32.totalorder %s23, 0
      %p70 = por %p68, %p69
      %s71 = smul.u32 %s24, 2
      %s72 = sadd.s32 %s71, %s25
      %p73 = scmp.lt.s32.totalorder %s72, 2
      %s74 = scalar_select %p73, %s72, 2
      %s75 = smul.u32 %s36, 2
      %s76 = sadd.s32 %s75, %s32
      %p77 = scmp.lt.s32.totalorder %s76, 2
      %s78 = scalar_select %p77, %s76, 2
      %s79 = ssub.s32 %s74, %s78
      %p80 = scmp.eq.s32.totalorder %s79, 0
      %s82 = sadd.s32 %s81, 1
      %s83 = scalar_select %p80, %s81, %s82
      %p86 = pneg %p80
      %p87 = scmp.eq.s32.totalorder %s17, 3
      %p88 = por %p86, %p87
      %p89 = scmp.ne.s32.totalorder %s81, %s84
      %p90 = scmp.eq.s32.totalorder %s17, 0
      %p91 = por %p89, %p90
      %p92 = scmp.ne.s32.totalorder %s81, %s84
      %p93 = scmp.eq.s32.totalorder %s22, 3
      %p94 = por %p92, %p93
      %p95 = scmp.ne.s32.totalorder %s84, %s85
      %p96 = scmp.eq.s32.totalorder %s22, 0
      %p97 = por %p95, %p96
      %p98 = scmp.ne.s32.totalorder %s84, %s85
      %p99 = scmp.eq.s32.totalorder %s23, 3
      %p100 = por %p98, %p99
      %p102 = scmp.ne.s32.totalorder %s85, %s101
      %p103 = scmp.eq.s32.totalorder %s23, 0
      %p104 = por %p102, %p103
      %s105 = ssub.s32 %s24, %s36
      %p106 = scmp.eq.s32.totalorder %s105, 0
      %s108 = sadd.s32 %s107, 1
      %s109 = scalar_select %p106, %s107, %s108
      %p112 = pneg %p106
      %p113 = scmp.eq.s32.totalorder %s17, 3
      %p114 = por %p112, %p113
      %p115 = scmp.ne.s32.totalorder %s107, %s110
      %p116 = scmp.eq.s32.totalorder %s17, 0
      %p117 = por %p115, %p116
      %p118 = scmp.ne.s32.totalorder %s107, %s110
      %p119 = scmp.eq.s32.totalorder %s22, 3
      %p120 = por %p118, %p119
      %p121 = scmp.ne.s32.totalorder %s110, %s111
      %p122 = scmp.eq.s32.totalorder %s22, 0
      %p123 = por %p121, %p122
      %p124 = scmp.ne.s32.totalorder %s110, %s111
      %p125 = scmp.eq.s32.totalorder %s23, 3
      %p126 = por %p124, %p125
      %p128 = scmp.ne.s32.totalorder %s111, %s127
      %p129 = scmp.eq.s32.totalorder %s23, 0
      %p130 = por %p128, %p129
      %p131 = scmp.le.s32.totalorder 1, %s17
      %p132 = scmp.lt.s32.totalorder %s17, 5
      %p133 = pnand %p131, %p132
      %p134 = pneg %p133
      // Predicated region
      $region9: #{tpu_custom_call.1} parent=5 // pred_check
        _
      $region10: #{tpu_custom_call.1} parent=5 // pred_check_branch
        %136 = sbr.rel (%p133) target = $region12
      $region11: #{tpu_custom_call.1} parent=5 // pred_region
        %s137 = ssub.s32 %s17, 1
      $region12: #{tpu_custom_call.1} parent=5 // pred_fallthru
        _
      %p138 = scmp.lt.s32.totalorder %s17, 4
      // Predicated region
      $region13: #{tpu_custom_call.1} parent=5 // pred_check
        %p139 = pneg %p138
      $region14: #{tpu_custom_call.1} parent=5 // pred_check_branch
        %141 = sbr.rel (%p139) target = $region16
      $region15: #{tpu_custom_call.1} parent=5 // pred_region
        // Predicated region
        $region17: #{tpu_custom_call.1} parent=15 // pred_check
          %p142 = pneg %p57
        $region18: #{tpu_custom_call.1} parent=15 // pred_check_branch
          %144 = sbr.rel (%p142) target = $region20
        $region19: #{tpu_custom_call.1} parent=15 // pred_region
          %s145 = sand.u32 %s47, 1
          %s146 = scalar_lea.sflag [#allocation3], %s145
          %s147 = sand.u32 %s47, 1
          %s148 = smul.addr %s147, 2048
          %s149 = scalar_lea.vmem [#allocation2], %s148
          %s150 = smul.u32 %s24, 2
          %s151 = sadd.s32 %s150, %s25
          %p152 = scmp.lt.s32.totalorder %s151, 2
          %s153 = scalar_select %p152, %s151, 2
          %s154 = smul.u32 256, %s153
          %s155 = ssub.s32 620, %s154
          %p156 = scmp.lt.s32.totalorder %s155, 256
          %s157 = scalar_select %p156, %s155, 256
          %s158 = smul.u32 128, %s157
          %s160 = ssub.s32 32768, %s158
          %161 = vsyncadd %s146, %s160
          %p162 = scmp.ne.s32.totalorder 0, %s158
          %s163 = smul.addr %s154, 128
          %s164 = scalar_lea.hbm %s0, %s163
          %s165 = smul.u32 8, %s157
          %s166 = sshll.u32 %s149, 4
          %s167 = int_to_ptr.vmem [resolvable:$true] %s166
          %s168 = sshll.u32 %s165, 4
          %172 = dma.hbm_to_vmem [thread:$0]  (%p162), %s164, %s168, %s167, %s146, 128, 128, 8
        $region20: #{tpu_custom_call.1} parent=15 // pred_fallthru
          _
        // Predicated region
        $region21: #{tpu_custom_call.1} parent=15 // pred_check
          %p173 = pneg %p91
        $region22: #{tpu_custom_call.1} parent=15 // pred_check_branch
          %175 = sbr.rel (%p173) target = $region24
        $region23: #{tpu_custom_call.1} parent=15 // pred_region
          %s176 = sand.u32 %s81, 1
          %s177 = scalar_lea.sflag [#allocation6], %s176
          %s178 = sand.u32 %s81, 1
          %s179 = smul.addr %s178, 2048
          %s180 = scalar_lea.vmem [#allocation5], %s179
          %s181 = smul.u32 %s24, 2
          %s182 = sadd.s32 %s181, %s25
          %p183 = scmp.lt.s32.totalorder %s182, 2
          %s184 = scalar_select %p183, %s182, 2
          %s185 = smul.u32 256, %s184
          %s186 = ssub.s32 620, %s185
          %p187 = scmp.lt.s32.totalorder %s186, 256
          %s188 = scalar_select %p187, %s186, 256
          %s189 = smul.u32 128, %s188
          %s191 = ssub.s32 32768, %s189
          %192 = vsyncadd %s177, %s191
          %p193 = scmp.ne.s32.totalorder 0, %s189
          %s194 = smul.addr %s185, 128
          %s195 = scalar_lea.hbm %s1, %s194
          %s196 = smul.u32 8, %s188
          %s197 = sshll.u32 %s180, 4
          %s198 = int_to_ptr.vmem [resolvable:$true] %s197
          %s199 = sshll.u32 %s196, 4
          %203 = dma.hbm_to_vmem [thread:$0]  (%p193), %s195, %s199, %s198, %s177, 128, 128, 8
        $region24: #{tpu_custom_call.1} parent=15 // pred_fallthru
          _
      $region16: #{tpu_custom_call.1} parent=5 // pred_fallthru
        _
      %p204 = scmp.le.s32.totalorder 1, %s17
      %p205 = scmp.lt.s32.totalorder %s17, 5
      %p206 = pnand %p204, %p205
      %p207 = pneg %p206
      // Predicated region
      $region25: #{tpu_custom_call.1} parent=5 // pred_check
        _
      $region26: #{tpu_custom_call.1} parent=5 // pred_check_branch
        %209 = sbr.rel (%p206) target = $region28
      $region27: #{tpu_custom_call.1} parent=5 // pred_region
        %s210 = ssub.s32 %s17, 1
        %s211 = sand.u32 %s50, 1
        %s212 = scalar_lea.sflag [#allocation3], %s211
        %s213 = sand.u32 %s50, 1
        %s214 = smul.addr %s213, 2048
        %s215 = scalar_lea.vmem [#allocation2], %s214
        // Predicated region
        $region29: #{tpu_custom_call.1} parent=27 // pred_check
          %p216 = pneg %p63
        $region30: #{tpu_custom_call.1} parent=27 // pred_check_branch
          %218 = sbr.rel (%p216) target = $region32
        $region31: #{tpu_custom_call.1} parent=27 // pred_region
          %219 = dma.done %s212, 32768
        $region32: #{tpu_custom_call.1} parent=27 // pred_fallthru
          _
        %s220 = sand.u32 %s84, 1
        %s221 = scalar_lea.sflag [#allocation6], %s220
        %s222 = sand.u32 %s84, 1
        %s223 = smul.addr %s222, 2048
        %s224 = scalar_lea.vmem [#allocation5], %s223
        // Predicated region
        $region33: #{tpu_custom_call.1} parent=27 // pred_check
          %p225 = pneg %p97
        $region34: #{tpu_custom_call.1} parent=27 // pred_check_branch
          %227 = sbr.rel (%p225) target = $region36
        $region35: #{tpu_custom_call.1} parent=27 // pred_region
          %228 = dma.done %s221, 32768
        $region36: #{tpu_custom_call.1} parent=27 // pred_fallthru
          _
        %s229 = sand.u32 %s50, 1
        %s230 = scalar_lea.sflag [#allocation3], %s229
        %s231 = sand.u32 %s50, 1
        %s232 = smul.addr %s231, 2048
        %s233 = scalar_lea.vmem [#allocation2], %s232
        %p234 = pneg %p63
        %p235 = pneg %p60
        %s236 = sand.u32 %s84, 1
        %s237 = scalar_lea.sflag [#allocation6], %s236
        %s238 = sand.u32 %s84, 1
        %s239 = smul.addr %s238, 2048
        %s240 = scalar_lea.vmem [#allocation5], %s239
        %p241 = pneg %p97
        %p242 = pneg %p94
        %p243 = pneg %p123
        %p244 = pneg %p120
        %s245 = sand.u32 %s110, 1
        %s246 = scalar_lea.sflag [#allocation4], %s245
        %s247 = sand.u32 %s110, 1
        %s248 = smul.addr %s247, 8
        %s249 = scalar_lea.vmem [#allocation7], %s248
        %s250 = smul.u32 %s26, 2
        %s251 = sadd.s32 %s250, %s27
        %p252 = scmp.lt.s32.totalorder %s251, 2
        %s253 = scalar_select %p252, %s251, 2
        %s254 = smul.u32 256, %s253
        %s255 = ssub.s32 620, %s254
        %p256 = scmp.lt.s32.totalorder %s255, 256
        %s257 = scalar_select %p256, %s255, 256
        %s258 = smul.u32 128, %s257
        %s259 = smul.u32 %s26, 2
        %s260 = sadd.s32 %s259, %s27
        %p261 = scmp.lt.s32.totalorder %s260, 2
        %s262 = scalar_select %p261, %s260, 2
        %s263 = smul.u32 256, %s262
        %s264 = ssub.s32 620, %s263
        %p265 = scmp.lt.s32.totalorder %s264, 256
        %s266 = scalar_select %p265, %s264, 256
        %s267 = smul.u32 128, %s266
        %p268 = scmp.eq.s32.totalorder %s27, 0
        // Predicated region
        $region37: #{tpu_custom_call.1} parent=27 // pred_check
          %p269 = pneg %p268
        $region38: #{tpu_custom_call.1} parent=27 // pred_check_branch
          %271 = sbr.rel (%p269) target = $region40
        $region39: #{tpu_custom_call.1} parent=27 // pred_region
          %272 = vst [vmem:[%s249] sm:$0xff] 0.0
        $region40: #{tpu_custom_call.1} parent=27 // pred_fallthru
          _
        %s273 = smul.u32 %s26, 2
        %s274 = sadd.s32 %s273, %s27
        %v275 = vld [vmem:[%s215] sm:$0xff]
        %v276 = vld [vmem:[%s215 + $0x8] sm:$0xff]
        %v277 = vld [vmem:[%s215 + $0x10] sm:$0xff]
        %v278 = vld [vmem:[%s215 + $0x18] sm:$0xff]
        %v279 = vld [vmem:[%s215 + $0x20] sm:$0xff]
        %v280 = vld [vmem:[%s215 + $0x28] sm:$0xff]
        %v281 = vld [vmem:[%s215 + $0x30] sm:$0xff]
        %v282 = vld [vmem:[%s215 + $0x38] sm:$0xff]
        %v283 = vld [vmem:[%s215 + $0x40] sm:$0xff]
        %v284 = vld [vmem:[%s215 + $0x48] sm:$0xff]
        %v285 = vld [vmem:[%s215 + $0x50] sm:$0xff]
        %v286 = vld [vmem:[%s215 + $0x58] sm:$0xff]
        %v287 = vld [vmem:[%s215 + $0x60] sm:$0xff]
        %v288 = vld [vmem:[%s215 + $0x68] sm:$0xff]
        %v289 = vld [vmem:[%s215 + $0x70] sm:$0xff]
        %v290 = vld [vmem:[%s215 + $0x78] sm:$0xff]
        %v291 = vld [vmem:[%s215 + $0x80] sm:$0xff]
        %v292 = vld [vmem:[%s215 + $0x88] sm:$0xff]
        %v293 = vld [vmem:[%s215 + $0x90] sm:$0xff]
        %v294 = vld [vmem:[%s215 + $0x98] sm:$0xff]
        %v295 = vld [vmem:[%s215 + $0xa0] sm:$0xff]
        %v296 = vld [vmem:[%s215 + $0xa8] sm:$0xff]
        %v297 = vld [vmem:[%s215 + $0xb0] sm:$0xff]
        %v298 = vld [vmem:[%s215 + $0xb8] sm:$0xff]
        %v299 = vld [vmem:[%s215 + $0xc0] sm:$0xff]
        %v300 = vld [vmem:[%s215 + $0xc8] sm:$0xff]
        %v301 = vld [vmem:[%s215 + $0xd0] sm:$0xff]
        %v302 = vld [vmem:[%s215 + $0xd8] sm:$0xff]
        %v303 = vld [vmem:[%s215 + $0xe0] sm:$0xff]
        %v304 = vld [vmem:[%s215 + $0xe8] sm:$0xff]
        %v305 = vld [vmem:[%s215 + $0xf0] sm:$0xff]
        %v306 = vld [vmem:[%s215 + $0xf8] sm:$0xff]
        %v307 = vld [vmem:[%s215 + $0x100] sm:$0xff]
        %v308 = vld [vmem:[%s215 + $0x108] sm:$0xff]
        %v309 = vld [vmem:[%s215 + $0x110] sm:$0xff]
        %v310 = vld [vmem:[%s215 + $0x118] sm:$0xff]
        %v311 = vld [vmem:[%s215 + $0x120] sm:$0xff]
        %v312 = vld [vmem:[%s215 + $0x128] sm:$0xff]
        %v313 = vld [vmem:[%s215 + $0x130] sm:$0xff]
        %v314 = vld [vmem:[%s215 + $0x138] sm:$0xff]
        %v315 = vld [vmem:[%s215 + $0x140] sm:$0xff]
        %v316 = vld [vmem:[%s215 + $0x148] sm:$0xff]
        %v317 = vld [vmem:[%s215 + $0x150] sm:$0xff]
        %v318 = vld [vmem:[%s215 + $0x158] sm:$0xff]
        %v319 = vld [vmem:[%s215 + $0x160] sm:$0xff]
        %v320 = vld [vmem:[%s215 + $0x168] sm:$0xff]
        %v321 = vld [vmem:[%s215 + $0x170] sm:$0xff]
        %v322 = vld [vmem:[%s215 + $0x178] sm:$0xff]
        %v323 = vld [vmem:[%s215 + $0x180] sm:$0xff]
        %v324 = vld [vmem:[%s215 + $0x188] sm:$0xff]
        %v325 = vld [vmem:[%s215 + $0x190] sm:$0xff]
        %v326 = vld [vmem:[%s215 + $0x198] sm:$0xff]
        %v327 = vld [vmem:[%s215 + $0x1a0] sm:$0xff]
        %v328 = vld [vmem:[%s215 + $0x1a8] sm:$0xff]
        %v329 = vld [vmem:[%s215 + $0x1b0] sm:$0xff]
        %v330 = vld [vmem:[%s215 + $0x1b8] sm:$0xff]
        %v331 = vld [vmem:[%s215 + $0x1c0] sm:$0xff]
        %v332 = vld [vmem:[%s215 + $0x1c8] sm:$0xff]
        %v333 = vld [vmem:[%s215 + $0x1d0] sm:$0xff]
        %v334 = vld [vmem:[%s215 + $0x1d8] sm:$0xff]
        %v335 = vld [vmem:[%s215 + $0x1e0] sm:$0xff]
        %v336 = vld [vmem:[%s215 + $0x1e8] sm:$0xff]
        %v337 = vld [vmem:[%s215 + $0x1f0] sm:$0xff]
        %v338 = vld [vmem:[%s215 + $0x1f8] sm:$0xff]
        %v339 = vld [vmem:[%s215 + $0x200] sm:$0xff]
        %v340 = vld [vmem:[%s215 + $0x208] sm:$0xff]
        %v341 = vld [vmem:[%s215 + $0x210] sm:$0xff]
        %v342 = vld [vmem:[%s215 + $0x218] sm:$0xff]
        %v343 = vld [vmem:[%s215 + $0x220] sm:$0xff]
        %v344 = vld [vmem:[%s215 + $0x228] sm:$0xff]
        %v345 = vld [vmem:[%s215 + $0x230] sm:$0xff]
        %v346 = vld [vmem:[%s215 + $0x238] sm:$0xff]
        %v347 = vld [vmem:[%s215 + $0x240] sm:$0xff]
        %v348 = vld [vmem:[%s215 + $0x248] sm:$0xff]
        %v349 = vld [vmem:[%s215 + $0x250] sm:$0xff]
        %v350 = vld [vmem:[%s215 + $0x258] sm:$0xff]
        %v351 = vld [vmem:[%s215 + $0x260] sm:$0xff]
        %v352 = vld [vmem:[%s215 + $0x268] sm:$0xff]
        %v353 = vld [vmem:[%s215 + $0x270] sm:$0xff]
        %v354 = vld [vmem:[%s215 + $0x278] sm:$0xff]
        %v355 = vld [vmem:[%s215 + $0x280] sm:$0xff]
        %v356 = vld [vmem:[%s215 + $0x288] sm:$0xff]
        %v357 = vld [vmem:[%s215 + $0x290] sm:$0xff]
        %v358 = vld [vmem:[%s215 + $0x298] sm:$0xff]
        %v359 = vld [vmem:[%s215 + $0x2a0] sm:$0xff]
        %v360 = vld [vmem:[%s215 + $0x2a8] sm:$0xff]
        %v361 = vld [vmem:[%s215 + $0x2b0] sm:$0xff]
        %v362 = vld [vmem:[%s215 + $0x2b8] sm:$0xff]
        %v363 = vld [vmem:[%s215 + $0x2c0] sm:$0xff]
        %v364 = vld [vmem:[%s215 + $0x2c8] sm:$0xff]
        %v365 = vld [vmem:[%s215 + $0x2d0] sm:$0xff]
        %v366 = vld [vmem:[%s215 + $0x2d8] sm:$0xff]
        %v367 = vld [vmem:[%s215 + $0x2e0] sm:$0xff]
        %v368 = vld [vmem:[%s215 + $0x2e8] sm:$0xff]
        %v369 = vld [vmem:[%s215 + $0x2f0] sm:$0xff]
        %v370 = vld [vmem:[%s215 + $0x2f8] sm:$0xff]
        %v371 = vld [vmem:[%s215 + $0x300] sm:$0xff]
        %v372 = vld [vmem:[%s215 + $0x308] sm:$0xff]
        %v373 = vld [vmem:[%s215 + $0x310] sm:$0xff]
        %v374 = vld [vmem:[%s215 + $0x318] sm:$0xff]
        %v375 = vld [vmem:[%s215 + $0x320] sm:$0xff]
        %v376 = vld [vmem:[%s215 + $0x328] sm:$0xff]
        %v377 = vld [vmem:[%s215 + $0x330] sm:$0xff]
        %v378 = vld [vmem:[%s215 + $0x338] sm:$0xff]
        %v379 = vld [vmem:[%s215 + $0x340] sm:$0xff]
        %v380 = vld [vmem:[%s215 + $0x348] sm:$0xff]
        %v381 = vld [vmem:[%s215 + $0x350] sm:$0xff]
        %v382 = vld [vmem:[%s215 + $0x358] sm:$0xff]
        %v383 = vld [vmem:[%s215 + $0x360] sm:$0xff]
        %v384 = vld [vmem:[%s215 + $0x368] sm:$0xff]
        %v385 = vld [vmem:[%s215 + $0x370] sm:$0xff]
        %v386 = vld [vmem:[%s215 + $0x378] sm:$0xff]
        %v387 = vld [vmem:[%s215 + $0x380] sm:$0xff]
        %v388 = vld [vmem:[%s215 + $0x388] sm:$0xff]
        %v389 = vld [vmem:[%s215 + $0x390] sm:$0xff]
        %v390 = vld [vmem:[%s215 + $0x398] sm:$0xff]
        %v391 = vld [vmem:[%s215 + $0x3a0] sm:$0xff]
        %v392 = vld [vmem:[%s215 + $0x3a8] sm:$0xff]
        %v393 = vld [vmem:[%s215 + $0x3b0] sm:$0xff]
        %v394 = vld [vmem:[%s215 + $0x3b8] sm:$0xff]
        %v395 = vld [vmem:[%s215 + $0x3c0] sm:$0xff]
        %v396 = vld [vmem:[%s215 + $0x3c8] sm:$0xff]
        %v397 = vld [vmem:[%s215 + $0x3d0] sm:$0xff]
        %v398 = vld [vmem:[%s215 + $0x3d8] sm:$0xff]
        %v399 = vld [vmem:[%s215 + $0x3e0] sm:$0xff]
        %v400 = vld [vmem:[%s215 + $0x3e8] sm:$0xff]
        %v401 = vld [vmem:[%s215 + $0x3f0] sm:$0xff]
        %v402 = vld [vmem:[%s215 + $0x3f8] sm:$0xff]
        %v403 = vld [vmem:[%s215 + $0x400] sm:$0xff]
        %v404 = vld [vmem:[%s215 + $0x408] sm:$0xff]
        %v405 = vld [vmem:[%s215 + $0x410] sm:$0xff]
        %v406 = vld [vmem:[%s215 + $0x418] sm:$0xff]
        %v407 = vld [vmem:[%s215 + $0x420] sm:$0xff]
        %v408 = vld [vmem:[%s215 + $0x428] sm:$0xff]
        %v409 = vld [vmem:[%s215 + $0x430] sm:$0xff]
        %v410 = vld [vmem:[%s215 + $0x438] sm:$0xff]
        %v411 = vld [vmem:[%s215 + $0x440] sm:$0xff]
        %v412 = vld [vmem:[%s215 + $0x448] sm:$0xff]
        %v413 = vld [vmem:[%s215 + $0x450] sm:$0xff]
        %v414 = vld [vmem:[%s215 + $0x458] sm:$0xff]
        %v415 = vld [vmem:[%s215 + $0x460] sm:$0xff]
        %v416 = vld [vmem:[%s215 + $0x468] sm:$0xff]
        %v417 = vld [vmem:[%s215 + $0x470] sm:$0xff]
        %v418 = vld [vmem:[%s215 + $0x478] sm:$0xff]
        %v419 = vld [vmem:[%s215 + $0x480] sm:$0xff]
        %v420 = vld [vmem:[%s215 + $0x488] sm:$0xff]
        %v421 = vld [vmem:[%s215 + $0x490] sm:$0xff]
        %v422 = vld [vmem:[%s215 + $0x498] sm:$0xff]
        %v423 = vld [vmem:[%s215 + $0x4a0] sm:$0xff]
        %v424 = vld [vmem:[%s215 + $0x4a8] sm:$0xff]
        %v425 = vld [vmem:[%s215 + $0x4b0] sm:$0xff]
        %v426 = vld [vmem:[%s215 + $0x4b8] sm:$0xff]
        %v427 = vld [vmem:[%s215 + $0x4c0] sm:$0xff]
        %v428 = vld [vmem:[%s215 + $0x4c8] sm:$0xff]
        %v429 = vld [vmem:[%s215 + $0x4d0] sm:$0xff]
        %v430 = vld [vmem:[%s215 + $0x4d8] sm:$0xff]
        %v431 = vld [vmem:[%s215 + $0x4e0] sm:$0xff]
        %v432 = vld [vmem:[%s215 + $0x4e8] sm:$0xff]
        %v433 = vld [vmem:[%s215 + $0x4f0] sm:$0xff]
        %v434 = vld [vmem:[%s215 + $0x4f8] sm:$0xff]
        %v435 = vld [vmem:[%s215 + $0x500] sm:$0xff]
        %v436 = vld [vmem:[%s215 + $0x508] sm:$0xff]
        %v437 = vld [vmem:[%s215 + $0x510] sm:$0xff]
        %v438 = vld [vmem:[%s215 + $0x518] sm:$0xff]
        %v439 = vld [vmem:[%s215 + $0x520] sm:$0xff]
        %v440 = vld [vmem:[%s215 + $0x528] sm:$0xff]
        %v441 = vld [vmem:[%s215 + $0x530] sm:$0xff]
        %v442 = vld [vmem:[%s215 + $0x538] sm:$0xff]
        %v443 = vld [vmem:[%s215 + $0x540] sm:$0xff]
        %v444 = vld [vmem:[%s215 + $0x548] sm:$0xff]
        %v445 = vld [vmem:[%s215 + $0x550] sm:$0xff]
        %v446 = vld [vmem:[%s215 + $0x558] sm:$0xff]
        %v447 = vld [vmem:[%s215 + $0x560] sm:$0xff]
        %v448 = vld [vmem:[%s215 + $0x568] sm:$0xff]
        %v449 = vld [vmem:[%s215 + $0x570] sm:$0xff]
        %v450 = vld [vmem:[%s215 + $0x578] sm:$0xff]
        %v451 = vld [vmem:[%s215 + $0x580] sm:$0xff]
        %v452 = vld [vmem:[%s215 + $0x588] sm:$0xff]
        %v453 = vld [vmem:[%s215 + $0x590] sm:$0xff]
        %v454 = vld [vmem:[%s215 + $0x598] sm:$0xff]
        %v455 = vld [vmem:[%s215 + $0x5a0] sm:$0xff]
        %v456 = vld [vmem:[%s215 + $0x5a8] sm:$0xff]
        %v457 = vld [vmem:[%s215 + $0x5b0] sm:$0xff]
        %v458 = vld [vmem:[%s215 + $0x5b8] sm:$0xff]
        %v459 = vld [vmem:[%s215 + $0x5c0] sm:$0xff]
        %v460 = vld [vmem:[%s215 + $0x5c8] sm:$0xff]
        %v461 = vld [vmem:[%s215 + $0x5d0] sm:$0xff]
        %v462 = vld [vmem:[%s215 + $0x5d8] sm:$0xff]
        %v463 = vld [vmem:[%s215 + $0x5e0] sm:$0xff]
        %v464 = vld [vmem:[%s215 + $0x5e8] sm:$0xff]
        %v465 = vld [vmem:[%s215 + $0x5f0] sm:$0xff]
        %v466 = vld [vmem:[%s215 + $0x5f8] sm:$0xff]
        %v467 = vld [vmem:[%s215 + $0x600] sm:$0xff]
        %v468 = vld [vmem:[%s215 + $0x608] sm:$0xff]
        %v469 = vld [vmem:[%s215 + $0x610] sm:$0xff]
        %v470 = vld [vmem:[%s215 + $0x618] sm:$0xff]
        %v471 = vld [vmem:[%s215 + $0x620] sm:$0xff]
        %v472 = vld [vmem:[%s215 + $0x628] sm:$0xff]
        %v473 = vld [vmem:[%s215 + $0x630] sm:$0xff]
        %v474 = vld [vmem:[%s215 + $0x638] sm:$0xff]
        %v475 = vld [vmem:[%s215 + $0x640] sm:$0xff]
        %v476 = vld [vmem:[%s215 + $0x648] sm:$0xff]
        %v477 = vld [vmem:[%s215 + $0x650] sm:$0xff]
        %v478 = vld [vmem:[%s215 + $0x658] sm:$0xff]
        %v479 = vld [vmem:[%s215 + $0x660] sm:$0xff]
        %v480 = vld [vmem:[%s215 + $0x668] sm:$0xff]
        %v481 = vld [vmem:[%s215 + $0x670] sm:$0xff]
        %v482 = vld [vmem:[%s215 + $0x678] sm:$0xff]
        %v483 = vld [vmem:[%s215 + $0x680] sm:$0xff]
        %v484 = vld [vmem:[%s215 + $0x688] sm:$0xff]
        %v485 = vld [vmem:[%s215 + $0x690] sm:$0xff]
        %v486 = vld [vmem:[%s215 + $0x698] sm:$0xff]
        %v487 = vld [vmem:[%s215 + $0x6a0] sm:$0xff]
        %v488 = vld [vmem:[%s215 + $0x6a8] sm:$0xff]
        %v489 = vld [vmem:[%s215 + $0x6b0] sm:$0xff]
        %v490 = vld [vmem:[%s215 + $0x6b8] sm:$0xff]
        %v491 = vld [vmem:[%s215 + $0x6c0] sm:$0xff]
        %v492 = vld [vmem:[%s215 + $0x6c8] sm:$0xff]
        %v493 = vld [vmem:[%s215 + $0x6d0] sm:$0xff]
        %v494 = vld [vmem:[%s215 + $0x6d8] sm:$0xff]
        %v495 = vld [vmem:[%s215 + $0x6e0] sm:$0xff]
        %v496 = vld [vmem:[%s215 + $0x6e8] sm:$0xff]
        %v497 = vld [vmem:[%s215 + $0x6f0] sm:$0xff]
        %v498 = vld [vmem:[%s215 + $0x6f8] sm:$0xff]
        %v499 = vld [vmem:[%s215 + $0x700] sm:$0xff]
        %v500 = vld [vmem:[%s215 + $0x708] sm:$0xff]
        %v501 = vld [vmem:[%s215 + $0x710] sm:$0xff]
        %v502 = vld [vmem:[%s215 + $0x718] sm:$0xff]
        %v503 = vld [vmem:[%s215 + $0x720] sm:$0xff]
        %v504 = vld [vmem:[%s215 + $0x728] sm:$0xff]
        %v505 = vld [vmem:[%s215 + $0x730] sm:$0xff]
        %v506 = vld [vmem:[%s215 + $0x738] sm:$0xff]
        %v507 = vld [vmem:[%s215 + $0x740] sm:$0xff]
        %v508 = vld [vmem:[%s215 + $0x748] sm:$0xff]
        %v509 = vld [vmem:[%s215 + $0x750] sm:$0xff]
        %v510 = vld [vmem:[%s215 + $0x758] sm:$0xff]
        %v511 = vld [vmem:[%s215 + $0x760] sm:$0xff]
        %v512 = vld [vmem:[%s215 + $0x768] sm:$0xff]
        %v513 = vld [vmem:[%s215 + $0x770] sm:$0xff]
        %v514 = vld [vmem:[%s215 + $0x778] sm:$0xff]
        %v515 = vld [vmem:[%s215 + $0x780] sm:$0xff]
        %v516 = vld [vmem:[%s215 + $0x788] sm:$0xff]
        %v517 = vld [vmem:[%s215 + $0x790] sm:$0xff]
        %v518 = vld [vmem:[%s215 + $0x798] sm:$0xff]
        %v519 = vld [vmem:[%s215 + $0x7a0] sm:$0xff]
        %v520 = vld [vmem:[%s215 + $0x7a8] sm:$0xff]
        %v521 = vld [vmem:[%s215 + $0x7b0] sm:$0xff]
        %v522 = vld [vmem:[%s215 + $0x7b8] sm:$0xff]
        %v523 = vld [vmem:[%s215 + $0x7c0] sm:$0xff]
        %v524 = vld [vmem:[%s215 + $0x7c8] sm:$0xff]
        %v525 = vld [vmem:[%s215 + $0x7d0] sm:$0xff]
        %v526 = vld [vmem:[%s215 + $0x7d8] sm:$0xff]
        %v527 = vld [vmem:[%s215 + $0x7e0] sm:$0xff]
        %v528 = vld [vmem:[%s215 + $0x7e8] sm:$0xff]
        %v529 = vld [vmem:[%s215 + $0x7f0] sm:$0xff]
        %v530 = vld [vmem:[%s215 + $0x7f8] sm:$0xff]
        %v531 = vld [vmem:[%s224] sm:$0xff]
        %v532 = vld [vmem:[%s224 + $0x8] sm:$0xff]
        %v533 = vld [vmem:[%s224 + $0x10] sm:$0xff]
        %v534 = vld [vmem:[%s224 + $0x18] sm:$0xff]
        %v535 = vld [vmem:[%s224 + $0x20] sm:$0xff]
        %v536 = vld [vmem:[%s224 + $0x28] sm:$0xff]
        %v537 = vld [vmem:[%s224 + $0x30] sm:$0xff]
        %v538 = vld [vmem:[%s224 + $0x38] sm:$0xff]
        %v539 = vld [vmem:[%s224 + $0x40] sm:$0xff]
        %v540 = vld [vmem:[%s224 + $0x48] sm:$0xff]
        %v541 = vld [vmem:[%s224 + $0x50] sm:$0xff]
        %v542 = vld [vmem:[%s224 + $0x58] sm:$0xff]
        %v543 = vld [vmem:[%s224 + $0x60] sm:$0xff]
        %v544 = vld [vmem:[%s224 + $0x68] sm:$0xff]
        %v545 = vld [vmem:[%s224 + $0x70] sm:$0xff]
        %v546 = vld [vmem:[%s224 + $0x78] sm:$0xff]
        %v547 = vld [vmem:[%s224 + $0x80] sm:$0xff]
        %v548 = vld [vmem:[%s224 + $0x88] sm:$0xff]
        %v549 = vld [vmem:[%s224 + $0x90] sm:$0xff]
        %v550 = vld [vmem:[%s224 + $0x98] sm:$0xff]
        %v551 = vld [vmem:[%s224 + $0xa0] sm:$0xff]
        %v552 = vld [vmem:[%s224 + $0xa8] sm:$0xff]
        %v553 = vld [vmem:[%s224 + $0xb0] sm:$0xff]
        %v554 = vld [vmem:[%s224 + $0xb8] sm:$0xff]
        %v555 = vld [vmem:[%s224 + $0xc0] sm:$0xff]
        %v556 = vld [vmem:[%s224 + $0xc8] sm:$0xff]
        %v557 = vld [vmem:[%s224 + $0xd0] sm:$0xff]
        %v558 = vld [vmem:[%s224 + $0xd8] sm:$0xff]
        %v559 = vld [vmem:[%s224 + $0xe0] sm:$0xff]
        %v560 = vld [vmem:[%s224 + $0xe8] sm:$0xff]
        %v561 = vld [vmem:[%s224 + $0xf0] sm:$0xff]
        %v562 = vld [vmem:[%s224 + $0xf8] sm:$0xff]
        %v563 = vld [vmem:[%s224 + $0x100] sm:$0xff]
        %v564 = vld [vmem:[%s224 + $0x108] sm:$0xff]
        %v565 = vld [vmem:[%s224 + $0x110] sm:$0xff]
        %v566 = vld [vmem:[%s224 + $0x118] sm:$0xff]
        %v567 = vld [vmem:[%s224 + $0x120] sm:$0xff]
        %v568 = vld [vmem:[%s224 + $0x128] sm:$0xff]
        %v569 = vld [vmem:[%s224 + $0x130] sm:$0xff]
        %v570 = vld [vmem:[%s224 + $0x138] sm:$0xff]
        %v571 = vld [vmem:[%s224 + $0x140] sm:$0xff]
        %v572 = vld [vmem:[%s224 + $0x148] sm:$0xff]
        %v573 = vld [vmem:[%s224 + $0x150] sm:$0xff]
        %v574 = vld [vmem:[%s224 + $0x158] sm:$0xff]
        %v575 = vld [vmem:[%s224 + $0x160] sm:$0xff]
        %v576 = vld [vmem:[%s224 + $0x168] sm:$0xff]
        %v577 = vld [vmem:[%s224 + $0x170] sm:$0xff]
        %v578 = vld [vmem:[%s224 + $0x178] sm:$0xff]
        %v579 = vld [vmem:[%s224 + $0x180] sm:$0xff]
        %v580 = vld [vmem:[%s224 + $0x188] sm:$0xff]
        %v581 = vld [vmem:[%s224 + $0x190] sm:$0xff]
        %v582 = vld [vmem:[%s224 + $0x198] sm:$0xff]
        %v583 = vld [vmem:[%s224 + $0x1a0] sm:$0xff]
        %v584 = vld [vmem:[%s224 + $0x1a8] sm:$0xff]
        %v585 = vld [vmem:[%s224 + $0x1b0] sm:$0xff]
        %v586 = vld [vmem:[%s224 + $0x1b8] sm:$0xff]
        %v587 = vld [vmem:[%s224 + $0x1c0] sm:$0xff]
        %v588 = vld [vmem:[%s224 + $0x1c8] sm:$0xff]
        %v589 = vld [vmem:[%s224 + $0x1d0] sm:$0xff]
        %v590 = vld [vmem:[%s224 + $0x1d8] sm:$0xff]
        %v591 = vld [vmem:[%s224 + $0x1e0] sm:$0xff]
        %v592 = vld [vmem:[%s224 + $0x1e8] sm:$0xff]
        %v593 = vld [vmem:[%s224 + $0x1f0] sm:$0xff]
        %v594 = vld [vmem:[%s224 + $0x1f8] sm:$0xff]
        %v595 = vld [vmem:[%s224 + $0x200] sm:$0xff]
        %v596 = vld [vmem:[%s224 + $0x208] sm:$0xff]
        %v597 = vld [vmem:[%s224 + $0x210] sm:$0xff]
        %v598 = vld [vmem:[%s224 + $0x218] sm:$0xff]
        %v599 = vld [vmem:[%s224 + $0x220] sm:$0xff]
        %v600 = vld [vmem:[%s224 + $0x228] sm:$0xff]
        %v601 = vld [vmem:[%s224 + $0x230] sm:$0xff]
        %v602 = vld [vmem:[%s224 + $0x238] sm:$0xff]
        %v603 = vld [vmem:[%s224 + $0x240] sm:$0xff]
        %v604 = vld [vmem:[%s224 + $0x248] sm:$0xff]
        %v605 = vld [vmem:[%s224 + $0x250] sm:$0xff]
        %v606 = vld [vmem:[%s224 + $0x258] sm:$0xff]
        %v607 = vld [vmem:[%s224 + $0x260] sm:$0xff]
        %v608 = vld [vmem:[%s224 + $0x268] sm:$0xff]
        %v609 = vld [vmem:[%s224 + $0x270] sm:$0xff]
        %v610 = vld [vmem:[%s224 + $0x278] sm:$0xff]
        %v611 = vld [vmem:[%s224 + $0x280] sm:$0xff]
        %v612 = vld [vmem:[%s224 + $0x288] sm:$0xff]
        %v613 = vld [vmem:[%s224 + $0x290] sm:$0xff]
        %v614 = vld [vmem:[%s224 + $0x298] sm:$0xff]
        %v615 = vld [vmem:[%s224 + $0x2a0] sm:$0xff]
        %v616 = vld [vmem:[%s224 + $0x2a8] sm:$0xff]
        %v617 = vld [vmem:[%s224 + $0x2b0] sm:$0xff]
        %v618 = vld [vmem:[%s224 + $0x2b8] sm:$0xff]
        %v619 = vld [vmem:[%s224 + $0x2c0] sm:$0xff]
        %v620 = vld [vmem:[%s224 + $0x2c8] sm:$0xff]
        %v621 = vld [vmem:[%s224 + $0x2d0] sm:$0xff]
        %v622 = vld [vmem:[%s224 + $0x2d8] sm:$0xff]
        %v623 = vld [vmem:[%s224 + $0x2e0] sm:$0xff]
        %v624 = vld [vmem:[%s224 + $0x2e8] sm:$0xff]
        %v625 = vld [vmem:[%s224 + $0x2f0] sm:$0xff]
        %v626 = vld [vmem:[%s224 + $0x2f8] sm:$0xff]
        %v627 = vld [vmem:[%s224 + $0x300] sm:$0xff]
        %v628 = vld [vmem:[%s224 + $0x308] sm:$0xff]
        %v629 = vld [vmem:[%s224 + $0x310] sm:$0xff]
        %v630 = vld [vmem:[%s224 + $0x318] sm:$0xff]
        %v631 = vld [vmem:[%s224 + $0x320] sm:$0xff]
        %v632 = vld [vmem:[%s224 + $0x328] sm:$0xff]
        %v633 = vld [vmem:[%s224 + $0x330] sm:$0xff]
        %v634 = vld [vmem:[%s224 + $0x338] sm:$0xff]
        %v635 = vld [vmem:[%s224 + $0x340] sm:$0xff]
        %v636 = vld [vmem:[%s224 + $0x348] sm:$0xff]
        %v637 = vld [vmem:[%s224 + $0x350] sm:$0xff]
        %v638 = vld [vmem:[%s224 + $0x358] sm:$0xff]
        %v639 = vld [vmem:[%s224 + $0x360] sm:$0xff]
        %v640 = vld [vmem:[%s224 + $0x368] sm:$0xff]
        %v641 = vld [vmem:[%s224 + $0x370] sm:$0xff]
        %v642 = vld [vmem:[%s224 + $0x378] sm:$0xff]
        %v643 = vld [vmem:[%s224 + $0x380] sm:$0xff]
        %v644 = vld [vmem:[%s224 + $0x388] sm:$0xff]
        %v645 = vld [vmem:[%s224 + $0x390] sm:$0xff]
        %v646 = vld [vmem:[%s224 + $0x398] sm:$0xff]
        %v647 = vld [vmem:[%s224 + $0x3a0] sm:$0xff]
        %v648 = vld [vmem:[%s224 + $0x3a8] sm:$0xff]
        %v649 = vld [vmem:[%s224 + $0x3b0] sm:$0xff]
        %v650 = vld [vmem:[%s224 + $0x3b8] sm:$0xff]
        %v651 = vld [vmem:[%s224 + $0x3c0] sm:$0xff]
        %v652 = vld [vmem:[%s224 + $0x3c8] sm:$0xff]
        %v653 = vld [vmem:[%s224 + $0x3d0] sm:$0xff]
        %v654 = vld [vmem:[%s224 + $0x3d8] sm:$0xff]
        %v655 = vld [vmem:[%s224 + $0x3e0] sm:$0xff]
        %v656 = vld [vmem:[%s224 + $0x3e8] sm:$0xff]
        %v657 = vld [vmem:[%s224 + $0x3f0] sm:$0xff]
        %v658 = vld [vmem:[%s224 + $0x3f8] sm:$0xff]
        %v659 = vld [vmem:[%s224 + $0x400] sm:$0xff]
        %v660 = vld [vmem:[%s224 + $0x408] sm:$0xff]
        %v661 = vld [vmem:[%s224 + $0x410] sm:$0xff]
        %v662 = vld [vmem:[%s224 + $0x418] sm:$0xff]
        %v663 = vld [vmem:[%s224 + $0x420] sm:$0xff]
        %v664 = vld [vmem:[%s224 + $0x428] sm:$0xff]
        %v665 = vld [vmem:[%s224 + $0x430] sm:$0xff]
        %v666 = vld [vmem:[%s224 + $0x438] sm:$0xff]
        %v667 = vld [vmem:[%s224 + $0x440] sm:$0xff]
        %v668 = vld [vmem:[%s224 + $0x448] sm:$0xff]
        %v669 = vld [vmem:[%s224 + $0x450] sm:$0xff]
        %v670 = vld [vmem:[%s224 + $0x458] sm:$0xff]
        %v671 = vld [vmem:[%s224 + $0x460] sm:$0xff]
        %v672 = vld [vmem:[%s224 + $0x468] sm:$0xff]
        %v673 = vld [vmem:[%s224 + $0x470] sm:$0xff]
        %v674 = vld [vmem:[%s224 + $0x478] sm:$0xff]
        %v675 = vld [vmem:[%s224 + $0x480] sm:$0xff]
        %v676 = vld [vmem:[%s224 + $0x488] sm:$0xff]
        %v677 = vld [vmem:[%s224 + $0x490] sm:$0xff]
        %v678 = vld [vmem:[%s224 + $0x498] sm:$0xff]
        %v679 = vld [vmem:[%s224 + $0x4a0] sm:$0xff]
        %v680 = vld [vmem:[%s224 + $0x4a8] sm:$0xff]
        %v681 = vld [vmem:[%s224 + $0x4b0] sm:$0xff]
        %v682 = vld [vmem:[%s224 + $0x4b8] sm:$0xff]
        %v683 = vld [vmem:[%s224 + $0x4c0] sm:$0xff]
        %v684 = vld [vmem:[%s224 + $0x4c8] sm:$0xff]
        %v685 = vld [vmem:[%s224 + $0x4d0] sm:$0xff]
        %v686 = vld [vmem:[%s224 + $0x4d8] sm:$0xff]
        %v687 = vld [vmem:[%s224 + $0x4e0] sm:$0xff]
        %v688 = vld [vmem:[%s224 + $0x4e8] sm:$0xff]
        %v689 = vld [vmem:[%s224 + $0x4f0] sm:$0xff]
        %v690 = vld [vmem:[%s224 + $0x4f8] sm:$0xff]
        %v691 = vld [vmem:[%s224 + $0x500] sm:$0xff]
        %v692 = vld [vmem:[%s224 + $0x508] sm:$0xff]
        %v693 = vld [vmem:[%s224 + $0x510] sm:$0xff]
        %v694 = vld [vmem:[%s224 + $0x518] sm:$0xff]
        %v695 = vld [vmem:[%s224 + $0x520] sm:$0xff]
        %v696 = vld [vmem:[%s224 + $0x528] sm:$0xff]
        %v697 = vld [vmem:[%s224 + $0x530] sm:$0xff]
        %v698 = vld [vmem:[%s224 + $0x538] sm:$0xff]
        %v699 = vld [vmem:[%s224 + $0x540] sm:$0xff]
        %v700 = vld [vmem:[%s224 + $0x548] sm:$0xff]
        %v701 = vld [vmem:[%s224 + $0x550] sm:$0xff]
        %v702 = vld [vmem:[%s224 + $0x558] sm:$0xff]
        %v703 = vld [vmem:[%s224 + $0x560] sm:$0xff]
        %v704 = vld [vmem:[%s224 + $0x568] sm:$0xff]
        %v705 = vld [vmem:[%s224 + $0x570] sm:$0xff]
        %v706 = vld [vmem:[%s224 + $0x578] sm:$0xff]
        %v707 = vld [vmem:[%s224 + $0x580] sm:$0xff]
        %v708 = vld [vmem:[%s224 + $0x588] sm:$0xff]
        %v709 = vld [vmem:[%s224 + $0x590] sm:$0xff]
        %v710 = vld [vmem:[%s224 + $0x598] sm:$0xff]
        %v711 = vld [vmem:[%s224 + $0x5a0] sm:$0xff]
        %v712 = vld [vmem:[%s224 + $0x5a8] sm:$0xff]
        %v713 = vld [vmem:[%s224 + $0x5b0] sm:$0xff]
        %v714 = vld [vmem:[%s224 + $0x5b8] sm:$0xff]
        %v715 = vld [vmem:[%s224 + $0x5c0] sm:$0xff]
        %v716 = vld [vmem:[%s224 + $0x5c8] sm:$0xff]
        %v717 = vld [vmem:[%s224 + $0x5d0] sm:$0xff]
        %v718 = vld [vmem:[%s224 + $0x5d8] sm:$0xff]
        %v719 = vld [vmem:[%s224 + $0x5e0] sm:$0xff]
        %v720 = vld [vmem:[%s224 + $0x5e8] sm:$0xff]
        %v721 = vld [vmem:[%s224 + $0x5f0] sm:$0xff]
        %v722 = vld [vmem:[%s224 + $0x5f8] sm:$0xff]
        %v723 = vld [vmem:[%s224 + $0x600] sm:$0xff]
        %v724 = vld [vmem:[%s224 + $0x608] sm:$0xff]
        %v725 = vld [vmem:[%s224 + $0x610] sm:$0xff]
        %v726 = vld [vmem:[%s224 + $0x618] sm:$0xff]
        %v727 = vld [vmem:[%s224 + $0x620] sm:$0xff]
        %v728 = vld [vmem:[%s224 + $0x628] sm:$0xff]
        %v729 = vld [vmem:[%s224 + $0x630] sm:$0xff]
        %v730 = vld [vmem:[%s224 + $0x638] sm:$0xff]
        %v731 = vld [vmem:[%s224 + $0x640] sm:$0xff]
        %v732 = vld [vmem:[%s224 + $0x648] sm:$0xff]
        %v733 = vld [vmem:[%s224 + $0x650] sm:$0xff]
        %v734 = vld [vmem:[%s224 + $0x658] sm:$0xff]
        %v735 = vld [vmem:[%s224 + $0x660] sm:$0xff]
        %v736 = vld [vmem:[%s224 + $0x668] sm:$0xff]
        %v737 = vld [vmem:[%s224 + $0x670] sm:$0xff]
        %v738 = vld [vmem:[%s224 + $0x678] sm:$0xff]
        %v739 = vld [vmem:[%s224 + $0x680] sm:$0xff]
        %v740 = vld [vmem:[%s224 + $0x688] sm:$0xff]
        %v741 = vld [vmem:[%s224 + $0x690] sm:$0xff]
        %v742 = vld [vmem:[%s224 + $0x698] sm:$0xff]
        %v743 = vld [vmem:[%s224 + $0x6a0] sm:$0xff]
        %v744 = vld [vmem:[%s224 + $0x6a8] sm:$0xff]
        %v745 = vld [vmem:[%s224 + $0x6b0] sm:$0xff]
        %v746 = vld [vmem:[%s224 + $0x6b8] sm:$0xff]
        %v747 = vld [vmem:[%s224 + $0x6c0] sm:$0xff]
        %v748 = vld [vmem:[%s224 + $0x6c8] sm:$0xff]
        %v749 = vld [vmem:[%s224 + $0x6d0] sm:$0xff]
        %v750 = vld [vmem:[%s224 + $0x6d8] sm:$0xff]
        %v751 = vld [vmem:[%s224 + $0x6e0] sm:$0xff]
        %v752 = vld [vmem:[%s224 + $0x6e8] sm:$0xff]
        %v753 = vld [vmem:[%s224 + $0x6f0] sm:$0xff]
        %v754 = vld [vmem:[%s224 + $0x6f8] sm:$0xff]
        %v755 = vld [vmem:[%s224 + $0x700] sm:$0xff]
        %v756 = vld [vmem:[%s224 + $0x708] sm:$0xff]
        %v757 = vld [vmem:[%s224 + $0x710] sm:$0xff]
        %v758 = vld [vmem:[%s224 + $0x718] sm:$0xff]
        %v759 = vld [vmem:[%s224 + $0x720] sm:$0xff]
        %v760 = vld [vmem:[%s224 + $0x728] sm:$0xff]
        %v761 = vld [vmem:[%s224 + $0x730] sm:$0xff]
        %v762 = vld [vmem:[%s224 + $0x738] sm:$0xff]
        %v763 = vld [vmem:[%s224 + $0x740] sm:$0xff]
        %v764 = vld [vmem:[%s224 + $0x748] sm:$0xff]
        %v765 = vld [vmem:[%s224 + $0x750] sm:$0xff]
        %v766 = vld [vmem:[%s224 + $0x758] sm:$0xff]
        %v767 = vld [vmem:[%s224 + $0x760] sm:$0xff]
        %v768 = vld [vmem:[%s224 + $0x768] sm:$0xff]
        %v769 = vld [vmem:[%s224 + $0x770] sm:$0xff]
        %v770 = vld [vmem:[%s224 + $0x778] sm:$0xff]
        %v771 = vld [vmem:[%s224 + $0x780] sm:$0xff]
        %v772 = vld [vmem:[%s224 + $0x788] sm:$0xff]
        %v773 = vld [vmem:[%s224 + $0x790] sm:$0xff]
        %v774 = vld [vmem:[%s224 + $0x798] sm:$0xff]
        %v775 = vld [vmem:[%s224 + $0x7a0] sm:$0xff]
        %v776 = vld [vmem:[%s224 + $0x7a8] sm:$0xff]
        %v777 = vld [vmem:[%s224 + $0x7b0] sm:$0xff]
        %v778 = vld [vmem:[%s224 + $0x7b8] sm:$0xff]
        %v779 = vld [vmem:[%s224 + $0x7c0] sm:$0xff]
        %v780 = vld [vmem:[%s224 + $0x7c8] sm:$0xff]
        %v781 = vld [vmem:[%s224 + $0x7d0] sm:$0xff]
        %v782 = vld [vmem:[%s224 + $0x7d8] sm:$0xff]
        %v783 = vld [vmem:[%s224 + $0x7e0] sm:$0xff]
        %v784 = vld [vmem:[%s224 + $0x7e8] sm:$0xff]
        %v785 = vld [vmem:[%s224 + $0x7f0] sm:$0xff]
        %v786 = vld [vmem:[%s224 + $0x7f8] sm:$0xff]
        %v787 = vsub.f32 %v275, %v531
        %v788 = vsub.f32 %v276, %v532
        %v789 = vsub.f32 %v277, %v533
        %v790 = vsub.f32 %v278, %v534
        %v791 = vsub.f32 %v279, %v535
        %v792 = vsub.f32 %v280, %v536
        %v793 = vsub.f32 %v281, %v537
        %v794 = vsub.f32 %v282, %v538
        %v795 = vsub.f32 %v283, %v539
        %v796 = vsub.f32 %v284, %v540
        %v797 = vsub.f32 %v285, %v541
        %v798 = vsub.f32 %v286, %v542
        %v799 = vsub.f32 %v287, %v543
        %v800 = vsub.f32 %v288, %v544
        %v801 = vsub.f32 %v289, %v545
        %v802 = vsub.f32 %v290, %v546
        %v803 = vsub.f32 %v291, %v547
        %v804 = vsub.f32 %v292, %v548
        %v805 = vsub.f32 %v293, %v549
        %v806 = vsub.f32 %v294, %v550
        %v807 = vsub.f32 %v295, %v551
        %v808 = vsub.f32 %v296, %v552
        %v809 = vsub.f32 %v297, %v553
        %v810 = vsub.f32 %v298, %v554
        %v811 = vsub.f32 %v299, %v555
        %v812 = vsub.f32 %v300, %v556
        %v813 = vsub.f32 %v301, %v557
        %v814 = vsub.f32 %v302, %v558
        %v815 = vsub.f32 %v303, %v559
        %v816 = vsub.f32 %v304, %v560
        %v817 = vsub.f32 %v305, %v561
        %v818 = vsub.f32 %v306, %v562
        %v819 = vsub.f32 %v307, %v563
        %v820 = vsub.f32 %v308, %v564
        %v821 = vsub.f32 %v309, %v565
        %v822 = vsub.f32 %v310, %v566
        %v823 = vsub.f32 %v311, %v567
        %v824 = vsub.f32 %v312, %v568
        %v825 = vsub.f32 %v313, %v569
        %v826 = vsub.f32 %v314, %v570
        %v827 = vsub.f32 %v315, %v571
        %v828 = vsub.f32 %v316, %v572
        %v829 = vsub.f32 %v317, %v573
        %v830 = vsub.f32 %v318, %v574
        %v831 = vsub.f32 %v319, %v575
        %v832 = vsub.f32 %v320, %v576
        %v833 = vsub.f32 %v321, %v577
        %v834 = vsub.f32 %v322, %v578
        %v835 = vsub.f32 %v323, %v579
        %v836 = vsub.f32 %v324, %v580
        %v837 = vsub.f32 %v325, %v581
        %v838 = vsub.f32 %v326, %v582
        %v839 = vsub.f32 %v327, %v583
        %v840 = vsub.f32 %v328, %v584
        %v841 = vsub.f32 %v329, %v585
        %v842 = vsub.f32 %v330, %v586
        %v843 = vsub.f32 %v331, %v587
        %v844 = vsub.f32 %v332, %v588
        %v845 = vsub.f32 %v333, %v589
        %v846 = vsub.f32 %v334, %v590
        %v847 = vsub.f32 %v335, %v591
        %v848 = vsub.f32 %v336, %v592
        %v849 = vsub.f32 %v337, %v593
        %v850 = vsub.f32 %v338, %v594
        %v851 = vsub.f32 %v339, %v595
        %v852 = vsub.f32 %v340, %v596
        %v853 = vsub.f32 %v341, %v597
        %v854 = vsub.f32 %v342, %v598
        %v855 = vsub.f32 %v343, %v599
        %v856 = vsub.f32 %v344, %v600
        %v857 = vsub.f32 %v345, %v601
        %v858 = vsub.f32 %v346, %v602
        %v859 = vsub.f32 %v347, %v603
        %v860 = vsub.f32 %v348, %v604
        %v861 = vsub.f32 %v349, %v605
        %v862 = vsub.f32 %v350, %v606
        %v863 = vsub.f32 %v351, %v607
        %v864 = vsub.f32 %v352, %v608
        %v865 = vsub.f32 %v353, %v609
        %v866 = vsub.f32 %v354, %v610
        %v867 = vsub.f32 %v355, %v611
        %v868 = vsub.f32 %v356, %v612
        %v869 = vsub.f32 %v357, %v613
        %v870 = vsub.f32 %v358, %v614
        %v871 = vsub.f32 %v359, %v615
        %v872 = vsub.f32 %v360, %v616
        %v873 = vsub.f32 %v361, %v617
        %v874 = vsub.f32 %v362, %v618
        %v875 = vsub.f32 %v363, %v619
        %v876 = vsub.f32 %v364, %v620
        %v877 = vsub.f32 %v365, %v621
        %v878 = vsub.f32 %v366, %v622
        %v879 = vsub.f32 %v367, %v623
        %v880 = vsub.f32 %v368, %v624
        %v881 = vsub.f32 %v369, %v625
        %v882 = vsub.f32 %v370, %v626
        %v883 = vsub.f32 %v371, %v627
        %v884 = vsub.f32 %v372, %v628
        %v885 = vsub.f32 %v373, %v629
        %v886 = vsub.f32 %v374, %v630
        %v887 = vsub.f32 %v375, %v631
        %v888 = vsub.f32 %v376, %v632
        %v889 = vsub.f32 %v377, %v633
        %v890 = vsub.f32 %v378, %v634
        %v891 = vsub.f32 %v379, %v635
        %v892 = vsub.f32 %v380, %v636
        %v893 = vsub.f32 %v381, %v637
        %v894 = vsub.f32 %v382, %v638
        %v895 = vsub.f32 %v383, %v639
        %v896 = vsub.f32 %v384, %v640
        %v897 = vsub.f32 %v385, %v641
        %v898 = vsub.f32 %v386, %v642
        %v899 = vsub.f32 %v387, %v643
        %v900 = vsub.f32 %v388, %v644
        %v901 = vsub.f32 %v389, %v645
        %v902 = vsub.f32 %v390, %v646
        %v903 = vsub.f32 %v391, %v647
        %v904 = vsub.f32 %v392, %v648
        %v905 = vsub.f32 %v393, %v649
        %v906 = vsub.f32 %v394, %v650
        %v907 = vsub.f32 %v395, %v651
        %v908 = vsub.f32 %v396, %v652
        %v909 = vsub.f32 %v397, %v653
        %v910 = vsub.f32 %v398, %v654
        %v911 = vsub.f32 %v399, %v655
        %v912 = vsub.f32 %v400, %v656
        %v913 = vsub.f32 %v401, %v657
        %v914 = vsub.f32 %v402, %v658
        %v915 = vsub.f32 %v403, %v659
        %v916 = vsub.f32 %v404, %v660
        %v917 = vsub.f32 %v405, %v661
        %v918 = vsub.f32 %v406, %v662
        %v919 = vsub.f32 %v407, %v663
        %v920 = vsub.f32 %v408, %v664
        %v921 = vsub.f32 %v409, %v665
        %v922 = vsub.f32 %v410, %v666
        %v923 = vsub.f32 %v411, %v667
        %v924 = vsub.f32 %v412, %v668
        %v925 = vsub.f32 %v413, %v669
        %v926 = vsub.f32 %v414, %v670
        %v927 = vsub.f32 %v415, %v671
        %v928 = vsub.f32 %v416, %v672
        %v929 = vsub.f32 %v417, %v673
        %v930 = vsub.f32 %v418, %v674
        %v931 = vsub.f32 %v419, %v675
        %v932 = vsub.f32 %v420, %v676
        %v933 = vsub.f32 %v421, %v677
        %v934 = vsub.f32 %v422, %v678
        %v935 = vsub.f32 %v423, %v679
        %v936 = vsub.f32 %v424, %v680
        %v937 = vsub.f32 %v425, %v681
        %v938 = vsub.f32 %v426, %v682
        %v939 = vsub.f32 %v427, %v683
        %v940 = vsub.f32 %v428, %v684
        %v941 = vsub.f32 %v429, %v685
        %v942 = vsub.f32 %v430, %v686
        %v943 = vsub.f32 %v431, %v687
        %v944 = vsub.f32 %v432, %v688
        %v945 = vsub.f32 %v433, %v689
        %v946 = vsub.f32 %v434, %v690
        %v947 = vsub.f32 %v435, %v691
        %v948 = vsub.f32 %v436, %v692
        %v949 = vsub.f32 %v437, %v693
        %v950 = vsub.f32 %v438, %v694
        %v951 = vsub.f32 %v439, %v695
        %v952 = vsub.f32 %v440, %v696
        %v953 = vsub.f32 %v441, %v697
        %v954 = vsub.f32 %v442, %v698
        %v955 = vsub.f32 %v443, %v699
        %v956 = vsub.f32 %v444, %v700
        %v957 = vsub.f32 %v445, %v701
        %v958 = vsub.f32 %v446, %v702
        %v959 = vsub.f32 %v447, %v703
        %v960 = vsub.f32 %v448, %v704
        %v961 = vsub.f32 %v449, %v705
        %v962 = vsub.f32 %v450, %v706
        %v963 = vsub.f32 %v451, %v707
        %v964 = vsub.f32 %v452, %v708
        %v965 = vsub.f32 %v453, %v709
        %v966 = vsub.f32 %v454, %v710
        %v967 = vsub.f32 %v455, %v711
        %v968 = vsub.f32 %v456, %v712
        %v969 = vsub.f32 %v457, %v713
        %v970 = vsub.f32 %v458, %v714
        %v971 = vsub.f32 %v459, %v715
        %v972 = vsub.f32 %v460, %v716
        %v973 = vsub.f32 %v461, %v717
        %v974 = vsub.f32 %v462, %v718
        %v975 = vsub.f32 %v463, %v719
        %v976 = vsub.f32 %v464, %v720
        %v977 = vsub.f32 %v465, %v721
        %v978 = vsub.f32 %v466, %v722
        %v979 = vsub.f32 %v467, %v723
        %v980 = vsub.f32 %v468, %v724
        %v981 = vsub.f32 %v469, %v725
        %v982 = vsub.f32 %v470, %v726
        %v983 = vsub.f32 %v471, %v727
        %v984 = vsub.f32 %v472, %v728
        %v985 = vsub.f32 %v473, %v729
        %v986 = vsub.f32 %v474, %v730
        %v987 = vsub.f32 %v475, %v731
        %v988 = vsub.f32 %v476, %v732
        %v989 = vsub.f32 %v477, %v733
        %v990 = vsub.f32 %v478, %v734
        %v991 = vsub.f32 %v479, %v735
        %v992 = vsub.f32 %v480, %v736
        %v993 = vsub.f32 %v481, %v737
        %v994 = vsub.f32 %v482, %v738
        %v995 = vsub.f32 %v483, %v739
        %v996 = vsub.f32 %v484, %v740
        %v997 = vsub.f32 %v485, %v741
        %v998 = vsub.f32 %v486, %v742
        %v999 = vsub.f32 %v487, %v743
        %v1000 = vsub.f32 %v488, %v744
        %v1001 = vsub.f32 %v489, %v745
        %v1002 = vsub.f32 %v490, %v746
        %v1003 = vsub.f32 %v491, %v747
        %v1004 = vsub.f32 %v492, %v748
        %v1005 = vsub.f32 %v493, %v749
        %v1006 = vsub.f32 %v494, %v750
        %v1007 = vsub.f32 %v495, %v751
        %v1008 = vsub.f32 %v496, %v752
        %v1009 = vsub.f32 %v497, %v753
        %v1010 = vsub.f32 %v498, %v754
        %v1011 = vsub.f32 %v499, %v755
        %v1012 = vsub.f32 %v500, %v756
        %v1013 = vsub.f32 %v501, %v757
        %v1014 = vsub.f32 %v502, %v758
        %v1015 = vsub.f32 %v503, %v759
        %v1016 = vsub.f32 %v504, %v760
        %v1017 = vsub.f32 %v505, %v761
        %v1018 = vsub.f32 %v506, %v762
        %v1019 = vsub.f32 %v507, %v763
        %v1020 = vsub.f32 %v508, %v764
        %v1021 = vsub.f32 %v509, %v765
        %v1022 = vsub.f32 %v510, %v766
        %v1023 = vsub.f32 %v511, %v767
        %v1024 = vsub.f32 %v512, %v768
        %v1025 = vsub.f32 %v513, %v769
        %v1026 = vsub.f32 %v514, %v770
        %v1027 = vsub.f32 %v515, %v771
        %v1028 = vsub.f32 %v516, %v772
        %v1029 = vsub.f32 %v517, %v773
        %v1030 = vsub.f32 %v518, %v774
        %v1031 = vsub.f32 %v519, %v775
        %v1032 = vsub.f32 %v520, %v776
        %v1033 = vsub.f32 %v521, %v777
        %v1034 = vsub.f32 %v522, %v778
        %v1035 = vsub.f32 %v523, %v779
        %v1036 = vsub.f32 %v524, %v780
        %v1037 = vsub.f32 %v525, %v781
        %v1038 = vsub.f32 %v526, %v782
        %v1039 = vsub.f32 %v527, %v783
        %v1040 = vsub.f32 %v528, %v784
        %v1041 = vsub.f32 %v529, %v785
        %v1042 = vsub.f32 %v530, %v786
        %v1043 = vmul.f32 %v787, %v787
        %v1044 = vmul.f32 %v788, %v788
        %v1045 = vmul.f32 %v789, %v789
        %v1046 = vmul.f32 %v790, %v790
        %v1047 = vmul.f32 %v791, %v791
        %v1048 = vmul.f32 %v792, %v792
        %v1049 = vmul.f32 %v793, %v793
        %v1050 = vmul.f32 %v794, %v794
        %v1051 = vmul.f32 %v795, %v795
        %v1052 = vmul.f32 %v796, %v796
        %v1053 = vmul.f32 %v797, %v797
        %v1054 = vmul.f32 %v798, %v798
        %v1055 = vmul.f32 %v799, %v799
        %v1056 = vmul.f32 %v800, %v800
        %v1057 = vmul.f32 %v801, %v801
        %v1058 = vmul.f32 %v802, %v802
        %v1059 = vmul.f32 %v803, %v803
        %v1060 = vmul.f32 %v804, %v804
        %v1061 = vmul.f32 %v805, %v805
        %v1062 = vmul.f32 %v806, %v806
        %v1063 = vmul.f32 %v807, %v807
        %v1064 = vmul.f32 %v808, %v808
        %v1065 = vmul.f32 %v809, %v809
        %v1066 = vmul.f32 %v810, %v810
        %v1067 = vmul.f32 %v811, %v811
        %v1068 = vmul.f32 %v812, %v812
        %v1069 = vmul.f32 %v813, %v813
        %v1070 = vmul.f32 %v814, %v814
        %v1071 = vmul.f32 %v815, %v815
        %v1072 = vmul.f32 %v816, %v816
        %v1073 = vmul.f32 %v817, %v817
        %v1074 = vmul.f32 %v818, %v818
        %v1075 = vmul.f32 %v819, %v819
        %v1076 = vmul.f32 %v820, %v820
        %v1077 = vmul.f32 %v821, %v821
        %v1078 = vmul.f32 %v822, %v822
        %v1079 = vmul.f32 %v823, %v823
        %v1080 = vmul.f32 %v824, %v824
        %v1081 = vmul.f32 %v825, %v825
        %v1082 = vmul.f32 %v826, %v826
        %v1083 = vmul.f32 %v827, %v827
        %v1084 = vmul.f32 %v828, %v828
        %v1085 = vmul.f32 %v829, %v829
        %v1086 = vmul.f32 %v830, %v830
        %v1087 = vmul.f32 %v831, %v831
        %v1088 = vmul.f32 %v832, %v832
        %v1089 = vmul.f32 %v833, %v833
        %v1090 = vmul.f32 %v834, %v834
        %v1091 = vmul.f32 %v835, %v835
        %v1092 = vmul.f32 %v836, %v836
        %v1093 = vmul.f32 %v837, %v837
        %v1094 = vmul.f32 %v838, %v838
        %v1095 = vmul.f32 %v839, %v839
        %v1096 = vmul.f32 %v840, %v840
        %v1097 = vmul.f32 %v841, %v841
        %v1098 = vmul.f32 %v842, %v842
        %v1099 = vmul.f32 %v843, %v843
        %v1100 = vmul.f32 %v844, %v844
        %v1101 = vmul.f32 %v845, %v845
        %v1102 = vmul.f32 %v846, %v846
        %v1103 = vmul.f32 %v847, %v847
        %v1104 = vmul.f32 %v848, %v848
        %v1105 = vmul.f32 %v849, %v849
        %v1106 = vmul.f32 %v850, %v850
        %v1107 = vmul.f32 %v851, %v851
        %v1108 = vmul.f32 %v852, %v852
        %v1109 = vmul.f32 %v853, %v853
        %v1110 = vmul.f32 %v854, %v854
        %v1111 = vmul.f32 %v855, %v855
        %v1112 = vmul.f32 %v856, %v856
        %v1113 = vmul.f32 %v857, %v857
        %v1114 = vmul.f32 %v858, %v858
        %v1115 = vmul.f32 %v859, %v859
        %v1116 = vmul.f32 %v860, %v860
        %v1117 = vmul.f32 %v861, %v861
        %v1118 = vmul.f32 %v862, %v862
        %v1119 = vmul.f32 %v863, %v863
        %v1120 = vmul.f32 %v864, %v864
        %v1121 = vmul.f32 %v865, %v865
        %v1122 = vmul.f32 %v866, %v866
        %v1123 = vmul.f32 %v867, %v867
        %v1124 = vmul.f32 %v868, %v868
        %v1125 = vmul.f32 %v869, %v869
        %v1126 = vmul.f32 %v870, %v870
        %v1127 = vmul.f32 %v871, %v871
        %v1128 = vmul.f32 %v872, %v872
        %v1129 = vmul.f32 %v873, %v873
        %v1130 = vmul.f32 %v874, %v874
        %v1131 = vmul.f32 %v875, %v875
        %v1132 = vmul.f32 %v876, %v876
        %v1133 = vmul.f32 %v877, %v877
        %v1134 = vmul.f32 %v878, %v878
        %v1135 = vmul.f32 %v879, %v879
        %v1136 = vmul.f32 %v880, %v880
        %v1137 = vmul.f32 %v881, %v881
        %v1138 = vmul.f32 %v882, %v882
        %v1139 = vmul.f32 %v883, %v883
        %v1140 = vmul.f32 %v884, %v884
        %v1141 = vmul.f32 %v885, %v885
        %v1142 = vmul.f32 %v886, %v886
        %v1143 = vmul.f32 %v887, %v887
        %v1144 = vmul.f32 %v888, %v888
        %v1145 = vmul.f32 %v889, %v889
        %v1146 = vmul.f32 %v890, %v890
        %v1147 = vmul.f32 %v891, %v891
        %v1148 = vmul.f32 %v892, %v892
        %v1149 = vmul.f32 %v893, %v893
        %v1150 = vmul.f32 %v894, %v894
        %v1151 = vmul.f32 %v895, %v895
        %v1152 = vmul.f32 %v896, %v896
        %v1153 = vmul.f32 %v897, %v897
        %v1154 = vmul.f32 %v898, %v898
        %v1155 = vmul.f32 %v899, %v899
        %v1156 = vmul.f32 %v900, %v900
        %v1157 = vmul.f32 %v901, %v901
        %v1158 = vmul.f32 %v902, %v902
        %v1159 = vmul.f32 %v903, %v903
        %v1160 = vmul.f32 %v904, %v904
        %v1161 = vmul.f32 %v905, %v905
        %v1162 = vmul.f32 %v906, %v906
        %v1163 = vmul.f32 %v907, %v907
        %v1164 = vmul.f32 %v908, %v908
        %v1165 = vmul.f32 %v909, %v909
        %v1166 = vmul.f32 %v910, %v910
        %v1167 = vmul.f32 %v911, %v911
        %v1168 = vmul.f32 %v912, %v912
        %v1169 = vmul.f32 %v913, %v913
        %v1170 = vmul.f32 %v914, %v914
        %v1171 = vmul.f32 %v915, %v915
        %v1172 = vmul.f32 %v916, %v916
        %v1173 = vmul.f32 %v917, %v917
        %v1174 = vmul.f32 %v918, %v918
        %v1175 = vmul.f32 %v919, %v919
        %v1176 = vmul.f32 %v920, %v920
        %v1177 = vmul.f32 %v921, %v921
        %v1178 = vmul.f32 %v922, %v922
        %v1179 = vmul.f32 %v923, %v923
        %v1180 = vmul.f32 %v924, %v924
        %v1181 = vmul.f32 %v925, %v925
        %v1182 = vmul.f32 %v926, %v926
        %v1183 = vmul.f32 %v927, %v927
        %v1184 = vmul.f32 %v928, %v928
        %v1185 = vmul.f32 %v929, %v929
        %v1186 = vmul.f32 %v930, %v930
        %v1187 = vmul.f32 %v931, %v931
        %v1188 = vmul.f32 %v932, %v932
        %v1189 = vmul.f32 %v933, %v933
        %v1190 = vmul.f32 %v934, %v934
        %v1191 = vmul.f32 %v935, %v935
        %v1192 = vmul.f32 %v936, %v936
        %v1193 = vmul.f32 %v937, %v937
        %v1194 = vmul.f32 %v938, %v938
        %v1195 = vmul.f32 %v939, %v939
        %v1196 = vmul.f32 %v940, %v940
        %v1197 = vmul.f32 %v941, %v941
        %v1198 = vmul.f32 %v942, %v942
        %v1199 = vmul.f32 %v943, %v943
        %v1200 = vmul.f32 %v944, %v944
        %v1201 = vmul.f32 %v945, %v945
        %v1202 = vmul.f32 %v946, %v946
        %v1203 = vmul.f32 %v947, %v947
        %v1204 = vmul.f32 %v948, %v948
        %v1205 = vmul.f32 %v949, %v949
        %v1206 = vmul.f32 %v950, %v950
        %v1207 = vmul.f32 %v951, %v951
        %v1208 = vmul.f32 %v952, %v952
        %v1209 = vmul.f32 %v953, %v953
        %v1210 = vmul.f32 %v954, %v954
        %v1211 = vmul.f32 %v955, %v955
        %v1212 = vmul.f32 %v956, %v956
        %v1213 = vmul.f32 %v957, %v957
        %v1214 = vmul.f32 %v958, %v958
        %v1215 = vmul.f32 %v959, %v959
        %v1216 = vmul.f32 %v960, %v960
        %v1217 = vmul.f32 %v961, %v961
        %v1218 = vmul.f32 %v962, %v962
        %v1219 = vmul.f32 %v963, %v963
        %v1220 = vmul.f32 %v964, %v964
        %v1221 = vmul.f32 %v965, %v965
        %v1222 = vmul.f32 %v966, %v966
        %v1223 = vmul.f32 %v967, %v967
        %v1224 = vmul.f32 %v968, %v968
        %v1225 = vmul.f32 %v969, %v969
        %v1226 = vmul.f32 %v970, %v970
        %v1227 = vmul.f32 %v971, %v971
        %v1228 = vmul.f32 %v972, %v972
        %v1229 = vmul.f32 %v973, %v973
        %v1230 = vmul.f32 %v974, %v974
        %v1231 = vmul.f32 %v975, %v975
        %v1232 = vmul.f32 %v976, %v976
        %v1233 = vmul.f32 %v977, %v977
        %v1234 = vmul.f32 %v978, %v978
        %v1235 = vmul.f32 %v979, %v979
        %v1236 = vmul.f32 %v980, %v980
        %v1237 = vmul.f32 %v981, %v981
        %v1238 = vmul.f32 %v982, %v982
        %v1239 = vmul.f32 %v983, %v983
        %v1240 = vmul.f32 %v984, %v984
        %v1241 = vmul.f32 %v985, %v985
        %v1242 = vmul.f32 %v986, %v986
        %v1243 = vmul.f32 %v987, %v987
        %v1244 = vmul.f32 %v988, %v988
        %v1245 = vmul.f32 %v989, %v989
        %v1246 = vmul.f32 %v990, %v990
        %v1247 = vmul.f32 %v991, %v991
        %v1248 = vmul.f32 %v992, %v992
        %v1249 = vmul.f32 %v993, %v993
        %v1250 = vmul.f32 %v994, %v994
        %v1251 = vmul.f32 %v995, %v995
        %v1252 = vmul.f32 %v996, %v996
        %v1253 = vmul.f32 %v997, %v997
        %v1254 = vmul.f32 %v998, %v998
        %v1255 = vmul.f32 %v999, %v999
        %v1256 = vmul.f32 %v1000, %v1000
        %v1257 = vmul.f32 %v1001, %v1001
        %v1258 = vmul.f32 %v1002, %v1002
        %v1259 = vmul.f32 %v1003, %v1003
        %v1260 = vmul.f32 %v1004, %v1004
        %v1261 = vmul.f32 %v1005, %v1005
        %v1262 = vmul.f32 %v1006, %v1006
        %v1263 = vmul.f32 %v1007, %v1007
        %v1264 = vmul.f32 %v1008, %v1008
        %v1265 = vmul.f32 %v1009, %v1009
        %v1266 = vmul.f32 %v1010, %v1010
        %v1267 = vmul.f32 %v1011, %v1011
        %v1268 = vmul.f32 %v1012, %v1012
        %v1269 = vmul.f32 %v1013, %v1013
        %v1270 = vmul.f32 %v1014, %v1014
        %v1271 = vmul.f32 %v1015, %v1015
        %v1272 = vmul.f32 %v1016, %v1016
        %v1273 = vmul.f32 %v1017, %v1017
        %v1274 = vmul.f32 %v1018, %v1018
        %v1275 = vmul.f32 %v1019, %v1019
        %v1276 = vmul.f32 %v1020, %v1020
        %v1277 = vmul.f32 %v1021, %v1021
        %v1278 = vmul.f32 %v1022, %v1022
        %v1279 = vmul.f32 %v1023, %v1023
        %v1280 = vmul.f32 %v1024, %v1024
        %v1281 = vmul.f32 %v1025, %v1025
        %v1282 = vmul.f32 %v1026, %v1026
        %v1283 = vmul.f32 %v1027, %v1027
        %v1284 = vmul.f32 %v1028, %v1028
        %v1285 = vmul.f32 %v1029, %v1029
        %v1286 = vmul.f32 %v1030, %v1030
        %v1287 = vmul.f32 %v1031, %v1031
        %v1288 = vmul.f32 %v1032, %v1032
        %v1289 = vmul.f32 %v1033, %v1033
        %v1290 = vmul.f32 %v1034, %v1034
        %v1291 = vmul.f32 %v1035, %v1035
        %v1292 = vmul.f32 %v1036, %v1036
        %v1293 = vmul.f32 %v1037, %v1037
        %v1294 = vmul.f32 %v1038, %v1038
        %v1295 = vmul.f32 %v1039, %v1039
        %v1296 = vmul.f32 %v1040, %v1040
        %v1297 = vmul.f32 %v1041, %v1041
        %v1298 = vmul.f32 %v1042, %v1042
        %p1299 = scmp.ge.s32.totalorder %s274, 2
        %p1300 = scmp.lt.s32.totalorder %s274, 2
        // Predicated region
        $region41: #{tpu_custom_call.1} parent=27 // pred_check
          %p1301 = pneg %p1300
        $region42: #{tpu_custom_call.1} parent=27 // pred_check_branch
          %1303 = sbr.rel (%p1301) target = $region44
        $region43: #{tpu_custom_call.1} parent=27 // pred_region
          %v1304 = vld [vmem:[%s249] sm:$0xff]
          %v1305 = vadd.f32 %v1043, %v1044
          %v1306 = vadd.f32 %v1305, %v1045
          %v1307 = vadd.f32 %v1306, %v1046
          %v1308 = vadd.f32 %v1307, %v1047
          %v1309 = vadd.f32 %v1308, %v1048
          %v1310 = vadd.f32 %v1309, %v1049
          %v1311 = vadd.f32 %v1310, %v1050
          %v1312 = vadd.f32 %v1311, %v1051
          %v1313 = vadd.f32 %v1312, %v1052
          %v1314 = vadd.f32 %v1313, %v1053
          %v1315 = vadd.f32 %v1314, %v1054
          %v1316 = vadd.f32 %v1315, %v1055
          %v1317 = vadd.f32 %v1316, %v1056
          %v1318 = vadd.f32 %v1317, %v1057
          %v1319 = vadd.f32 %v1318, %v1058
          %v1320 = vadd.f32 %v1319, %v1059
          %v1321 = vadd.f32 %v1320, %v1060
          %v1322 = vadd.f32 %v1321, %v1061
          %v1323 = vadd.f32 %v1322, %v1062
          %v1324 = vadd.f32 %v1323, %v1063
          %v1325 = vadd.f32 %v1324, %v1064
          %v1326 = vadd.f32 %v1325, %v1065
          %v1327 = vadd.f32 %v1326, %v1066
          %v1328 = vadd.f32 %v1327, %v1067
          %v1329 = vadd.f32 %v1328, %v1068
          %v1330 = vadd.f32 %v1329, %v1069
          %v1331 = vadd.f32 %v1330, %v1070
          %v1332 = vadd.f32 %v1331, %v1071
          %v1333 = vadd.f32 %v1332, %v1072
          %v1334 = vadd.f32 %v1333, %v1073
          %v1335 = vadd.f32 %v1334, %v1074
          %v1336 = vadd.f32 %v1335, %v1075
          %v1337 = vadd.f32 %v1336, %v1076
          %v1338 = vadd.f32 %v1337, %v1077
          %v1339 = vadd.f32 %v1338, %v1078
          %v1340 = vadd.f32 %v1339, %v1079
          %v1341 = vadd.f32 %v1340, %v1080
          %v1342 = vadd.f32 %v1341, %v1081
          %v1343 = vadd.f32 %v1342, %v1082
          %v1344 = vadd.f32 %v1343, %v1083
          %v1345 = vadd.f32 %v1344, %v1084
          %v1346 = vadd.f32 %v1345, %v1085
          %v1347 = vadd.f32 %v1346, %v1086
          %v1348 = vadd.f32 %v1347, %v1087
          %v1349 = vadd.f32 %v1348, %v1088
          %v1350 = vadd.f32 %v1349, %v1089
          %v1351 = vadd.f32 %v1350, %v1090
          %v1352 = vadd.f32 %v1351, %v1091
          %v1353 = vadd.f32 %v1352, %v1092
          %v1354 = vadd.f32 %v1353, %v1093
          %v1355 = vadd.f32 %v1354, %v1094
          %v1356 = vadd.f32 %v1355, %v1095
          %v1357 = vadd.f32 %v1356, %v1096
          %v1358 = vadd.f32 %v1357, %v1097
          %v1359 = vadd.f32 %v1358, %v1098
          %v1360 = vadd.f32 %v1359, %v1099
          %v1361 = vadd.f32 %v1360, %v1100
          %v1362 = vadd.f32 %v1361, %v1101
          %v1363 = vadd.f32 %v1362, %v1102
          %v1364 = vadd.f32 %v1363, %v1103
          %v1365 = vadd.f32 %v1364, %v1104
          %v1366 = vadd.f32 %v1365, %v1105
          %v1367 = vadd.f32 %v1366, %v1106
          %v1368 = vadd.f32 %v1367, %v1107
          %v1369 = vadd.f32 %v1368, %v1108
          %v1370 = vadd.f32 %v1369, %v1109
          %v1371 = vadd.f32 %v1370, %v1110
          %v1372 = vadd.f32 %v1371, %v1111
          %v1373 = vadd.f32 %v1372, %v1112
          %v1374 = vadd.f32 %v1373, %v1113
          %v1375 = vadd.f32 %v1374, %v1114
          %v1376 = vadd.f32 %v1375, %v1115
          %v1377 = vadd.f32 %v1376, %v1116
          %v1378 = vadd.f32 %v1377, %v1117
          %v1379 = vadd.f32 %v1378, %v1118
          %v1380 = vadd.f32 %v1379, %v1119
          %v1381 = vadd.f32 %v1380, %v1120
          %v1382 = vadd.f32 %v1381, %v1121
          %v1383 = vadd.f32 %v1382, %v1122
          %v1384 = vadd.f32 %v1383, %v1123
          %v1385 = vadd.f32 %v1384, %v1124
          %v1386 = vadd.f32 %v1385, %v1125
          %v1387 = vadd.f32 %v1386, %v1126
          %v1388 = vadd.f32 %v1387, %v1127
          %v1389 = vadd.f32 %v1388, %v1128
          %v1390 = vadd.f32 %v1389, %v1129
          %v1391 = vadd.f32 %v1390, %v1130
          %v1392 = vadd.f32 %v1391, %v1131
          %v1393 = vadd.f32 %v1392, %v1132
          %v1394 = vadd.f32 %v1393, %v1133
          %v1395 = vadd.f32 %v1394, %v1134
          %v1396 = vadd.f32 %v1395, %v1135
          %v1397 = vadd.f32 %v1396, %v1136
          %v1398 = vadd.f32 %v1397, %v1137
          %v1399 = vadd.f32 %v1398, %v1138
          %v1400 = vadd.f32 %v1399, %v1139
          %v1401 = vadd.f32 %v1400, %v1140
          %v1402 = vadd.f32 %v1401, %v1141
          %v1403 = vadd.f32 %v1402, %v1142
          %v1404 = vadd.f32 %v1403, %v1143
          %v1405 = vadd.f32 %v1404, %v1144
          %v1406 = vadd.f32 %v1405, %v1145
          %v1407 = vadd.f32 %v1406, %v1146
          %v1408 = vadd.f32 %v1407, %v1147
          %v1409 = vadd.f32 %v1408, %v1148
          %v1410 = vadd.f32 %v1409, %v1149
          %v1411 = vadd.f32 %v1410, %v1150
          %v1412 = vadd.f32 %v1411, %v1151
          %v1413 = vadd.f32 %v1412, %v1152
          %v1414 = vadd.f32 %v1413, %v1153
          %v1415 = vadd.f32 %v1414, %v1154
          %v1416 = vadd.f32 %v1415, %v1155
          %v1417 = vadd.f32 %v1416, %v1156
          %v1418 = vadd.f32 %v1417, %v1157
          %v1419 = vadd.f32 %v1418, %v1158
          %v1420 = vadd.f32 %v1419, %v1159
          %v1421 = vadd.f32 %v1420, %v1160
          %v1422 = vadd.f32 %v1421, %v1161
          %v1423 = vadd.f32 %v1422, %v1162
          %v1424 = vadd.f32 %v1423, %v1163
          %v1425 = vadd.f32 %v1424, %v1164
          %v1426 = vadd.f32 %v1425, %v1165
          %v1427 = vadd.f32 %v1426, %v1166
          %v1428 = vadd.f32 %v1427, %v1167
          %v1429 = vadd.f32 %v1428, %v1168
          %v1430 = vadd.f32 %v1429, %v1169
          %v1431 = vadd.f32 %v1430, %v1170
          %v1432 = vadd.f32 %v1431, %v1171
          %v1433 = vadd.f32 %v1432, %v1172
          %v1434 = vadd.f32 %v1433, %v1173
          %v1435 = vadd.f32 %v1434, %v1174
          %v1436 = vadd.f32 %v1435, %v1175
          %v1437 = vadd.f32 %v1436, %v1176
          %v1438 = vadd.f32 %v1437, %v1177
          %v1439 = vadd.f32 %v1438, %v1178
          %v1440 = vadd.f32 %v1439, %v1179
          %v1441 = vadd.f32 %v1440, %v1180
          %v1442 = vadd.f32 %v1441, %v1181
          %v1443 = vadd.f32 %v1442, %v1182
          %v1444 = vadd.f32 %v1443, %v1183
          %v1445 = vadd.f32 %v1444, %v1184
          %v1446 = vadd.f32 %v1445, %v1185
          %v1447 = vadd.f32 %v1446, %v1186
          %v1448 = vadd.f32 %v1447, %v1187
          %v1449 = vadd.f32 %v1448, %v1188
          %v1450 = vadd.f32 %v1449, %v1189
          %v1451 = vadd.f32 %v1450, %v1190
          %v1452 = vadd.f32 %v1451, %v1191
          %v1453 = vadd.f32 %v1452, %v1192
          %v1454 = vadd.f32 %v1453, %v1193
          %v1455 = vadd.f32 %v1454, %v1194
          %v1456 = vadd.f32 %v1455, %v1195
          %v1457 = vadd.f32 %v1456, %v1196
          %v1458 = vadd.f32 %v1457, %v1197
          %v1459 = vadd.f32 %v1458, %v1198
          %v1460 = vadd.f32 %v1459, %v1199
          %v1461 = vadd.f32 %v1460, %v1200
          %v1462 = vadd.f32 %v1461, %v1201
          %v1463 = vadd.f32 %v1462, %v1202
          %v1464 = vadd.f32 %v1463, %v1203
          %v1465 = vadd.f32 %v1464, %v1204
          %v1466 = vadd.f32 %v1465, %v1205
          %v1467 = vadd.f32 %v1466, %v1206
          %v1468 = vadd.f32 %v1467, %v1207
          %v1469 = vadd.f32 %v1468, %v1208
          %v1470 = vadd.f32 %v1469, %v1209
          %v1471 = vadd.f32 %v1470, %v1210
          %v1472 = vadd.f32 %v1471, %v1211
          %v1473 = vadd.f32 %v1472, %v1212
          %v1474 = vadd.f32 %v1473, %v1213
          %v1475 = vadd.f32 %v1474, %v1214
          %v1476 = vadd.f32 %v1475, %v1215
          %v1477 = vadd.f32 %v1476, %v1216
          %v1478 = vadd.f32 %v1477, %v1217
          %v1479 = vadd.f32 %v1478, %v1218
          %v1480 = vadd.f32 %v1479, %v1219
          %v1481 = vadd.f32 %v1480, %v1220
          %v1482 = vadd.f32 %v1481, %v1221
          %v1483 = vadd.f32 %v1482, %v1222
          %v1484 = vadd.f32 %v1483, %v1223
          %v1485 = vadd.f32 %v1484, %v1224
          %v1486 = vadd.f32 %v1485, %v1225
          %v1487 = vadd.f32 %v1486, %v1226
          %v1488 = vadd.f32 %v1487, %v1227
          %v1489 = vadd.f32 %v1488, %v1228
          %v1490 = vadd.f32 %v1489, %v1229
          %v1491 = vadd.f32 %v1490, %v1230
          %v1492 = vadd.f32 %v1491, %v1231
          %v1493 = vadd.f32 %v1492, %v1232
          %v1494 = vadd.f32 %v1493, %v1233
          %v1495 = vadd.f32 %v1494, %v1234
          %v1496 = vadd.f32 %v1495, %v1235
          %v1497 = vadd.f32 %v1496, %v1236
          %v1498 = vadd.f32 %v1497, %v1237
          %v1499 = vadd.f32 %v1498, %v1238
          %v1500 = vadd.f32 %v1499, %v1239
          %v1501 = vadd.f32 %v1500, %v1240
          %v1502 = vadd.f32 %v1501, %v1241
          %v1503 = vadd.f32 %v1502, %v1242
          %v1504 = vadd.f32 %v1503, %v1243
          %v1505 = vadd.f32 %v1504, %v1244
          %v1506 = vadd.f32 %v1505, %v1245
          %v1507 = vadd.f32 %v1506, %v1246
          %v1508 = vadd.f32 %v1507, %v1247
          %v1509 = vadd.f32 %v1508, %v1248
          %v1510 = vadd.f32 %v1509, %v1249
          %v1511 = vadd.f32 %v1510, %v1250
          %v1512 = vadd.f32 %v1511, %v1251
          %v1513 = vadd.f32 %v1512, %v1252
          %v1514 = vadd.f32 %v1513, %v1253
          %v1515 = vadd.f32 %v1514, %v1254
          %v1516 = vadd.f32 %v1515, %v1255
          %v1517 = vadd.f32 %v1516, %v1256
          %v1518 = vadd.f32 %v1517, %v1257
          %v1519 = vadd.f32 %v1518, %v1258
          %v1520 = vadd.f32 %v1519, %v1259
          %v1521 = vadd.f32 %v1520, %v1260
          %v1522 = vadd.f32 %v1521, %v1261
          %v1523 = vadd.f32 %v1522, %v1262
          %v1524 = vadd.f32 %v1523, %v1263
          %v1525 = vadd.f32 %v1524, %v1264
          %v1526 = vadd.f32 %v1525, %v1265
          %v1527 = vadd.f32 %v1526, %v1266
          %v1528 = vadd.f32 %v1527, %v1267
          %v1529 = vadd.f32 %v1528, %v1268
          %v1530 = vadd.f32 %v1529, %v1269
          %v1531 = vadd.f32 %v1530, %v1270
          %v1532 = vadd.f32 %v1531, %v1271
          %v1533 = vadd.f32 %v1532, %v1272
          %v1534 = vadd.f32 %v1533, %v1273
          %v1535 = vadd.f32 %v1534, %v1274
          %v1536 = vadd.f32 %v1535, %v1275
          %v1537 = vadd.f32 %v1536, %v1276
          %v1538 = vadd.f32 %v1537, %v1277
          %v1539 = vadd.f32 %v1538, %v1278
          %v1540 = vadd.f32 %v1539, %v1279
          %v1541 = vadd.f32 %v1540, %v1280
          %v1542 = vadd.f32 %v1541, %v1281
          %v1543 = vadd.f32 %v1542, %v1282
          %v1544 = vadd.f32 %v1543, %v1283
          %v1545 = vadd.f32 %v1544, %v1284
          %v1546 = vadd.f32 %v1545, %v1285
          %v1547 = vadd.f32 %v1546, %v1286
          %v1548 = vadd.f32 %v1547, %v1287
          %v1549 = vadd.f32 %v1548, %v1288
          %v1550 = vadd.f32 %v1549, %v1289
          %v1551 = vadd.f32 %v1550, %v1290
          %v1552 = vadd.f32 %v1551, %v1291
          %v1553 = vadd.f32 %v1552, %v1292
          %v1554 = vadd.f32 %v1553, %v1293
          %v1555 = vadd.f32 %v1554, %v1294
          %v1556 = vadd.f32 %v1555, %v1295
          %v1557 = vadd.f32 %v1556, %v1296
          %v1558 = vadd.f32 %v1557, %v1297
          %v1559 = vadd.f32 %v1558, %v1298
          %v1560 = vadd.f32 %v1304, %v1559
          %1561 = vst [vmem:[%s249] sm:$0xff] %v1560
        $region44: #{tpu_custom_call.1} parent=27 // pred_fallthru
          _
        // Predicated region
        $region45: #{tpu_custom_call.1} parent=27 // pred_check
          %p1562 = pneg %p1299
        $region46: #{tpu_custom_call.1} parent=27 // pred_check_branch
          %1564 = sbr.rel (%p1562) target = $region48
        $region47: #{tpu_custom_call.1} parent=27 // pred_region
          %s1565 = smul.u32 %s274, 2048
          %v1566 = vlaneseq
          %v1567 = vshrl.u32 %v1566, 7
          %v1568 = vadd.s32 %v1567, 8
          %v1569 = vadd.s32 %v1567, 16
          %v1570 = vadd.s32 %v1567, 24
          %v1571 = vadd.s32 %v1567, 32
          %v1572 = vadd.s32 %v1567, 40
          %v1573 = vadd.s32 %v1567, 48
          %v1574 = vadd.s32 %v1567, 56
          %v1575 = vadd.s32 %v1567, 64
          %v1576 = vadd.s32 %v1567, 72
          %v1577 = vadd.s32 %v1567, 80
          %v1578 = vadd.s32 %v1567, 88
          %v1579 = vadd.s32 %v1567, 96
          %v1580 = vadd.s32 %v1567, 104
          %v1581 = vadd.s32 %v1567, 112
          %v1582 = vadd.s32 %v1567, 120
          %v1583 = vadd.s32 %v1567, 128
          %v1584 = vadd.s32 %v1567, 136
          %v1585 = vadd.s32 %v1567, 144
          %v1586 = vadd.s32 %v1567, 152
          %v1587 = vadd.s32 %v1567, 160
          %v1588 = vadd.s32 %v1567, 168
          %v1589 = vadd.s32 %v1567, 176
          %v1590 = vadd.s32 %v1567, 184
          %v1591 = vadd.s32 %v1567, 192
          %v1592 = vadd.s32 %v1567, 200
          %v1593 = vadd.s32 %v1567, 208
          %v1594 = vadd.s32 %v1567, 216
          %v1595 = vadd.s32 %v1567, 224
          %v1596 = vadd.s32 %v1567, 232
          %v1597 = vadd.s32 %v1567, 240
          %v1598 = vadd.s32 %v1567, 248
          %v1599 = vadd.s32 %v1567, 256
          %v1600 = vadd.s32 %v1567, 264
          %v1601 = vadd.s32 %v1567, 272
          %v1602 = vadd.s32 %v1567, 280
          %v1603 = vadd.s32 %v1567, 288
          %v1604 = vadd.s32 %v1567, 296
          %v1605 = vadd.s32 %v1567, 304
          %v1606 = vadd.s32 %v1567, 312
          %v1607 = vadd.s32 %v1567, 320
          %v1608 = vadd.s32 %v1567, 328
          %v1609 = vadd.s32 %v1567, 336
          %v1610 = vadd.s32 %v1567, 344
          %v1611 = vadd.s32 %v1567, 352
          %v1612 = vadd.s32 %v1567, 360
          %v1613 = vadd.s32 %v1567, 368
          %v1614 = vadd.s32 %v1567, 376
          %v1615 = vadd.s32 %v1567, 384
          %v1616 = vadd.s32 %v1567, 392
          %v1617 = vadd.s32 %v1567, 400
          %v1618 = vadd.s32 %v1567, 408
          %v1619 = vadd.s32 %v1567, 416
          %v1620 = vadd.s32 %v1567, 424
          %v1621 = vadd.s32 %v1567, 432
          %v1622 = vadd.s32 %v1567, 440
          %v1623 = vadd.s32 %v1567, 448
          %v1624 = vadd.s32 %v1567, 456
          %v1625 = vadd.s32 %v1567, 464
          %v1626 = vadd.s32 %v1567, 472
          %v1627 = vadd.s32 %v1567, 480
          %v1628 = vadd.s32 %v1567, 488
          %v1629 = vadd.s32 %v1567, 496
          %v1630 = vadd.s32 %v1567, 504
          %v1631 = vadd.s32 %v1567, 512
          %v1632 = vadd.s32 %v1567, 520
          %v1633 = vadd.s32 %v1567, 528
          %v1634 = vadd.s32 %v1567, 536
          %v1635 = vadd.s32 %v1567, 544
          %v1636 = vadd.s32 %v1567, 552
          %v1637 = vadd.s32 %v1567, 560
          %v1638 = vadd.s32 %v1567, 568
          %v1639 = vadd.s32 %v1567, 576
          %v1640 = vadd.s32 %v1567, 584
          %v1641 = vadd.s32 %v1567, 592
          %v1642 = vadd.s32 %v1567, 600
          %v1643 = vadd.s32 %v1567, 608
          %v1644 = vadd.s32 %v1567, 616
          %v1645 = vadd.s32 %v1567, 624
          %v1646 = vadd.s32 %v1567, 632
          %v1647 = vadd.s32 %v1567, 640
          %v1648 = vadd.s32 %v1567, 648
          %v1649 = vadd.s32 %v1567, 656
          %v1650 = vadd.s32 %v1567, 664
          %v1651 = vadd.s32 %v1567, 672
          %v1652 = vadd.s32 %v1567, 680
          %v1653 = vadd.s32 %v1567, 688
          %v1654 = vadd.s32 %v1567, 696
          %v1655 = vadd.s32 %v1567, 704
          %v1656 = vadd.s32 %v1567, 712
          %v1657 = vadd.s32 %v1567, 720
          %v1658 = vadd.s32 %v1567, 728
          %v1659 = vadd.s32 %v1567, 736
          %v1660 = vadd.s32 %v1567, 744
          %v1661 = vadd.s32 %v1567, 752
          %v1662 = vadd.s32 %v1567, 760
          %v1663 = vadd.s32 %v1567, 768
          %v1664 = vadd.s32 %v1567, 776
          %v1665 = vadd.s32 %v1567, 784
          %v1666 = vadd.s32 %v1567, 792
          %v1667 = vadd.s32 %v1567, 800
          %v1668 = vadd.s32 %v1567, 808
          %v1669 = vadd.s32 %v1567, 816
          %v1670 = vadd.s32 %v1567, 824
          %v1671 = vadd.s32 %v1567, 832
          %v1672 = vadd.s32 %v1567, 840
          %v1673 = vadd.s32 %v1567, 848
          %v1674 = vadd.s32 %v1567, 856
          %v1675 = vadd.s32 %v1567, 864
          %v1676 = vadd.s32 %v1567, 872
          %v1677 = vadd.s32 %v1567, 880
          %v1678 = vadd.s32 %v1567, 888
          %v1679 = vadd.s32 %v1567, 896
          %v1680 = vadd.s32 %v1567, 904
          %v1681 = vadd.s32 %v1567, 912
          %v1682 = vadd.s32 %v1567, 920
          %v1683 = vadd.s32 %v1567, 928
          %v1684 = vadd.s32 %v1567, 936
          %v1685 = vadd.s32 %v1567, 944
          %v1686 = vadd.s32 %v1567, 952
          %v1687 = vadd.s32 %v1567, 960
          %v1688 = vadd.s32 %v1567, 968
          %v1689 = vadd.s32 %v1567, 976
          %v1690 = vadd.s32 %v1567, 984
          %v1691 = vadd.s32 %v1567, 992
          %v1692 = vadd.s32 %v1567, 1000
          %v1693 = vadd.s32 %v1567, 1008
          %v1694 = vadd.s32 %v1567, 1016
          %v1695 = vadd.s32 %v1567, 1024
          %v1696 = vadd.s32 %v1567, 1032
          %v1697 = vadd.s32 %v1567, 1040
          %v1698 = vadd.s32 %v1567, 1048
          %v1699 = vadd.s32 %v1567, 1056
          %v1700 = vadd.s32 %v1567, 1064
          %v1701 = vadd.s32 %v1567, 1072
          %v1702 = vadd.s32 %v1567, 1080
          %v1703 = vadd.s32 %v1567, 1088
          %v1704 = vadd.s32 %v1567, 1096
          %v1705 = vadd.s32 %v1567, 1104
          %v1706 = vadd.s32 %v1567, 1112
          %v1707 = vadd.s32 %v1567, 1120
          %v1708 = vadd.s32 %v1567, 1128
          %v1709 = vadd.s32 %v1567, 1136
          %v1710 = vadd.s32 %v1567, 1144
          %v1711 = vadd.s32 %v1567, 1152
          %v1712 = vadd.s32 %v1567, 1160
          %v1713 = vadd.s32 %v1567, 1168
          %v1714 = vadd.s32 %v1567, 1176
          %v1715 = vadd.s32 %v1567, 1184
          %v1716 = vadd.s32 %v1567, 1192
          %v1717 = vadd.s32 %v1567, 1200
          %v1718 = vadd.s32 %v1567, 1208
          %v1719 = vadd.s32 %v1567, 1216
          %v1720 = vadd.s32 %v1567, 1224
          %v1721 = vadd.s32 %v1567, 1232
          %v1722 = vadd.s32 %v1567, 1240
          %v1723 = vadd.s32 %v1567, 1248
          %v1724 = vadd.s32 %v1567, 1256
          %v1725 = vadd.s32 %v1567, 1264
          %v1726 = vadd.s32 %v1567, 1272
          %v1727 = vadd.s32 %v1567, 1280
          %v1728 = vadd.s32 %v1567, 1288
          %v1729 = vadd.s32 %v1567, 1296
          %v1730 = vadd.s32 %v1567, 1304
          %v1731 = vadd.s32 %v1567, 1312
          %v1732 = vadd.s32 %v1567, 1320
          %v1733 = vadd.s32 %v1567, 1328
          %v1734 = vadd.s32 %v1567, 1336
          %v1735 = vadd.s32 %v1567, 1344
          %v1736 = vadd.s32 %v1567, 1352
          %v1737 = vadd.s32 %v1567, 1360
          %v1738 = vadd.s32 %v1567, 1368
          %v1739 = vadd.s32 %v1567, 1376
          %v1740 = vadd.s32 %v1567, 1384
          %v1741 = vadd.s32 %v1567, 1392
          %v1742 = vadd.s32 %v1567, 1400
          %v1743 = vadd.s32 %v1567, 1408
          %v1744 = vadd.s32 %v1567, 1416
          %v1745 = vadd.s32 %v1567, 1424
          %v1746 = vadd.s32 %v1567, 1432
          %v1747 = vadd.s32 %v1567, 1440
          %v1748 = vadd.s32 %v1567, 1448
          %v1749 = vadd.s32 %v1567, 1456
          %v1750 = vadd.s32 %v1567, 1464
          %v1751 = vadd.s32 %v1567, 1472
          %v1752 = vadd.s32 %v1567, 1480
          %v1753 = vadd.s32 %v1567, 1488
          %v1754 = vadd.s32 %v1567, 1496
          %v1755 = vadd.s32 %v1567, 1504
          %v1756 = vadd.s32 %v1567, 1512
          %v1757 = vadd.s32 %v1567, 1520
          %v1758 = vadd.s32 %v1567, 1528
          %v1759 = vadd.s32 %v1567, 1536
          %v1760 = vadd.s32 %v1567, 1544
          %v1761 = vadd.s32 %v1567, 1552
          %v1762 = vadd.s32 %v1567, 1560
          %v1763 = vadd.s32 %v1567, 1568
          %v1764 = vadd.s32 %v1567, 1576
          %v1765 = vadd.s32 %v1567, 1584
          %v1766 = vadd.s32 %v1567, 1592
          %v1767 = vadd.s32 %v1567, 1600
          %v1768 = vadd.s32 %v1567, 1608
          %v1769 = vadd.s32 %v1567, 1616
          %v1770 = vadd.s32 %v1567, 1624
          %v1771 = vadd.s32 %v1567, 1632
          %v1772 = vadd.s32 %v1567, 1640
          %v1773 = vadd.s32 %v1567, 1648
          %v1774 = vadd.s32 %v1567, 1656
          %v1775 = vadd.s32 %v1567, 1664
          %v1776 = vadd.s32 %v1567, 1672
          %v1777 = vadd.s32 %v1567, 1680
          %v1778 = vadd.s32 %v1567, 1688
          %v1779 = vadd.s32 %v1567, 1696
          %v1780 = vadd.s32 %v1567, 1704
          %v1781 = vadd.s32 %v1567, 1712
          %v1782 = vadd.s32 %v1567, 1720
          %v1783 = vadd.s32 %v1567, 1728
          %v1784 = vadd.s32 %v1567, 1736
          %v1785 = vadd.s32 %v1567, 1744
          %v1786 = vadd.s32 %v1567, 1752
          %v1787 = vadd.s32 %v1567, 1760
          %v1788 = vadd.s32 %v1567, 1768
          %v1789 = vadd.s32 %v1567, 1776
          %v1790 = vadd.s32 %v1567, 1784
          %v1791 = vadd.s32 %v1567, 1792
          %v1792 = vadd.s32 %v1567, 1800
          %v1793 = vadd.s32 %v1567, 1808
          %v1794 = vadd.s32 %v1567, 1816
          %v1795 = vadd.s32 %v1567, 1824
          %v1796 = vadd.s32 %v1567, 1832
          %v1797 = vadd.s32 %v1567, 1840
          %v1798 = vadd.s32 %v1567, 1848
          %v1799 = vadd.s32 %v1567, 1856
          %v1800 = vadd.s32 %v1567, 1864
          %v1801 = vadd.s32 %v1567, 1872
          %v1802 = vadd.s32 %v1567, 1880
          %v1803 = vadd.s32 %v1567, 1888
          %v1804 = vadd.s32 %v1567, 1896
          %v1805 = vadd.s32 %v1567, 1904
          %v1806 = vadd.s32 %v1567, 1912
          %v1807 = vadd.s32 %v1567, 1920
          %v1808 = vadd.s32 %v1567, 1928
          %v1809 = vadd.s32 %v1567, 1936
          %v1810 = vadd.s32 %v1567, 1944
          %v1811 = vadd.s32 %v1567, 1952
          %v1812 = vadd.s32 %v1567, 1960
          %v1813 = vadd.s32 %v1567, 1968
          %v1814 = vadd.s32 %v1567, 1976
          %v1815 = vadd.s32 %v1567, 1984
          %v1816 = vadd.s32 %v1567, 1992
          %v1817 = vadd.s32 %v1567, 2000
          %v1818 = vadd.s32 %v1567, 2008
          %v1819 = vadd.s32 %v1567, 2016
          %v1820 = vadd.s32 %v1567, 2024
          %v1821 = vadd.s32 %v1567, 2032
          %v1822 = vadd.s32 %v1567, 2040
          %v1823 = vstv %s1565
          %v1824 = vadd.s32 %v1823, %v1567
          %v1825 = vadd.s32 %v1823, %v1568
          %v1826 = vadd.s32 %v1823, %v1569
          %v1827 = vadd.s32 %v1823, %v1570
          %v1828 = vadd.s32 %v1823, %v1571
          %v1829 = vadd.s32 %v1823, %v1572
          %v1830 = vadd.s32 %v1823, %v1573
          %v1831 = vadd.s32 %v1823, %v1574
          %v1832 = vadd.s32 %v1823, %v1575
          %v1833 = vadd.s32 %v1823, %v1576
          %v1834 = vadd.s32 %v1823, %v1577
          %v1835 = vadd.s32 %v1823, %v1578
          %v1836 = vadd.s32 %v1823, %v1579
          %v1837 = vadd.s32 %v1823, %v1580
          %v1838 = vadd.s32 %v1823, %v1581
          %v1839 = vadd.s32 %v1823, %v1582
          %v1840 = vadd.s32 %v1823, %v1583
          %v1841 = vadd.s32 %v1823, %v1584
          %v1842 = vadd.s32 %v1823, %v1585
          %v1843 = vadd.s32 %v1823, %v1586
          %v1844 = vadd.s32 %v1823, %v1587
          %v1845 = vadd.s32 %v1823, %v1588
          %v1846 = vadd.s32 %v1823, %v1589
          %v1847 = vadd.s32 %v1823, %v1590
          %v1848 = vadd.s32 %v1823, %v1591
          %v1849 = vadd.s32 %v1823, %v1592
          %v1850 = vadd.s32 %v1823, %v1593
          %v1851 = vadd.s32 %v1823, %v1594
          %v1852 = vadd.s32 %v1823, %v1595
          %v1853 = vadd.s32 %v1823, %v1596
          %v1854 = vadd.s32 %v1823, %v1597
          %v1855 = vadd.s32 %v1823, %v1598
          %v1856 = vadd.s32 %v1823, %v1599
          %v1857 = vadd.s32 %v1823, %v1600
          %v1858 = vadd.s32 %v1823, %v1601
          %v1859 = vadd.s32 %v1823, %v1602
          %v1860 = vadd.s32 %v1823, %v1603
          %v1861 = vadd.s32 %v1823, %v1604
          %v1862 = vadd.s32 %v1823, %v1605
          %v1863 = vadd.s32 %v1823, %v1606
          %v1864 = vadd.s32 %v1823, %v1607
          %v1865 = vadd.s32 %v1823, %v1608
          %v1866 = vadd.s32 %v1823, %v1609
          %v1867 = vadd.s32 %v1823, %v1610
          %v1868 = vadd.s32 %v1823, %v1611
          %v1869 = vadd.s32 %v1823, %v1612
          %v1870 = vadd.s32 %v1823, %v1613
          %v1871 = vadd.s32 %v1823, %v1614
          %v1872 = vadd.s32 %v1823, %v1615
          %v1873 = vadd.s32 %v1823, %v1616
          %v1874 = vadd.s32 %v1823, %v1617
          %v1875 = vadd.s32 %v1823, %v1618
          %v1876 = vadd.s32 %v1823, %v1619
          %v1877 = vadd.s32 %v1823, %v1620
          %v1878 = vadd.s32 %v1823, %v1621
          %v1879 = vadd.s32 %v1823, %v1622
          %v1880 = vadd.s32 %v1823, %v1623
          %v1881 = vadd.s32 %v1823, %v1624
          %v1882 = vadd.s32 %v1823, %v1625
          %v1883 = vadd.s32 %v1823, %v1626
          %v1884 = vadd.s32 %v1823, %v1627
          %v1885 = vadd.s32 %v1823, %v1628
          %v1886 = vadd.s32 %v1823, %v1629
          %v1887 = vadd.s32 %v1823, %v1630
          %v1888 = vadd.s32 %v1823, %v1631
          %v1889 = vadd.s32 %v1823, %v1632
          %v1890 = vadd.s32 %v1823, %v1633
          %v1891 = vadd.s32 %v1823, %v1634
          %v1892 = vadd.s32 %v1823, %v1635
          %v1893 = vadd.s32 %v1823, %v1636
          %v1894 = vadd.s32 %v1823, %v1637
          %v1895 = vadd.s32 %v1823, %v1638
          %v1896 = vadd.s32 %v1823, %v1639
          %v1897 = vadd.s32 %v1823, %v1640
          %v1898 = vadd.s32 %v1823, %v1641
          %v1899 = vadd.s32 %v1823, %v1642
          %v1900 = vadd.s32 %v1823, %v1643
          %v1901 = vadd.s32 %v1823, %v1644
          %v1902 = vadd.s32 %v1823, %v1645
          %v1903 = vadd.s32 %v1823, %v1646
          %v1904 = vadd.s32 %v1823, %v1647
          %v1905 = vadd.s32 %v1823, %v1648
          %v1906 = vadd.s32 %v1823, %v1649
          %v1907 = vadd.s32 %v1823, %v1650
          %v1908 = vadd.s32 %v1823, %v1651
          %v1909 = vadd.s32 %v1823, %v1652
          %v1910 = vadd.s32 %v1823, %v1653
          %v1911 = vadd.s32 %v1823, %v1654
          %v1912 = vadd.s32 %v1823, %v1655
          %v1913 = vadd.s32 %v1823, %v1656
          %v1914 = vadd.s32 %v1823, %v1657
          %v1915 = vadd.s32 %v1823, %v1658
          %v1916 = vadd.s32 %v1823, %v1659
          %v1917 = vadd.s32 %v1823, %v1660
          %v1918 = vadd.s32 %v1823, %v1661
          %v1919 = vadd.s32 %v1823, %v1662
          %v1920 = vadd.s32 %v1823, %v1663
          %v1921 = vadd.s32 %v1823, %v1664
          %v1922 = vadd.s32 %v1823, %v1665
          %v1923 = vadd.s32 %v1823, %v1666
          %v1924 = vadd.s32 %v1823, %v1667
          %v1925 = vadd.s32 %v1823, %v1668
          %v1926 = vadd.s32 %v1823, %v1669
          %v1927 = vadd.s32 %v1823, %v1670
          %v1928 = vadd.s32 %v1823, %v1671
          %v1929 = vadd.s32 %v1823, %v1672
          %v1930 = vadd.s32 %v1823, %v1673
          %v1931 = vadd.s32 %v1823, %v1674
          %v1932 = vadd.s32 %v1823, %v1675
          %v1933 = vadd.s32 %v1823, %v1676
          %v1934 = vadd.s32 %v1823, %v1677
          %v1935 = vadd.s32 %v1823, %v1678
          %v1936 = vadd.s32 %v1823, %v1679
          %v1937 = vadd.s32 %v1823, %v1680
          %v1938 = vadd.s32 %v1823, %v1681
          %v1939 = vadd.s32 %v1823, %v1682
          %v1940 = vadd.s32 %v1823, %v1683
          %v1941 = vadd.s32 %v1823, %v1684
          %v1942 = vadd.s32 %v1823, %v1685
          %v1943 = vadd.s32 %v1823, %v1686
          %v1944 = vadd.s32 %v1823, %v1687
          %v1945 = vadd.s32 %v1823, %v1688
          %v1946 = vadd.s32 %v1823, %v1689
          %v1947 = vadd.s32 %v1823, %v1690
          %v1948 = vadd.s32 %v1823, %v1691
          %v1949 = vadd.s32 %v1823, %v1692
          %v1950 = vadd.s32 %v1823, %v1693
          %v1951 = vadd.s32 %v1823, %v1694
          %v1952 = vadd.s32 %v1823, %v1695
          %v1953 = vadd.s32 %v1823, %v1696
          %v1954 = vadd.s32 %v1823, %v1697
          %v1955 = vadd.s32 %v1823, %v1698
          %v1956 = vadd.s32 %v1823, %v1699
          %v1957 = vadd.s32 %v1823, %v1700
          %v1958 = vadd.s32 %v1823, %v1701
          %v1959 = vadd.s32 %v1823, %v1702
          %v1960 = vadd.s32 %v1823, %v1703
          %v1961 = vadd.s32 %v1823, %v1704
          %v1962 = vadd.s32 %v1823, %v1705
          %v1963 = vadd.s32 %v1823, %v1706
          %v1964 = vadd.s32 %v1823, %v1707
          %v1965 = vadd.s32 %v1823, %v1708
          %v1966 = vadd.s32 %v1823, %v1709
          %v1967 = vadd.s32 %v1823, %v1710
          %v1968 = vadd.s32 %v1823, %v1711
          %v1969 = vadd.s32 %v1823, %v1712
          %v1970 = vadd.s32 %v1823, %v1713
          %v1971 = vadd.s32 %v1823, %v1714
          %v1972 = vadd.s32 %v1823, %v1715
          %v1973 = vadd.s32 %v1823, %v1716
          %v1974 = vadd.s32 %v1823, %v1717
          %v1975 = vadd.s32 %v1823, %v1718
          %v1976 = vadd.s32 %v1823, %v1719
          %v1977 = vadd.s32 %v1823, %v1720
          %v1978 = vadd.s32 %v1823, %v1721
          %v1979 = vadd.s32 %v1823, %v1722
          %v1980 = vadd.s32 %v1823, %v1723
          %v1981 = vadd.s32 %v1823, %v1724
          %v1982 = vadd.s32 %v1823, %v1725
          %v1983 = vadd.s32 %v1823, %v1726
          %v1984 = vadd.s32 %v1823, %v1727
          %v1985 = vadd.s32 %v1823, %v1728
          %v1986 = vadd.s32 %v1823, %v1729
          %v1987 = vadd.s32 %v1823, %v1730
          %v1988 = vadd.s32 %v1823, %v1731
          %v1989 = vadd.s32 %v1823, %v1732
          %v1990 = vadd.s32 %v1823, %v1733
          %v1991 = vadd.s32 %v1823, %v1734
          %v1992 = vadd.s32 %v1823, %v1735
          %v1993 = vadd.s32 %v1823, %v1736
          %v1994 = vadd.s32 %v1823, %v1737
          %v1995 = vadd.s32 %v1823, %v1738
          %v1996 = vadd.s32 %v1823, %v1739
          %v1997 = vadd.s32 %v1823, %v1740
          %v1998 = vadd.s32 %v1823, %v1741
          %v1999 = vadd.s32 %v1823, %v1742
          %v2000 = vadd.s32 %v1823, %v1743
          %v2001 = vadd.s32 %v1823, %v1744
          %v2002 = vadd.s32 %v1823, %v1745
          %v2003 = vadd.s32 %v1823, %v1746
          %v2004 = vadd.s32 %v1823, %v1747
          %v2005 = vadd.s32 %v1823, %v1748
          %v2006 = vadd.s32 %v1823, %v1749
          %v2007 = vadd.s32 %v1823, %v1750
          %v2008 = vadd.s32 %v1823, %v1751
          %v2009 = vadd.s32 %v1823, %v1752
          %v2010 = vadd.s32 %v1823, %v1753
          %v2011 = vadd.s32 %v1823, %v1754
          %v2012 = vadd.s32 %v1823, %v1755
          %v2013 = vadd.s32 %v1823, %v1756
          %v2014 = vadd.s32 %v1823, %v1757
          %v2015 = vadd.s32 %v1823, %v1758
          %v2016 = vadd.s32 %v1823, %v1759
          %v2017 = vadd.s32 %v1823, %v1760
          %v2018 = vadd.s32 %v1823, %v1761
          %v2019 = vadd.s32 %v1823, %v1762
          %v2020 = vadd.s32 %v1823, %v1763
          %v2021 = vadd.s32 %v1823, %v1764
          %v2022 = vadd.s32 %v1823, %v1765
          %v2023 = vadd.s32 %v1823, %v1766
          %v2024 = vadd.s32 %v1823, %v1767
          %v2025 = vadd.s32 %v1823, %v1768
          %v2026 = vadd.s32 %v1823, %v1769
          %v2027 = vadd.s32 %v1823, %v1770
          %v2028 = vadd.s32 %v1823, %v1771
          %v2029 = vadd.s32 %v1823, %v1772
          %v2030 = vadd.s32 %v1823, %v1773
          %v2031 = vadd.s32 %v1823, %v1774
          %v2032 = vadd.s32 %v1823, %v1775
          %v2033 = vadd.s32 %v1823, %v1776
          %v2034 = vadd.s32 %v1823, %v1777
          %v2035 = vadd.s32 %v1823, %v1778
          %v2036 = vadd.s32 %v1823, %v1779
          %v2037 = vadd.s32 %v1823, %v1780
          %v2038 = vadd.s32 %v1823, %v1781
          %v2039 = vadd.s32 %v1823, %v1782
          %v2040 = vadd.s32 %v1823, %v1783
          %v2041 = vadd.s32 %v1823, %v1784
          %v2042 = vadd.s32 %v1823, %v1785
          %v2043 = vadd.s32 %v1823, %v1786
          %v2044 = vadd.s32 %v1823, %v1787
          %v2045 = vadd.s32 %v1823, %v1788
          %v2046 = vadd.s32 %v1823, %v1789
          %v2047 = vadd.s32 %v1823, %v1790
          %v2048 = vadd.s32 %v1823, %v1791
          %v2049 = vadd.s32 %v1823, %v1792
          %v2050 = vadd.s32 %v1823, %v1793
          %v2051 = vadd.s32 %v1823, %v1794
          %v2052 = vadd.s32 %v1823, %v1795
          %v2053 = vadd.s32 %v1823, %v1796
          %v2054 = vadd.s32 %v1823, %v1797
          %v2055 = vadd.s32 %v1823, %v1798
          %v2056 = vadd.s32 %v1823, %v1799
          %v2057 = vadd.s32 %v1823, %v1800
          %v2058 = vadd.s32 %v1823, %v1801
          %v2059 = vadd.s32 %v1823, %v1802
          %v2060 = vadd.s32 %v1823, %v1803
          %v2061 = vadd.s32 %v1823, %v1804
          %v2062 = vadd.s32 %v1823, %v1805
          %v2063 = vadd.s32 %v1823, %v1806
          %v2064 = vadd.s32 %v1823, %v1807
          %v2065 = vadd.s32 %v1823, %v1808
          %v2066 = vadd.s32 %v1823, %v1809
          %v2067 = vadd.s32 %v1823, %v1810
          %v2068 = vadd.s32 %v1823, %v1811
          %v2069 = vadd.s32 %v1823, %v1812
          %v2070 = vadd.s32 %v1823, %v1813
          %v2071 = vadd.s32 %v1823, %v1814
          %v2072 = vadd.s32 %v1823, %v1815
          %v2073 = vadd.s32 %v1823, %v1816
          %v2074 = vadd.s32 %v1823, %v1817
          %v2075 = vadd.s32 %v1823, %v1818
          %v2076 = vadd.s32 %v1823, %v1819
          %v2077 = vadd.s32 %v1823, %v1820
          %v2078 = vadd.s32 %v1823, %v1821
          %v2079 = vadd.s32 %v1823, %v1822
          %vm2080 = vcmp.lt.s32.totalorder %v1824, 4955
          %vm2081 = vcmp.lt.s32.totalorder %v1825, 4955
          %vm2082 = vcmp.lt.s32.totalorder %v1826, 4955
          %vm2083 = vcmp.lt.s32.totalorder %v1827, 4955
          %vm2084 = vcmp.lt.s32.totalorder %v1828, 4955
          %vm2085 = vcmp.lt.s32.totalorder %v1829, 4955
          %vm2086 = vcmp.lt.s32.totalorder %v1830, 4955
          %vm2087 = vcmp.lt.s32.totalorder %v1831, 4955
          %vm2088 = vcmp.lt.s32.totalorder %v1832, 4955
          %vm2089 = vcmp.lt.s32.totalorder %v1833, 4955
          %vm2090 = vcmp.lt.s32.totalorder %v1834, 4955
          %vm2091 = vcmp.lt.s32.totalorder %v1835, 4955
          %vm2092 = vcmp.lt.s32.totalorder %v1836, 4955
          %vm2093 = vcmp.lt.s32.totalorder %v1837, 4955
          %vm2094 = vcmp.lt.s32.totalorder %v1838, 4955
          %vm2095 = vcmp.lt.s32.totalorder %v1839, 4955
          %vm2096 = vcmp.lt.s32.totalorder %v1840, 4955
          %vm2097 = vcmp.lt.s32.totalorder %v1841, 4955
          %vm2098 = vcmp.lt.s32.totalorder %v1842, 4955
          %vm2099 = vcmp.lt.s32.totalorder %v1843, 4955
          %vm2100 = vcmp.lt.s32.totalorder %v1844, 4955
          %vm2101 = vcmp.lt.s32.totalorder %v1845, 4955
          %vm2102 = vcmp.lt.s32.totalorder %v1846, 4955
          %vm2103 = vcmp.lt.s32.totalorder %v1847, 4955
          %vm2104 = vcmp.lt.s32.totalorder %v1848, 4955
          %vm2105 = vcmp.lt.s32.totalorder %v1849, 4955
          %vm2106 = vcmp.lt.s32.totalorder %v1850, 4955
          %vm2107 = vcmp.lt.s32.totalorder %v1851, 4955
          %vm2108 = vcmp.lt.s32.totalorder %v1852, 4955
          %vm2109 = vcmp.lt.s32.totalorder %v1853, 4955
          %vm2110 = vcmp.lt.s32.totalorder %v1854, 4955
          %vm2111 = vcmp.lt.s32.totalorder %v1855, 4955
          %vm2112 = vcmp.lt.s32.totalorder %v1856, 4955
          %vm2113 = vcmp.lt.s32.totalorder %v1857, 4955
          %vm2114 = vcmp.lt.s32.totalorder %v1858, 4955
          %vm2115 = vcmp.lt.s32.totalorder %v1859, 4955
          %vm2116 = vcmp.lt.s32.totalorder %v1860, 4955
          %vm2117 = vcmp.lt.s32.totalorder %v1861, 4955
          %vm2118 = vcmp.lt.s32.totalorder %v1862, 4955
          %vm2119 = vcmp.lt.s32.totalorder %v1863, 4955
          %vm2120 = vcmp.lt.s32.totalorder %v1864, 4955
          %vm2121 = vcmp.lt.s32.totalorder %v1865, 4955
          %vm2122 = vcmp.lt.s32.totalorder %v1866, 4955
          %vm2123 = vcmp.lt.s32.totalorder %v1867, 4955
          %vm2124 = vcmp.lt.s32.totalorder %v1868, 4955
          %vm2125 = vcmp.lt.s32.totalorder %v1869, 4955
          %vm2126 = vcmp.lt.s32.totalorder %v1870, 4955
          %vm2127 = vcmp.lt.s32.totalorder %v1871, 4955
          %vm2128 = vcmp.lt.s32.totalorder %v1872, 4955
          %vm2129 = vcmp.lt.s32.totalorder %v1873, 4955
          %vm2130 = vcmp.lt.s32.totalorder %v1874, 4955
          %vm2131 = vcmp.lt.s32.totalorder %v1875, 4955
          %vm2132 = vcmp.lt.s32.totalorder %v1876, 4955
          %vm2133 = vcmp.lt.s32.totalorder %v1877, 4955
          %vm2134 = vcmp.lt.s32.totalorder %v1878, 4955
          %vm2135 = vcmp.lt.s32.totalorder %v1879, 4955
          %vm2136 = vcmp.lt.s32.totalorder %v1880, 4955
          %vm2137 = vcmp.lt.s32.totalorder %v1881, 4955
          %vm2138 = vcmp.lt.s32.totalorder %v1882, 4955
          %vm2139 = vcmp.lt.s32.totalorder %v1883, 4955
          %vm2140 = vcmp.lt.s32.totalorder %v1884, 4955
          %vm2141 = vcmp.lt.s32.totalorder %v1885, 4955
          %vm2142 = vcmp.lt.s32.totalorder %v1886, 4955
          %vm2143 = vcmp.lt.s32.totalorder %v1887, 4955
          %vm2144 = vcmp.lt.s32.totalorder %v1888, 4955
          %vm2145 = vcmp.lt.s32.totalorder %v1889, 4955
          %vm2146 = vcmp.lt.s32.totalorder %v1890, 4955
          %vm2147 = vcmp.lt.s32.totalorder %v1891, 4955
          %vm2148 = vcmp.lt.s32.totalorder %v1892, 4955
          %vm2149 = vcmp.lt.s32.totalorder %v1893, 4955
          %vm2150 = vcmp.lt.s32.totalorder %v1894, 4955
          %vm2151 = vcmp.lt.s32.totalorder %v1895, 4955
          %vm2152 = vcmp.lt.s32.totalorder %v1896, 4955
          %vm2153 = vcmp.lt.s32.totalorder %v1897, 4955
          %vm2154 = vcmp.lt.s32.totalorder %v1898, 4955
          %vm2155 = vcmp.lt.s32.totalorder %v1899, 4955
          %vm2156 = vcmp.lt.s32.totalorder %v1900, 4955
          %vm2157 = vcmp.lt.s32.totalorder %v1901, 4955
          %vm2158 = vcmp.lt.s32.totalorder %v1902, 4955
          %vm2159 = vcmp.lt.s32.totalorder %v1903, 4955
          %vm2160 = vcmp.lt.s32.totalorder %v1904, 4955
          %vm2161 = vcmp.lt.s32.totalorder %v1905, 4955
          %vm2162 = vcmp.lt.s32.totalorder %v1906, 4955
          %vm2163 = vcmp.lt.s32.totalorder %v1907, 4955
          %vm2164 = vcmp.lt.s32.totalorder %v1908, 4955
          %vm2165 = vcmp.lt.s32.totalorder %v1909, 4955
          %vm2166 = vcmp.lt.s32.totalorder %v1910, 4955
          %vm2167 = vcmp.lt.s32.totalorder %v1911, 4955
          %vm2168 = vcmp.lt.s32.totalorder %v1912, 4955
          %vm2169 = vcmp.lt.s32.totalorder %v1913, 4955
          %vm2170 = vcmp.lt.s32.totalorder %v1914, 4955
          %vm2171 = vcmp.lt.s32.totalorder %v1915, 4955
          %vm2172 = vcmp.lt.s32.totalorder %v1916, 4955
          %vm2173 = vcmp.lt.s32.totalorder %v1917, 4955
          %vm2174 = vcmp.lt.s32.totalorder %v1918, 4955
          %vm2175 = vcmp.lt.s32.totalorder %v1919, 4955
          %vm2176 = vcmp.lt.s32.totalorder %v1920, 4955
          %vm2177 = vcmp.lt.s32.totalorder %v1921, 4955
          %vm2178 = vcmp.lt.s32.totalorder %v1922, 4955
          %vm2179 = vcmp.lt.s32.totalorder %v1923, 4955
          %vm2180 = vcmp.lt.s32.totalorder %v1924, 4955
          %vm2181 = vcmp.lt.s32.totalorder %v1925, 4955
          %vm2182 = vcmp.lt.s32.totalorder %v1926, 4955
          %vm2183 = vcmp.lt.s32.totalorder %v1927, 4955
          %vm2184 = vcmp.lt.s32.totalorder %v1928, 4955
          %vm2185 = vcmp.lt.s32.totalorder %v1929, 4955
          %vm2186 = vcmp.lt.s32.totalorder %v1930, 4955
          %vm2187 = vcmp.lt.s32.totalorder %v1931, 4955
          %vm2188 = vcmp.lt.s32.totalorder %v1932, 4955
          %vm2189 = vcmp.lt.s32.totalorder %v1933, 4955
          %vm2190 = vcmp.lt.s32.totalorder %v1934, 4955
          %vm2191 = vcmp.lt.s32.totalorder %v1935, 4955
          %vm2192 = vcmp.lt.s32.totalorder %v1936, 4955
          %vm2193 = vcmp.lt.s32.totalorder %v1937, 4955
          %vm2194 = vcmp.lt.s32.totalorder %v1938, 4955
          %vm2195 = vcmp.lt.s32.totalorder %v1939, 4955
          %vm2196 = vcmp.lt.s32.totalorder %v1940, 4955
          %vm2197 = vcmp.lt.s32.totalorder %v1941, 4955
          %vm2198 = vcmp.lt.s32.totalorder %v1942, 4955
          %vm2199 = vcmp.lt.s32.totalorder %v1943, 4955
          %vm2200 = vcmp.lt.s32.totalorder %v1944, 4955
          %vm2201 = vcmp.lt.s32.totalorder %v1945, 4955
          %vm2202 = vcmp.lt.s32.totalorder %v1946, 4955
          %vm2203 = vcmp.lt.s32.totalorder %v1947, 4955
          %vm2204 = vcmp.lt.s32.totalorder %v1948, 4955
          %vm2205 = vcmp.lt.s32.totalorder %v1949, 4955
          %vm2206 = vcmp.lt.s32.totalorder %v1950, 4955
          %vm2207 = vcmp.lt.s32.totalorder %v1951, 4955
          %vm2208 = vcmp.lt.s32.totalorder %v1952, 4955
          %vm2209 = vcmp.lt.s32.totalorder %v1953, 4955
          %vm2210 = vcmp.lt.s32.totalorder %v1954, 4955
          %vm2211 = vcmp.lt.s32.totalorder %v1955, 4955
          %vm2212 = vcmp.lt.s32.totalorder %v1956, 4955
          %vm2213 = vcmp.lt.s32.totalorder %v1957, 4955
          %vm2214 = vcmp.lt.s32.totalorder %v1958, 4955
          %vm2215 = vcmp.lt.s32.totalorder %v1959, 4955
          %vm2216 = vcmp.lt.s32.totalorder %v1960, 4955
          %vm2217 = vcmp.lt.s32.totalorder %v1961, 4955
          %vm2218 = vcmp.lt.s32.totalorder %v1962, 4955
          %vm2219 = vcmp.lt.s32.totalorder %v1963, 4955
          %vm2220 = vcmp.lt.s32.totalorder %v1964, 4955
          %vm2221 = vcmp.lt.s32.totalorder %v1965, 4955
          %vm2222 = vcmp.lt.s32.totalorder %v1966, 4955
          %vm2223 = vcmp.lt.s32.totalorder %v1967, 4955
          %vm2224 = vcmp.lt.s32.totalorder %v1968, 4955
          %vm2225 = vcmp.lt.s32.totalorder %v1969, 4955
          %vm2226 = vcmp.lt.s32.totalorder %v1970, 4955
          %vm2227 = vcmp.lt.s32.totalorder %v1971, 4955
          %vm2228 = vcmp.lt.s32.totalorder %v1972, 4955
          %vm2229 = vcmp.lt.s32.totalorder %v1973, 4955
          %vm2230 = vcmp.lt.s32.totalorder %v1974, 4955
          %vm2231 = vcmp.lt.s32.totalorder %v1975, 4955
          %vm2232 = vcmp.lt.s32.totalorder %v1976, 4955
          %vm2233 = vcmp.lt.s32.totalorder %v1977, 4955
          %vm2234 = vcmp.lt.s32.totalorder %v1978, 4955
          %vm2235 = vcmp.lt.s32.totalorder %v1979, 4955
          %vm2236 = vcmp.lt.s32.totalorder %v1980, 4955
          %vm2237 = vcmp.lt.s32.totalorder %v1981, 4955
          %vm2238 = vcmp.lt.s32.totalorder %v1982, 4955
          %vm2239 = vcmp.lt.s32.totalorder %v1983, 4955
          %vm2240 = vcmp.lt.s32.totalorder %v1984, 4955
          %vm2241 = vcmp.lt.s32.totalorder %v1985, 4955
          %vm2242 = vcmp.lt.s32.totalorder %v1986, 4955
          %vm2243 = vcmp.lt.s32.totalorder %v1987, 4955
          %vm2244 = vcmp.lt.s32.totalorder %v1988, 4955
          %vm2245 = vcmp.lt.s32.totalorder %v1989, 4955
          %vm2246 = vcmp.lt.s32.totalorder %v1990, 4955
          %vm2247 = vcmp.lt.s32.totalorder %v1991, 4955
          %vm2248 = vcmp.lt.s32.totalorder %v1992, 4955
          %vm2249 = vcmp.lt.s32.totalorder %v1993, 4955
          %vm2250 = vcmp.lt.s32.totalorder %v1994, 4955
          %vm2251 = vcmp.lt.s32.totalorder %v1995, 4955
          %vm2252 = vcmp.lt.s32.totalorder %v1996, 4955
          %vm2253 = vcmp.lt.s32.totalorder %v1997, 4955
          %vm2254 = vcmp.lt.s32.totalorder %v1998, 4955
          %vm2255 = vcmp.lt.s32.totalorder %v1999, 4955
          %vm2256 = vcmp.lt.s32.totalorder %v2000, 4955
          %vm2257 = vcmp.lt.s32.totalorder %v2001, 4955
          %vm2258 = vcmp.lt.s32.totalorder %v2002, 4955
          %vm2259 = vcmp.lt.s32.totalorder %v2003, 4955
          %vm2260 = vcmp.lt.s32.totalorder %v2004, 4955
          %vm2261 = vcmp.lt.s32.totalorder %v2005, 4955
          %vm2262 = vcmp.lt.s32.totalorder %v2006, 4955
          %vm2263 = vcmp.lt.s32.totalorder %v2007, 4955
          %vm2264 = vcmp.lt.s32.totalorder %v2008, 4955
          %vm2265 = vcmp.lt.s32.totalorder %v2009, 4955
          %vm2266 = vcmp.lt.s32.totalorder %v2010, 4955
          %vm2267 = vcmp.lt.s32.totalorder %v2011, 4955
          %vm2268 = vcmp.lt.s32.totalorder %v2012, 4955
          %vm2269 = vcmp.lt.s32.totalorder %v2013, 4955
          %vm2270 = vcmp.lt.s32.totalorder %v2014, 4955
          %vm2271 = vcmp.lt.s32.totalorder %v2015, 4955
          %vm2272 = vcmp.lt.s32.totalorder %v2016, 4955
          %vm2273 = vcmp.lt.s32.totalorder %v2017, 4955
          %vm2274 = vcmp.lt.s32.totalorder %v2018, 4955
          %vm2275 = vcmp.lt.s32.totalorder %v2019, 4955
          %vm2276 = vcmp.lt.s32.totalorder %v2020, 4955
          %vm2277 = vcmp.lt.s32.totalorder %v2021, 4955
          %vm2278 = vcmp.lt.s32.totalorder %v2022, 4955
          %vm2279 = vcmp.lt.s32.totalorder %v2023, 4955
          %vm2280 = vcmp.lt.s32.totalorder %v2024, 4955
          %vm2281 = vcmp.lt.s32.totalorder %v2025, 4955
          %vm2282 = vcmp.lt.s32.totalorder %v2026, 4955
          %vm2283 = vcmp.lt.s32.totalorder %v2027, 4955
          %vm2284 = vcmp.lt.s32.totalorder %v2028, 4955
          %vm2285 = vcmp.lt.s32.totalorder %v2029, 4955
          %vm2286 = vcmp.lt.s32.totalorder %v2030, 4955
          %vm2287 = vcmp.lt.s32.totalorder %v2031, 4955
          %vm2288 = vcmp.lt.s32.totalorder %v2032, 4955
          %vm2289 = vcmp.lt.s32.totalorder %v2033, 4955
          %vm2290 = vcmp.lt.s32.totalorder %v2034, 4955
          %vm2291 = vcmp.lt.s32.totalorder %v2035, 4955
          %vm2292 = vcmp.lt.s32.totalorder %v2036, 4955
          %vm2293 = vcmp.lt.s32.totalorder %v2037, 4955
          %vm2294 = vcmp.lt.s32.totalorder %v2038, 4955
          %vm2295 = vcmp.lt.s32.totalorder %v2039, 4955
          %vm2296 = vcmp.lt.s32.totalorder %v2040, 4955
          %vm2297 = vcmp.lt.s32.totalorder %v2041, 4955
          %vm2298 = vcmp.lt.s32.totalorder %v2042, 4955
          %vm2299 = vcmp.lt.s32.totalorder %v2043, 4955
          %vm2300 = vcmp.lt.s32.totalorder %v2044, 4955
          %vm2301 = vcmp.lt.s32.totalorder %v2045, 4955
          %vm2302 = vcmp.lt.s32.totalorder %v2046, 4955
          %vm2303 = vcmp.lt.s32.totalorder %v2047, 4955
          %vm2304 = vcmp.lt.s32.totalorder %v2048, 4955
          %vm2305 = vcmp.lt.s32.totalorder %v2049, 4955
          %vm2306 = vcmp.lt.s32.totalorder %v2050, 4955
          %vm2307 = vcmp.lt.s32.totalorder %v2051, 4955
          %vm2308 = vcmp.lt.s32.totalorder %v2052, 4955
          %vm2309 = vcmp.lt.s32.totalorder %v2053, 4955
          %vm2310 = vcmp.lt.s32.totalorder %v2054, 4955
          %vm2311 = vcmp.lt.s32.totalorder %v2055, 4955
          %vm2312 = vcmp.lt.s32.totalorder %v2056, 4955
          %vm2313 = vcmp.lt.s32.totalorder %v2057, 4955
          %vm2314 = vcmp.lt.s32.totalorder %v2058, 4955
          %vm2315 = vcmp.lt.s32.totalorder %v2059, 4955
          %vm2316 = vcmp.lt.s32.totalorder %v2060, 4955
          %vm2317 = vcmp.lt.s32.totalorder %v2061, 4955
          %vm2318 = vcmp.lt.s32.totalorder %v2062, 4955
          %vm2319 = vcmp.lt.s32.totalorder %v2063, 4955
          %vm2320 = vcmp.lt.s32.totalorder %v2064, 4955
          %vm2321 = vcmp.lt.s32.totalorder %v2065, 4955
          %vm2322 = vcmp.lt.s32.totalorder %v2066, 4955
          %vm2323 = vcmp.lt.s32.totalorder %v2067, 4955
          %vm2324 = vcmp.lt.s32.totalorder %v2068, 4955
          %vm2325 = vcmp.lt.s32.totalorder %v2069, 4955
          %vm2326 = vcmp.lt.s32.totalorder %v2070, 4955
          %vm2327 = vcmp.lt.s32.totalorder %v2071, 4955
          %vm2328 = vcmp.lt.s32.totalorder %v2072, 4955
          %vm2329 = vcmp.lt.s32.totalorder %v2073, 4955
          %vm2330 = vcmp.lt.s32.totalorder %v2074, 4955
          %vm2331 = vcmp.lt.s32.totalorder %v2075, 4955
          %vm2332 = vcmp.lt.s32.totalorder %v2076, 4955
          %vm2333 = vcmp.lt.s32.totalorder %v2077, 4955
          %vm2334 = vcmp.lt.s32.totalorder %v2078, 4955
          %vm2335 = vcmp.lt.s32.totalorder %v2079, 4955
          %v2336 = vsel %vm2080, %v1043, 0.0
          %v2337 = vsel %vm2081, %v1044, 0.0
          %v2338 = vsel %vm2082, %v1045, 0.0
          %v2339 = vsel %vm2083, %v1046, 0.0
          %v2340 = vsel %vm2084, %v1047, 0.0
          %v2341 = vsel %vm2085, %v1048, 0.0
          %v2342 = vsel %vm2086, %v1049, 0.0
          %v2343 = vsel %vm2087, %v1050, 0.0
          %v2344 = vsel %vm2088, %v1051, 0.0
          %v2345 = vsel %vm2089, %v1052, 0.0
          %v2346 = vsel %vm2090, %v1053, 0.0
          %v2347 = vsel %vm2091, %v1054, 0.0
          %v2348 = vsel %vm2092, %v1055, 0.0
          %v2349 = vsel %vm2093, %v1056, 0.0
          %v2350 = vsel %vm2094, %v1057, 0.0
          %v2351 = vsel %vm2095, %v1058, 0.0
          %v2352 = vsel %vm2096, %v1059, 0.0
          %v2353 = vsel %vm2097, %v1060, 0.0
          %v2354 = vsel %vm2098, %v1061, 0.0
          %v2355 = vsel %vm2099, %v1062, 0.0
          %v2356 = vsel %vm2100, %v1063, 0.0
          %v2357 = vsel %vm2101, %v1064, 0.0
          %v2358 = vsel %vm2102, %v1065, 0.0
          %v2359 = vsel %vm2103, %v1066, 0.0
          %v2360 = vsel %vm2104, %v1067, 0.0
          %v2361 = vsel %vm2105, %v1068, 0.0
          %v2362 = vsel %vm2106, %v1069, 0.0
          %v2363 = vsel %vm2107, %v1070, 0.0
          %v2364 = vsel %vm2108, %v1071, 0.0
          %v2365 = vsel %vm2109, %v1072, 0.0
          %v2366 = vsel %vm2110, %v1073, 0.0
          %v2367 = vsel %vm2111, %v1074, 0.0
          %v2368 = vsel %vm2112, %v1075, 0.0
          %v2369 = vsel %vm2113, %v1076, 0.0
          %v2370 = vsel %vm2114, %v1077, 0.0
          %v2371 = vsel %vm2115, %v1078, 0.0
          %v2372 = vsel %vm2116, %v1079, 0.0
          %v2373 = vsel %vm2117, %v1080, 0.0
          %v2374 = vsel %vm2118, %v1081, 0.0
          %v2375 = vsel %vm2119, %v1082, 0.0
          %v2376 = vsel %vm2120, %v1083, 0.0
          %v2377 = vsel %vm2121, %v1084, 0.0
          %v2378 = vsel %vm2122, %v1085, 0.0
          %v2379 = vsel %vm2123, %v1086, 0.0
          %v2380 = vsel %vm2124, %v1087, 0.0
          %v2381 = vsel %vm2125, %v1088, 0.0
          %v2382 = vsel %vm2126, %v1089, 0.0
          %v2383 = vsel %vm2127, %v1090, 0.0
          %v2384 = vsel %vm2128, %v1091, 0.0
          %v2385 = vsel %vm2129, %v1092, 0.0
          %v2386 = vsel %vm2130, %v1093, 0.0
          %v2387 = vsel %vm2131, %v1094, 0.0
          %v2388 = vsel %vm2132, %v1095, 0.0
          %v2389 = vsel %vm2133, %v1096, 0.0
          %v2390 = vsel %vm2134, %v1097, 0.0
          %v2391 = vsel %vm2135, %v1098, 0.0
          %v2392 = vsel %vm2136, %v1099, 0.0
          %v2393 = vsel %vm2137, %v1100, 0.0
          %v2394 = vsel %vm2138, %v1101, 0.0
          %v2395 = vsel %vm2139, %v1102, 0.0
          %v2396 = vsel %vm2140, %v1103, 0.0
          %v2397 = vsel %vm2141, %v1104, 0.0
          %v2398 = vsel %vm2142, %v1105, 0.0
          %v2399 = vsel %vm2143, %v1106, 0.0
          %v2400 = vsel %vm2144, %v1107, 0.0
          %v2401 = vsel %vm2145, %v1108, 0.0
          %v2402 = vsel %vm2146, %v1109, 0.0
          %v2403 = vsel %vm2147, %v1110, 0.0
          %v2404 = vsel %vm2148, %v1111, 0.0
          %v2405 = vsel %vm2149, %v1112, 0.0
          %v2406 = vsel %vm2150, %v1113, 0.0
          %v2407 = vsel %vm2151, %v1114, 0.0
          %v2408 = vsel %vm2152, %v1115, 0.0
          %v2409 = vsel %vm2153, %v1116, 0.0
          %v2410 = vsel %vm2154, %v1117, 0.0
          %v2411 = vsel %vm2155, %v1118, 0.0
          %v2412 = vsel %vm2156, %v1119, 0.0
          %v2413 = vsel %vm2157, %v1120, 0.0
          %v2414 = vsel %vm2158, %v1121, 0.0
          %v2415 = vsel %vm2159, %v1122, 0.0
          %v2416 = vsel %vm2160, %v1123, 0.0
          %v2417 = vsel %vm2161, %v1124, 0.0
          %v2418 = vsel %vm2162, %v1125, 0.0
          %v2419 = vsel %vm2163, %v1126, 0.0
          %v2420 = vsel %vm2164, %v1127, 0.0
          %v2421 = vsel %vm2165, %v1128, 0.0
          %v2422 = vsel %vm2166, %v1129, 0.0
          %v2423 = vsel %vm2167, %v1130, 0.0
          %v2424 = vsel %vm2168, %v1131, 0.0
          %v2425 = vsel %vm2169, %v1132, 0.0
          %v2426 = vsel %vm2170, %v1133, 0.0
          %v2427 = vsel %vm2171, %v1134, 0.0
          %v2428 = vsel %vm2172, %v1135, 0.0
          %v2429 = vsel %vm2173, %v1136, 0.0
          %v2430 = vsel %vm2174, %v1137, 0.0
          %v2431 = vsel %vm2175, %v1138, 0.0
          %v2432 = vsel %vm2176, %v1139, 0.0
          %v2433 = vsel %vm2177, %v1140, 0.0
          %v2434 = vsel %vm2178, %v1141, 0.0
          %v2435 = vsel %vm2179, %v1142, 0.0
          %v2436 = vsel %vm2180, %v1143, 0.0
          %v2437 = vsel %vm2181, %v1144, 0.0
          %v2438 = vsel %vm2182, %v1145, 0.0
          %v2439 = vsel %vm2183, %v1146, 0.0
          %v2440 = vsel %vm2184, %v1147, 0.0
          %v2441 = vsel %vm2185, %v1148, 0.0
          %v2442 = vsel %vm2186, %v1149, 0.0
          %v2443 = vsel %vm2187, %v1150, 0.0
          %v2444 = vsel %vm2188, %v1151, 0.0
          %v2445 = vsel %vm2189, %v1152, 0.0
          %v2446 = vsel %vm2190, %v1153, 0.0
          %v2447 = vsel %vm2191, %v1154, 0.0
          %v2448 = vsel %vm2192, %v1155, 0.0
          %v2449 = vsel %vm2193, %v1156, 0.0
          %v2450 = vsel %vm2194, %v1157, 0.0
          %v2451 = vsel %vm2195, %v1158, 0.0
          %v2452 = vsel %vm2196, %v1159, 0.0
          %v2453 = vsel %vm2197, %v1160, 0.0
          %v2454 = vsel %vm2198, %v1161, 0.0
          %v2455 = vsel %vm2199, %v1162, 0.0
          %v2456 = vsel %vm2200, %v1163, 0.0
          %v2457 = vsel %vm2201, %v1164, 0.0
          %v2458 = vsel %vm2202, %v1165, 0.0
          %v2459 = vsel %vm2203, %v1166, 0.0
          %v2460 = vsel %vm2204, %v1167, 0.0
          %v2461 = vsel %vm2205, %v1168, 0.0
          %v2462 = vsel %vm2206, %v1169, 0.0
          %v2463 = vsel %vm2207, %v1170, 0.0
          %v2464 = vsel %vm2208, %v1171, 0.0
          %v2465 = vsel %vm2209, %v1172, 0.0
          %v2466 = vsel %vm2210, %v1173, 0.0
          %v2467 = vsel %vm2211, %v1174, 0.0
          %v2468 = vsel %vm2212, %v1175, 0.0
          %v2469 = vsel %vm2213, %v1176, 0.0
          %v2470 = vsel %vm2214, %v1177, 0.0
          %v2471 = vsel %vm2215, %v1178, 0.0
          %v2472 = vsel %vm2216, %v1179, 0.0
          %v2473 = vsel %vm2217, %v1180, 0.0
          %v2474 = vsel %vm2218, %v1181, 0.0
          %v2475 = vsel %vm2219, %v1182, 0.0
          %v2476 = vsel %vm2220, %v1183, 0.0
          %v2477 = vsel %vm2221, %v1184, 0.0
          %v2478 = vsel %vm2222, %v1185, 0.0
          %v2479 = vsel %vm2223, %v1186, 0.0
          %v2480 = vsel %vm2224, %v1187, 0.0
          %v2481 = vsel %vm2225, %v1188, 0.0
          %v2482 = vsel %vm2226, %v1189, 0.0
          %v2483 = vsel %vm2227, %v1190, 0.0
          %v2484 = vsel %vm2228, %v1191, 0.0
          %v2485 = vsel %vm2229, %v1192, 0.0
          %v2486 = vsel %vm2230, %v1193, 0.0
          %v2487 = vsel %vm2231, %v1194, 0.0
          %v2488 = vsel %vm2232, %v1195, 0.0
          %v2489 = vsel %vm2233, %v1196, 0.0
          %v2490 = vsel %vm2234, %v1197, 0.0
          %v2491 = vsel %vm2235, %v1198, 0.0
          %v2492 = vsel %vm2236, %v1199, 0.0
          %v2493 = vsel %vm2237, %v1200, 0.0
          %v2494 = vsel %vm2238, %v1201, 0.0
          %v2495 = vsel %vm2239, %v1202, 0.0
          %v2496 = vsel %vm2240, %v1203, 0.0
          %v2497 = vsel %vm2241, %v1204, 0.0
          %v2498 = vsel %vm2242, %v1205, 0.0
          %v2499 = vsel %vm2243, %v1206, 0.0
          %v2500 = vsel %vm2244, %v1207, 0.0
          %v2501 = vsel %vm2245, %v1208, 0.0
          %v2502 = vsel %vm2246, %v1209, 0.0
          %v2503 = vsel %vm2247, %v1210, 0.0
          %v2504 = vsel %vm2248, %v1211, 0.0
          %v2505 = vsel %vm2249, %v1212, 0.0
          %v2506 = vsel %vm2250, %v1213, 0.0
          %v2507 = vsel %vm2251, %v1214, 0.0
          %v2508 = vsel %vm2252, %v1215, 0.0
          %v2509 = vsel %vm2253, %v1216, 0.0
          %v2510 = vsel %vm2254, %v1217, 0.0
          %v2511 = vsel %vm2255, %v1218, 0.0
          %v2512 = vsel %vm2256, %v1219, 0.0
          %v2513 = vsel %vm2257, %v1220, 0.0
          %v2514 = vsel %vm2258, %v1221, 0.0
          %v2515 = vsel %vm2259, %v1222, 0.0
          %v2516 = vsel %vm2260, %v1223, 0.0
          %v2517 = vsel %vm2261, %v1224, 0.0
          %v2518 = vsel %vm2262, %v1225, 0.0
          %v2519 = vsel %vm2263, %v1226, 0.0
          %v2520 = vsel %vm2264, %v1227, 0.0
          %v2521 = vsel %vm2265, %v1228, 0.0
          %v2522 = vsel %vm2266, %v1229, 0.0
          %v2523 = vsel %vm2267, %v1230, 0.0
          %v2524 = vsel %vm2268, %v1231, 0.0
          %v2525 = vsel %vm2269, %v1232, 0.0
          %v2526 = vsel %vm2270, %v1233, 0.0
          %v2527 = vsel %vm2271, %v1234, 0.0
          %v2528 = vsel %vm2272, %v1235, 0.0
          %v2529 = vsel %vm2273, %v1236, 0.0
          %v2530 = vsel %vm2274, %v1237, 0.0
          %v2531 = vsel %vm2275, %v1238, 0.0
          %v2532 = vsel %vm2276, %v1239, 0.0
          %v2533 = vsel %vm2277, %v1240, 0.0
          %v2534 = vsel %vm2278, %v1241, 0.0
          %v2535 = vsel %vm2279, %v1242, 0.0
          %v2536 = vsel %vm2280, %v1243, 0.0
          %v2537 = vsel %vm2281, %v1244, 0.0
          %v2538 = vsel %vm2282, %v1245, 0.0
          %v2539 = vsel %vm2283, %v1246, 0.0
          %v2540 = vsel %vm2284, %v1247, 0.0
          %v2541 = vsel %vm2285, %v1248, 0.0
          %v2542 = vsel %vm2286, %v1249, 0.0
          %v2543 = vsel %vm2287, %v1250, 0.0
          %v2544 = vsel %vm2288, %v1251, 0.0
          %v2545 = vsel %vm2289, %v1252, 0.0
          %v2546 = vsel %vm2290, %v1253, 0.0
          %v2547 = vsel %vm2291, %v1254, 0.0
          %v2548 = vsel %vm2292, %v1255, 0.0
          %v2549 = vsel %vm2293, %v1256, 0.0
          %v2550 = vsel %vm2294, %v1257, 0.0
          %v2551 = vsel %vm2295, %v1258, 0.0
          %v2552 = vsel %vm2296, %v1259, 0.0
          %v2553 = vsel %vm2297, %v1260, 0.0
          %v2554 = vsel %vm2298, %v1261, 0.0
          %v2555 = vsel %vm2299, %v1262, 0.0
          %v2556 = vsel %vm2300, %v1263, 0.0
          %v2557 = vsel %vm2301, %v1264, 0.0
          %v2558 = vsel %vm2302, %v1265, 0.0
          %v2559 = vsel %vm2303, %v1266, 0.0
          %v2560 = vsel %vm2304, %v1267, 0.0
          %v2561 = vsel %vm2305, %v1268, 0.0
          %v2562 = vsel %vm2306, %v1269, 0.0
          %v2563 = vsel %vm2307, %v1270, 0.0
          %v2564 = vsel %vm2308, %v1271, 0.0
          %v2565 = vsel %vm2309, %v1272, 0.0
          %v2566 = vsel %vm2310, %v1273, 0.0
          %v2567 = vsel %vm2311, %v1274, 0.0
          %v2568 = vsel %vm2312, %v1275, 0.0
          %v2569 = vsel %vm2313, %v1276, 0.0
          %v2570 = vsel %vm2314, %v1277, 0.0
          %v2571 = vsel %vm2315, %v1278, 0.0
          %v2572 = vsel %vm2316, %v1279, 0.0
          %v2573 = vsel %vm2317, %v1280, 0.0
          %v2574 = vsel %vm2318, %v1281, 0.0
          %v2575 = vsel %vm2319, %v1282, 0.0
          %v2576 = vsel %vm2320, %v1283, 0.0
          %v2577 = vsel %vm2321, %v1284, 0.0
          %v2578 = vsel %vm2322, %v1285, 0.0
          %v2579 = vsel %vm2323, %v1286, 0.0
          %v2580 = vsel %vm2324, %v1287, 0.0
          %v2581 = vsel %vm2325, %v1288, 0.0
          %v2582 = vsel %vm2326, %v1289, 0.0
          %v2583 = vsel %vm2327, %v1290, 0.0
          %v2584 = vsel %vm2328, %v1291, 0.0
          %v2585 = vsel %vm2329, %v1292, 0.0
          %v2586 = vsel %vm2330, %v1293, 0.0
          %v2587 = vsel %vm2331, %v1294, 0.0
          %v2588 = vsel %vm2332, %v1295, 0.0
          %v2589 = vsel %vm2333, %v1296, 0.0
          %v2590 = vsel %vm2334, %v1297, 0.0
          %v2591 = vsel %vm2335, %v1298, 0.0
          %v2592 = vld [vmem:[%s249] sm:$0xff]
          %v2593 = vadd.f32 %v2336, %v2337
          %v2594 = vadd.f32 %v2593, %v2338
          %v2595 = vadd.f32 %v2594, %v2339
          %v2596 = vadd.f32 %v2595, %v2340
          %v2597 = vadd.f32 %v2596, %v2341
          %v2598 = vadd.f32 %v2597, %v2342
          %v2599 = vadd.f32 %v2598, %v2343
          %v2600 = vadd.f32 %v2599, %v2344
          %v2601 = vadd.f32 %v2600, %v2345
          %v2602 = vadd.f32 %v2601, %v2346
          %v2603 = vadd.f32 %v2602, %v2347
          %v2604 = vadd.f32 %v2603, %v2348
          %v2605 = vadd.f32 %v2604, %v2349
          %v2606 = vadd.f32 %v2605, %v2350
          %v2607 = vadd.f32 %v2606, %v2351
          %v2608 = vadd.f32 %v2607, %v2352
          %v2609 = vadd.f32 %v2608, %v2353
          %v2610 = vadd.f32 %v2609, %v2354
          %v2611 = vadd.f32 %v2610, %v2355
          %v2612 = vadd.f32 %v2611, %v2356
          %v2613 = vadd.f32 %v2612, %v2357
          %v2614 = vadd.f32 %v2613, %v2358
          %v2615 = vadd.f32 %v2614, %v2359
          %v2616 = vadd.f32 %v2615, %v2360
          %v2617 = vadd.f32 %v2616, %v2361
          %v2618 = vadd.f32 %v2617, %v2362
          %v2619 = vadd.f32 %v2618, %v2363
          %v2620 = vadd.f32 %v2619, %v2364
          %v2621 = vadd.f32 %v2620, %v2365
          %v2622 = vadd.f32 %v2621, %v2366
          %v2623 = vadd.f32 %v2622, %v2367
          %v2624 = vadd.f32 %v2623, %v2368
          %v2625 = vadd.f32 %v2624, %v2369
          %v2626 = vadd.f32 %v2625, %v2370
          %v2627 = vadd.f32 %v2626, %v2371
          %v2628 = vadd.f32 %v2627, %v2372
          %v2629 = vadd.f32 %v2628, %v2373
          %v2630 = vadd.f32 %v2629, %v2374
          %v2631 = vadd.f32 %v2630, %v2375
          %v2632 = vadd.f32 %v2631, %v2376
          %v2633 = vadd.f32 %v2632, %v2377
          %v2634 = vadd.f32 %v2633, %v2378
          %v2635 = vadd.f32 %v2634, %v2379
          %v2636 = vadd.f32 %v2635, %v2380
          %v2637 = vadd.f32 %v2636, %v2381
          %v2638 = vadd.f32 %v2637, %v2382
          %v2639 = vadd.f32 %v2638, %v2383
          %v2640 = vadd.f32 %v2639, %v2384
          %v2641 = vadd.f32 %v2640, %v2385
          %v2642 = vadd.f32 %v2641, %v2386
          %v2643 = vadd.f32 %v2642, %v2387
          %v2644 = vadd.f32 %v2643, %v2388
          %v2645 = vadd.f32 %v2644, %v2389
          %v2646 = vadd.f32 %v2645, %v2390
          %v2647 = vadd.f32 %v2646, %v2391
          %v2648 = vadd.f32 %v2647, %v2392
          %v2649 = vadd.f32 %v2648, %v2393
          %v2650 = vadd.f32 %v2649, %v2394
          %v2651 = vadd.f32 %v2650, %v2395
          %v2652 = vadd.f32 %v2651, %v2396
          %v2653 = vadd.f32 %v2652, %v2397
          %v2654 = vadd.f32 %v2653, %v2398
          %v2655 = vadd.f32 %v2654, %v2399
          %v2656 = vadd.f32 %v2655, %v2400
          %v2657 = vadd.f32 %v2656, %v2401
          %v2658 = vadd.f32 %v2657, %v2402
          %v2659 = vadd.f32 %v2658, %v2403
          %v2660 = vadd.f32 %v2659, %v2404
          %v2661 = vadd.f32 %v2660, %v2405
          %v2662 = vadd.f32 %v2661, %v2406
          %v2663 = vadd.f32 %v2662, %v2407
          %v2664 = vadd.f32 %v2663, %v2408
          %v2665 = vadd.f32 %v2664, %v2409
          %v2666 = vadd.f32 %v2665, %v2410
          %v2667 = vadd.f32 %v2666, %v2411
          %v2668 = vadd.f32 %v2667, %v2412
          %v2669 = vadd.f32 %v2668, %v2413
          %v2670 = vadd.f32 %v2669, %v2414
          %v2671 = vadd.f32 %v2670, %v2415
          %v2672 = vadd.f32 %v2671, %v2416
          %v2673 = vadd.f32 %v2672, %v2417
          %v2674 = vadd.f32 %v2673, %v2418
          %v2675 = vadd.f32 %v2674, %v2419
          %v2676 = vadd.f32 %v2675, %v2420
          %v2677 = vadd.f32 %v2676, %v2421
          %v2678 = vadd.f32 %v2677, %v2422
          %v2679 = vadd.f32 %v2678, %v2423
          %v2680 = vadd.f32 %v2679, %v2424
          %v2681 = vadd.f32 %v2680, %v2425
          %v2682 = vadd.f32 %v2681, %v2426
          %v2683 = vadd.f32 %v2682, %v2427
          %v2684 = vadd.f32 %v2683, %v2428
          %v2685 = vadd.f32 %v2684, %v2429
          %v2686 = vadd.f32 %v2685, %v2430
          %v2687 = vadd.f32 %v2686, %v2431
          %v2688 = vadd.f32 %v2687, %v2432
          %v2689 = vadd.f32 %v2688, %v2433
          %v2690 = vadd.f32 %v2689, %v2434
          %v2691 = vadd.f32 %v2690, %v2435
          %v2692 = vadd.f32 %v2691, %v2436
          %v2693 = vadd.f32 %v2692, %v2437
          %v2694 = vadd.f32 %v2693, %v2438
          %v2695 = vadd.f32 %v2694, %v2439
          %v2696 = vadd.f32 %v2695, %v2440
          %v2697 = vadd.f32 %v2696, %v2441
          %v2698 = vadd.f32 %v2697, %v2442
          %v2699 = vadd.f32 %v2698, %v2443
          %v2700 = vadd.f32 %v2699, %v2444
          %v2701 = vadd.f32 %v2700, %v2445
          %v2702 = vadd.f32 %v2701, %v2446
          %v2703 = vadd.f32 %v2702, %v2447
          %v2704 = vadd.f32 %v2703, %v2448
          %v2705 = vadd.f32 %v2704, %v2449
          %v2706 = vadd.f32 %v2705, %v2450
          %v2707 = vadd.f32 %v2706, %v2451
          %v2708 = vadd.f32 %v2707, %v2452
          %v2709 = vadd.f32 %v2708, %v2453
          %v2710 = vadd.f32 %v2709, %v2454
          %v2711 = vadd.f32 %v2710, %v2455
          %v2712 = vadd.f32 %v2711, %v2456
          %v2713 = vadd.f32 %v2712, %v2457
          %v2714 = vadd.f32 %v2713, %v2458
          %v2715 = vadd.f32 %v2714, %v2459
          %v2716 = vadd.f32 %v2715, %v2460
          %v2717 = vadd.f32 %v2716, %v2461
          %v2718 = vadd.f32 %v2717, %v2462
          %v2719 = vadd.f32 %v2718, %v2463
          %v2720 = vadd.f32 %v2719, %v2464
          %v2721 = vadd.f32 %v2720, %v2465
          %v2722 = vadd.f32 %v2721, %v2466
          %v2723 = vadd.f32 %v2722, %v2467
          %v2724 = vadd.f32 %v2723, %v2468
          %v2725 = vadd.f32 %v2724, %v2469
          %v2726 = vadd.f32 %v2725, %v2470
          %v2727 = vadd.f32 %v2726, %v2471
          %v2728 = vadd.f32 %v2727, %v2472
          %v2729 = vadd.f32 %v2728, %v2473
          %v2730 = vadd.f32 %v2729, %v2474
          %v2731 = vadd.f32 %v2730, %v2475
          %v2732 = vadd.f32 %v2731, %v2476
          %v2733 = vadd.f32 %v2732, %v2477
          %v2734 = vadd.f32 %v2733, %v2478
          %v2735 = vadd.f32 %v2734, %v2479
          %v2736 = vadd.f32 %v2735, %v2480
          %v2737 = vadd.f32 %v2736, %v2481
          %v2738 = vadd.f32 %v2737, %v2482
          %v2739 = vadd.f32 %v2738, %v2483
          %v2740 = vadd.f32 %v2739, %v2484
          %v2741 = vadd.f32 %v2740, %v2485
          %v2742 = vadd.f32 %v2741, %v2486
          %v2743 = vadd.f32 %v2742, %v2487
          %v2744 = vadd.f32 %v2743, %v2488
          %v2745 = vadd.f32 %v2744, %v2489
          %v2746 = vadd.f32 %v2745, %v2490
          %v2747 = vadd.f32 %v2746, %v2491
          %v2748 = vadd.f32 %v2747, %v2492
          %v2749 = vadd.f32 %v2748, %v2493
          %v2750 = vadd.f32 %v2749, %v2494
          %v2751 = vadd.f32 %v2750, %v2495
          %v2752 = vadd.f32 %v2751, %v2496
          %v2753 = vadd.f32 %v2752, %v2497
          %v2754 = vadd.f32 %v2753, %v2498
          %v2755 = vadd.f32 %v2754, %v2499
          %v2756 = vadd.f32 %v2755, %v2500
          %v2757 = vadd.f32 %v2756, %v2501
          %v2758 = vadd.f32 %v2757, %v2502
          %v2759 = vadd.f32 %v2758, %v2503
          %v2760 = vadd.f32 %v2759, %v2504
          %v2761 = vadd.f32 %v2760, %v2505
          %v2762 = vadd.f32 %v2761, %v2506
          %v2763 = vadd.f32 %v2762, %v2507
          %v2764 = vadd.f32 %v2763, %v2508
          %v2765 = vadd.f32 %v2764, %v2509
          %v2766 = vadd.f32 %v2765, %v2510
          %v2767 = vadd.f32 %v2766, %v2511
          %v2768 = vadd.f32 %v2767, %v2512
          %v2769 = vadd.f32 %v2768, %v2513
          %v2770 = vadd.f32 %v2769, %v2514
          %v2771 = vadd.f32 %v2770, %v2515
          %v2772 = vadd.f32 %v2771, %v2516
          %v2773 = vadd.f32 %v2772, %v2517
          %v2774 = vadd.f32 %v2773, %v2518
          %v2775 = vadd.f32 %v2774, %v2519
          %v2776 = vadd.f32 %v2775, %v2520
          %v2777 = vadd.f32 %v2776, %v2521
          %v2778 = vadd.f32 %v2777, %v2522
          %v2779 = vadd.f32 %v2778, %v2523
          %v2780 = vadd.f32 %v2779, %v2524
          %v2781 = vadd.f32 %v2780, %v2525
          %v2782 = vadd.f32 %v2781, %v2526
          %v2783 = vadd.f32 %v2782, %v2527
          %v2784 = vadd.f32 %v2783, %v2528
          %v2785 = vadd.f32 %v2784, %v2529
          %v2786 = vadd.f32 %v2785, %v2530
          %v2787 = vadd.f32 %v2786, %v2531
          %v2788 = vadd.f32 %v2787, %v2532
          %v2789 = vadd.f32 %v2788, %v2533
          %v2790 = vadd.f32 %v2789, %v2534
          %v2791 = vadd.f32 %v2790, %v2535
          %v2792 = vadd.f32 %v2791, %v2536
          %v2793 = vadd.f32 %v2792, %v2537
          %v2794 = vadd.f32 %v2793, %v2538
          %v2795 = vadd.f32 %v2794, %v2539
          %v2796 = vadd.f32 %v2795, %v2540
          %v2797 = vadd.f32 %v2796, %v2541
          %v2798 = vadd.f32 %v2797, %v2542
          %v2799 = vadd.f32 %v2798, %v2543
          %v2800 = vadd.f32 %v2799, %v2544
          %v2801 = vadd.f32 %v2800, %v2545
          %v2802 = vadd.f32 %v2801, %v2546
          %v2803 = vadd.f32 %v2802, %v2547
          %v2804 = vadd.f32 %v2803, %v2548
          %v2805 = vadd.f32 %v2804, %v2549
          %v2806 = vadd.f32 %v2805, %v2550
          %v2807 = vadd.f32 %v2806, %v2551
          %v2808 = vadd.f32 %v2807, %v2552
          %v2809 = vadd.f32 %v2808, %v2553
          %v2810 = vadd.f32 %v2809, %v2554
          %v2811 = vadd.f32 %v2810, %v2555
          %v2812 = vadd.f32 %v2811, %v2556
          %v2813 = vadd.f32 %v2812, %v2557
          %v2814 = vadd.f32 %v2813, %v2558
          %v2815 = vadd.f32 %v2814, %v2559
          %v2816 = vadd.f32 %v2815, %v2560
          %v2817 = vadd.f32 %v2816, %v2561
          %v2818 = vadd.f32 %v2817, %v2562
          %v2819 = vadd.f32 %v2818, %v2563
          %v2820 = vadd.f32 %v2819, %v2564
          %v2821 = vadd.f32 %v2820, %v2565
          %v2822 = vadd.f32 %v2821, %v2566
          %v2823 = vadd.f32 %v2822, %v2567
          %v2824 = vadd.f32 %v2823, %v2568
          %v2825 = vadd.f32 %v2824, %v2569
          %v2826 = vadd.f32 %v2825, %v2570
          %v2827 = vadd.f32 %v2826, %v2571
          %v2828 = vadd.f32 %v2827, %v2572
          %v2829 = vadd.f32 %v2828, %v2573
          %v2830 = vadd.f32 %v2829, %v2574
          %v2831 = vadd.f32 %v2830, %v2575
          %v2832 = vadd.f32 %v2831, %v2576
          %v2833 = vadd.f32 %v2832, %v2577
          %v2834 = vadd.f32 %v2833, %v2578
          %v2835 = vadd.f32 %v2834, %v2579
          %v2836 = vadd.f32 %v2835, %v2580
          %v2837 = vadd.f32 %v2836, %v2581
          %v2838 = vadd.f32 %v2837, %v2582
          %v2839 = vadd.f32 %v2838, %v2583
          %v2840 = vadd.f32 %v2839, %v2584
          %v2841 = vadd.f32 %v2840, %v2585
          %v2842 = vadd.f32 %v2841, %v2586
          %v2843 = vadd.f32 %v2842, %v2587
          %v2844 = vadd.f32 %v2843, %v2588
          %v2845 = vadd.f32 %v2844, %v2589
          %v2846 = vadd.f32 %v2845, %v2590
          %v2847 = vadd.f32 %v2846, %v2591
          %v2848 = vadd.f32 %v2592, %v2847
          %2849 = vst [vmem:[%s249] sm:$0xff] %v2848
        $region48: #{tpu_custom_call.1} parent=27 // pred_fallthru
          _
        %s2850 = sand.u32 %s110, 1
        %s2851 = scalar_lea.sflag [#allocation4], %s2850
        %s2852 = sand.u32 %s110, 1
        %s2853 = smul.addr %s2852, 8
        %s2854 = scalar_lea.vmem [#allocation7], %s2853
        // Predicated region
        $region49: #{tpu_custom_call.1} parent=27 // pred_check
          %p2855 = pneg %p120
        $region50: #{tpu_custom_call.1} parent=27 // pred_check_branch
          %2857 = sbr.rel (%p2855) target = $region52
        $region51: #{tpu_custom_call.1} parent=27 // pred_region
          %s2859 = ssub.s32 128, 128
          %2860 = vsyncadd %s2851, %s2859
          %s2861 = smul.addr %s26, 128
          %s2862 = scalar_lea.hbm %s2, %s2861
          %s2864 = sshll.u32 %s2854, 4
          %s2865 = int_to_ptr.vmem [resolvable:$true] %s2864
          %2867 = dma.vmem_to_hbm [thread:$0]  %s2865, 128, %s2862, %s2851
        $region52: #{tpu_custom_call.1} parent=27 // pred_fallthru
          _
      $region28: #{tpu_custom_call.1} parent=5 // pred_fallthru
        _
      %p2868 = scmp.le.s32.totalorder 2, %s17
      // Predicated region
      $region53: #{tpu_custom_call.1} parent=5 // pred_check
        %p2869 = pneg %p2868
      $region54: #{tpu_custom_call.1} parent=5 // pred_check_branch
        %2871 = sbr.rel (%p2869) target = $region56
      $region55: #{tpu_custom_call.1} parent=5 // pred_region
        %s2872 = ssub.s32 %s17, 2
        // Predicated region
        $region57: #{tpu_custom_call.1} parent=55 // pred_check
          %p2873 = pneg %p126
        $region58: #{tpu_custom_call.1} parent=55 // pred_check_branch
          %2875 = sbr.rel (%p2873) target = $region60
        $region59: #{tpu_custom_call.1} parent=55 // pred_region
          %s2876 = sand.u32 %s111, 1
          %s2877 = scalar_lea.sflag [#allocation4], %s2876
          %s2878 = sand.u32 %s111, 1
          %s2879 = smul.addr %s2878, 8
          %s2880 = scalar_lea.vmem [#allocation7], %s2879
          %2881 = dma.done %s2877, 128
        $region60: #{tpu_custom_call.1} parent=55 // pred_fallthru
          _
      $region56: #{tpu_custom_call.1} parent=5 // pred_fallthru
        _
    $region6: #{tpu_custom_call.1} parent=1 // loop_footer
      %s21 = sadd.s32 1, %s17
    $region7: #{tpu_custom_call.1} parent=1 // loop_footer_branch
      %16 = sbr.rel target = $region3
    $region8: #{tpu_custom_call.1} parent=1 // loop_exit
      _
    %2882 = vsyncpa [#allocation3], 1
    %s2883 = scalar_lea.sflag [#allocation3], 1
    %2884 = vsyncpa %s2883, 1
    %2885 = vsyncpa [#allocation6], 1
    %s2886 = scalar_lea.sflag [#allocation6], 1
    %2887 = vsyncpa %s2886, 1
    %2888 = vsyncpa [#allocation4], 1
    %s2889 = scalar_lea.sflag [#allocation4], 1
    %2890 = vsyncpa %s2889, 1

</llo_original>
